<compile_context>
chip_gen: v7x
topology: tpu7x:2x2x1
jax: 0.10.0
libtpu: 0.0.40
codegen_flags: <defaults>
</compile_context>

<pallas_src>
import functools

import jax
import jax.numpy as jnp
from jax.experimental import pallas as pl
from jax.experimental.pallas import tpu as pltpu

RRELU_SLOPE = (1.0 / 8.0 + 1.0 / 3.0) / 2.0  # F.rrelu eval-mode slope = 11/48
BN_EPS = 1e-5


# --------------------------------------------------------------------------
# Kernel 1: conv1 (3x3, stride 1, pad 1) + folded BN1 + rrelu
# --------------------------------------------------------------------------
def _conv3x3_bn_rrelu_kernel(x_ref, w_ref, b_ref, o_ref, xpad_ref,
                             *, H, W, Cin, Cout):
    # x_ref: (1,H,W,Cin) bf16; w_ref: (9*Cin, Cout) bf16 (BN1 scale folded in)
    # b_ref: (1,Cout) f32;     o_ref: (1,H,W,Cout) bf16
    # xpad_ref: (H+2, W+2, Cin) f32 VMEM scratch (in-kernel halo padding)
    xpad_ref[...] = jnp.zeros((H + 2, W + 2, Cin), jnp.float32)
    xpad_ref[1:H + 1, 1:W + 1, :] = x_ref[0].astype(jnp.float32)

    # im2col: 9 shifted windows concatenated along the feature (lane) axis,
    # then a single MXU matmul (bf16 x bf16 -> f32).
    cols = []
    for dy in range(3):
        for dx in range(3):
            cols.append(
                xpad_ref[pl.ds(dy, H), pl.ds(dx, W), :].reshape(H * W, Cin))
    patch = jnp.concatenate(cols, axis=1).astype(jnp.bfloat16)   # (H*W, 9*Cin)

    acc = jnp.dot(patch, w_ref[...], preferred_element_type=jnp.float32)
    y = acc + b_ref[0, :]                                        # f32 epilogue
    y = jnp.where(y >= 0, y, y * RRELU_SLOPE)
    o_ref[0] = y.reshape(H, W, Cout).astype(o_ref.dtype)


def conv1_bn_rrelu(x_nhwc, w_folded, bias):
    N, H, W, Cin = x_nhwc.shape
    Cout = w_folded.shape[-1]
    kernel = functools.partial(_conv3x3_bn_rrelu_kernel,
                               H=H, W=W, Cin=Cin, Cout=Cout)
    return pl.pallas_call(
        kernel,
        out_shape=jax.ShapeDtypeStruct((N, H, W, Cout), jnp.bfloat16),
        grid=(N,),
        in_specs=[
            pl.BlockSpec((1, H, W, Cin), lambda n: (n, 0, 0, 0)),
            pl.BlockSpec((9 * Cin, Cout), lambda n: (0, 0)),
            pl.BlockSpec((1, Cout), lambda n: (0, 0)),
        ],
        out_specs=pl.BlockSpec((1, H, W, Cout), lambda n: (n, 0, 0, 0)),
        scratch_shapes=[pltpu.VMEM((H + 2, W + 2, Cin), jnp.float32)],
        compiler_params=pltpu.CompilerParams(
            dimension_semantics=("parallel",)),
    )(x_nhwc, w_folded, bias)


# --------------------------------------------------------------------------
# Kernel 2: fused  rrelu( conv3(up2(x)) + BN2(conv2(up2(h))) )
# via nearest-upsample phase decomposition (one 2x2 conv per output phase).
# --------------------------------------------------------------------------
def _up_fused_kernel(x_ref, h_ref, w_ref, b_ref, o_ref, xpad_ref, hpad_ref,
                     *, H, W, Cin, Cmid, Cout):
    # Grid: (N, row_phase).  For row phase py = program_id(1) and both column
    # phases px, compute out[2i+py, 2j+px, :] for all (i, j).
    # x_ref: (1,H,W,Cin) bf16; h_ref: (1,H,W,Cmid) bf16
    # w_ref: (1, 2, 4*(Cin+Cmid), Cout) bf16  (phase-folded conv3|conv2*s2)
    # b_ref: (1, Cout) f32  (b3 + BN2-folded conv2 bias)
    # o_ref: (1, 1, 2, H, W, Cout) f32  (phase-planar output block)
    py = pl.program_id(1)

    xpad_ref[...] = jnp.zeros((H + 2, W + 2, Cin), jnp.float32)
    xpad_ref[1:H + 1, 1:W + 1, :] = x_ref[0].astype(jnp.float32)
    hpad_ref[...] = jnp.zeros((H + 2, W + 2, Cmid), jnp.float32)
    hpad_ref[1:H + 1, 1:W + 1, :] = h_ref[0].astype(jnp.float32)

    for px in range(2):
        cols = []
        # 2x2 window of the ORIGINAL-resolution padded x (skip / conv3 path)
        for gy in range(2):
            for gx in range(2):
                cols.append(
                    xpad_ref[pl.ds(py + gy, H), pl.ds(px + gx, W), :]
                    .reshape(H * W, Cin))
        # 2x2 window of the padded h (conv2 path)
        for gy in range(2):
            for gx in range(2):
                cols.append(
                    hpad_ref[pl.ds(py + gy, H), pl.ds(px + gx, W), :]
                    .reshape(H * W, Cmid))
        patch = jnp.concatenate(cols, axis=1).astype(jnp.bfloat16)
        # single matmul covers conv3 + conv2 (K = 4*(Cin+Cmid))
        acc = jnp.dot(patch, w_ref[0, px],
                      preferred_element_type=jnp.float32)        # (H*W, Cout)
        y = acc + b_ref[0, :]
        y = jnp.where(y >= 0, y, y * RRELU_SLOPE)
        o_ref[0, 0, px] = y.reshape(H, W, Cout).astype(o_ref.dtype)


def res_up_fused_conv(x_nhwc, h_nhwc, wc, bias):
    N, H, W, Cin = x_nhwc.shape
    Cmid = h_nhwc.shape[-1]
    Cout = wc.shape[-1]
    K = 4 * (Cin + Cmid)
    kernel = functools.partial(_up_fused_kernel,
                               H=H, W=W, Cin=Cin, Cmid=Cmid, Cout=Cout)
    return pl.pallas_call(
        kernel,
        out_shape=jax.ShapeDtypeStruct((N, 2, 2, H, W, Cout), jnp.float32),
        grid=(N, 2),
        in_specs=[
            pl.BlockSpec((1, H, W, Cin), lambda n, p: (n, 0, 0, 0)),
            pl.BlockSpec((1, H, W, Cmid), lambda n, p: (n, 0, 0, 0)),
            pl.BlockSpec((1, 2, K, Cout), lambda n, p: (p, 0, 0, 0)),
            pl.BlockSpec((1, Cout), lambda n, p: (0, 0)),
        ],
        out_specs=pl.BlockSpec((1, 1, 2, H, W, Cout),
                               lambda n, p: (n, p, 0, 0, 0, 0)),
        scratch_shapes=[pltpu.VMEM((H + 2, W + 2, Cin), jnp.float32),
                        pltpu.VMEM((H + 2, W + 2, Cmid), jnp.float32)],
        compiler_params=pltpu.CompilerParams(
            dimension_semantics=("parallel", "parallel")),
    )(x_nhwc, h_nhwc, wc, bias)


# --------------------------------------------------------------------------
# Parameter-side helpers (tiny XLA ops on weights only)
# --------------------------------------------------------------------------
def fold_bn(conv_bias, gamma, beta, mean, var):
    """Fold conv bias + eval-mode BatchNorm into per-channel (scale, bias)."""
    scale = gamma / jnp.sqrt(var + BN_EPS)
    bias = (conv_bias - mean) * scale + beta
    return scale, bias


def _phase_fold(w):
    """Fold a 3x3 conv (on a nearest-2x-upsampled input) into four 2x2 convs
    on the original input, one per output phase (oy%2, ox%2).

    w: (3, 3, Cin, Cout)  ->  (2, 2, 4*Cin, Cout), feature order (gy, gx, cin).
    """
    # R[phase, window_offset, tap]: which original taps read the same source
    # pixel after nearest-2x upsampling (their weights are pre-summed).
    R = jnp.array([[[1., 0., 0.], [0., 1., 1.]],
                   [[1., 1., 0.], [0., 0., 1.]]], jnp.float32)
    Wp = jnp.einsum('pad,qbe,deio->pqabio', R, R, w.astype(jnp.float32))
    P, Q, A, B, Ci, Co = Wp.shape
    return Wp.reshape(P, Q, A * B * Ci, Co)


def init_params(key, channel_in, channel_out):
    """Deterministic parameter init matching the PyTorch module's shapes."""
    cmid = channel_out // 2
    ks = jax.random.split(key, 5)

    def conv_init(k, ci, co):
        fan_in = ci * 9
        bound = 1.0 / jnp.sqrt(fan_in)
        kw, kb = jax.random.split(k)
        w = jax.random.uniform(kw, (3, 3, ci, co), jnp.float32, -bound, bound)
        b = jax.random.uniform(kb, (co,), jnp.float32, -bound, bound)
        return w, b

    def bn_init(k, c):
        k1, k2, k3 = jax.random.split(k, 3)
        gamma = 1.0 + 0.1 * jax.random.normal(k1, (c,), jnp.float32)
        beta = 0.1 * jax.random.normal(k2, (c,), jnp.float32)
        running_mean = 0.05 * jax.random.normal(k3, (c,), jnp.float32)
        running_var = jnp.ones((c,), jnp.float32)
        return gamma, beta, running_mean, running_var

    w1, b1 = conv_init(ks[0], channel_in, cmid)         # conv1
    w2, b2 = conv_init(ks[1], cmid, channel_out)        # conv2
    w3, b3 = conv_init(ks[2], channel_in, channel_out)  # conv3
    return dict(w1=w1, b1=b1, w2=w2, b2=b2, w3=w3, b3=b3,
                bn1=bn_init(ks[3], cmid), bn2=bn_init(ks[4], channel_out))


# --------------------------------------------------------------------------
# Forward pass
# --------------------------------------------------------------------------
def res_up_forward(x_nchw, p, scale_factor=2):
    assert scale_factor == 2  # phase decomposition specialized for 2x nearest
    N, Cin, H, W = x_nchw.shape
    Cmid = p['w1'].shape[-1]
    Cout = p['w2'].shape[-1]

    # NCHW -> NHWC (channel-last for the kernels); activations in bf16.
    x = jnp.transpose(x_nchw, (0, 2, 3, 1)).astype(jnp.bfloat16)

    # Fold eval-mode BN into per-channel scale/bias; fold the scale into the
    # conv weights so the kernels need only a bias + rrelu epilogue.
    s1, bb1 = fold_bn(p['b1'], *p['bn1'])
    s2, bb2 = fold_bn(p['b2'], *p['bn2'])

    # --- h = rrelu(BN1(conv1(x)))
    w1f = (p['w1'] * s1[None, None, None, :]) \
        .reshape(9 * Cin, Cmid).astype(jnp.bfloat16)
    h = conv1_bn_rrelu(x, w1f, bb1.reshape(1, Cmid).astype(jnp.float32))

    # --- out = rrelu( conv3(up2(x)) + BN2(conv2(up2(h))) ), fully fused
    w3p = _phase_fold(p['w3'])                                   # (2,2,4*Cin ,Cout)
    w2p = _phase_fold(p['w2'] * s2[None, None, None, :])         # (2,2,4*Cmid,Cout)
    wc = jnp.concatenate([w3p, w2p], axis=2).astype(jnp.bfloat16)
    bias = (bb2 + p['b3']).reshape(1, Cout).astype(jnp.float32)

    out = res_up_fused_conv(x, h, wc, bias)          # (N, 2, 2, H, W, Cout)

    # Interleave the 4 phases AND convert to NCHW in a single transpose
    # (the NCHW transpose is required by the PyTorch interface anyway).
    out = jnp.transpose(out, (0, 5, 3, 1, 4, 2)).reshape(N, Cout, 2 * H, 2 * W)
    return out


# --------------------------------------------------------------------------
# Pure-JAX reference (f32) for correctness checking
# --------------------------------------------------------------------------
def _ref_forward(x_nchw, p):
    def conv(x, w, b):
        y = jax.lax.conv_general_dilated(
            x, w, window_strides=(1, 1), padding=((1, 1), (1, 1)),
            dimension_numbers=('NCHW', 'HWIO', 'NCHW'))
        return y + b[None, :, None, None]

    def bn(x, gamma, beta, mean, var):
        inv = gamma / jnp.sqrt(var + BN_EPS)
        return ((x - mean[None, :, None, None]) * inv[None, :, None, None]
                + beta[None, :, None, None])

    def rrelu(x):
        return jnp.where(x >= 0, x, x * RRELU_SLOPE)

    def up(x):
        return jnp.repeat(jnp.repeat(x, 2, axis=2), 2, axis=3)

    skip = conv(up(x_nchw), p['w3'], p['b3'])
    h = rrelu(bn(conv(x_nchw, p['w1'], p['b1']), *p['bn1']))
    h = bn(conv(up(h), p['w2'], p['b2']), *p['bn2'])
    return rrelu(h + skip)


if __name__ == "__main__":
    key = jax.random.PRNGKey(0)
    kx, kp = jax.random.split(key)

    N, C_IN, H, W = 2, 4, 16, 16
    C_OUT = 8

    x = jax.random.normal(kx, (N, C_IN, H, W), jnp.float32)
    params = init_params(kp, C_IN, C_OUT)

    y = jax.jit(res_up_forward)(x, params)
    jax.block_until_ready(y)

    assert y.shape == (N, C_OUT, 2 * H, 2 * W), y.shape
    assert bool(jnp.all(jnp.isfinite(y)))

    y_ref = _ref_forward(x, params)
    err = float(jnp.max(jnp.abs(y - y_ref)))
    assert err < 0.1, f"max abs error vs reference: {err}"

    print("KERNEL_OK")
</pallas_src>

<mosaic_0001>
module attributes {stable_mosaic.version = 11 : i64} {
  func.func @_up_fused_kernel(%arg0: i32, %arg1: i32, %arg2: memref<1x16x16x4xbf16, #tpu.memory_space<vmem>>, %arg3: memref<1x16x16x4xbf16, #tpu.memory_space<vmem>>, %arg4: memref<1x2x32x8xbf16, #tpu.memory_space<vmem>>, %arg5: memref<1x8xf32, #tpu.memory_space<vmem>>, %arg6: memref<1x1x2x16x16x8xf32, #tpu.memory_space<vmem>>, %arg7: memref<18x18x4xf32, #tpu.memory_space<vmem>>, %arg8: memref<18x18x4xf32, #tpu.memory_space<vmem>>) attributes {dimension_semantics = [#tpu.dimension_semantics<parallel>, #tpu.dimension_semantics<parallel>], iteration_bounds = array<i64: 2, 2>, scalar_prefetch = 0 : i64, scratch_operands = 2 : i64, tpu.core_type = #tpu.core_type<tc>, window_params = [{transform_indices = @transform_0, window_bounds = array<i64: 1, 16, 16, 4>}, {transform_indices = @transform_1, window_bounds = array<i64: 1, 16, 16, 4>}, {transform_indices = @transform_2, window_bounds = array<i64: 1, 2, 32, 8>}, {pipeline_mode = #tpu.pipeline_mode<synchronous>, transform_indices = @transform_3, window_bounds = array<i64: 1, 8>}, {transform_indices = @transform_4, window_bounds = array<i64: 1, 1, 2, 16, 16, 8>}]} {
    %cst = arith.constant 0.000000e+00 : f32
    %0 = vector.broadcast %cst : f32 to vector<18x18x4xf32>
    %c0 = arith.constant 0 : index
    %c0_0 = arith.constant 0 : index
    %c0_1 = arith.constant 0 : index
    %1 = vector.load %arg7[%c0, %c0_0, %c0_1] : memref<18x18x4xf32, #tpu.memory_space<vmem>>, vector<18x18x4xf32>
    tpu.vector_store %arg7[%c0, %c0_0, %c0_1], %0 {strides = array<i32>} : memref<18x18x4xf32, #tpu.memory_space<vmem>>, vector<18x18x4xf32>,
    %c0_2 = arith.constant 0 : index
    %c0_3 = arith.constant 0 : index
    %c0_4 = arith.constant 0 : index
    %c0_5 = arith.constant 0 : index
    %2 = vector.load %arg2[%c0_2, %c0_3, %c0_4, %c0_5] : memref<1x16x16x4xbf16, #tpu.memory_space<vmem>>, vector<1x16x16x4xbf16>
    %3 = vector.shape_cast %2 : vector<1x16x16x4xbf16> to vector<16x16x4xbf16>
    %4 = arith.extf %3 : vector<16x16x4xbf16> to vector<16x16x4xf32>
    %c1 = arith.constant 1 : index
    %c1_6 = arith.constant 1 : index
    %c0_7 = arith.constant 0 : index
    %5 = vector.load %arg7[%c1, %c1_6, %c0_7] : memref<18x18x4xf32, #tpu.memory_space<vmem>>, vector<16x16x4xf32>
    tpu.vector_store %arg7[%c1, %c1_6, %c0_7], %4 {strides = array<i32>} : memref<18x18x4xf32, #tpu.memory_space<vmem>>, vector<16x16x4xf32>,
    %cst_8 = arith.constant 0.000000e+00 : f32
    %6 = vector.broadcast %cst_8 : f32 to vector<18x18x4xf32>
    %c0_9 = arith.constant 0 : index
    %c0_10 = arith.constant 0 : index
    %c0_11 = arith.constant 0 : index
    %7 = vector.load %arg8[%c0_9, %c0_10, %c0_11] : memref<18x18x4xf32, #tpu.memory_space<vmem>>, vector<18x18x4xf32>
    tpu.vector_store %arg8[%c0_9, %c0_10, %c0_11], %6 {strides = array<i32>} : memref<18x18x4xf32, #tpu.memory_space<vmem>>, vector<18x18x4xf32>,
    %c0_12 = arith.constant 0 : index
    %c0_13 = arith.constant 0 : index
    %c0_14 = arith.constant 0 : index
    %c0_15 = arith.constant 0 : index
    %8 = vector.load %arg3[%c0_12, %c0_13, %c0_14, %c0_15] : memref<1x16x16x4xbf16, #tpu.memory_space<vmem>>, vector<1x16x16x4xbf16>
    %9 = vector.shape_cast %8 : vector<1x16x16x4xbf16> to vector<16x16x4xbf16>
    %10 = arith.extf %9 : vector<16x16x4xbf16> to vector<16x16x4xf32>
    %c1_16 = arith.constant 1 : index
    %c1_17 = arith.constant 1 : index
    %c0_18 = arith.constant 0 : index
    %11 = vector.load %arg8[%c1_16, %c1_17, %c0_18] : memref<18x18x4xf32, #tpu.memory_space<vmem>>, vector<16x16x4xf32>
    tpu.vector_store %arg8[%c1_16, %c1_17, %c0_18], %10 {strides = array<i32>} : memref<18x18x4xf32, #tpu.memory_space<vmem>>, vector<16x16x4xf32>,
    %c0_i32 = arith.constant 0 : i32
    %12 = arith.addi %arg1, %c0_i32 : i32
    %13 = arith.index_cast %12 : i32 to index
    %c0_19 = arith.constant 0 : index
    %c0_20 = arith.constant 0 : index
    %14 = vector.load %arg7[%13, %c0_19, %c0_20] : memref<18x18x4xf32, #tpu.memory_space<vmem>>, vector<16x16x4xf32>
    %15 = vector.shape_cast %14 : vector<16x16x4xf32> to vector<256x4xf32>
    %c0_i32_21 = arith.constant 0 : i32
    %16 = arith.addi %arg1, %c0_i32_21 : i32
    %17 = arith.index_cast %16 : i32 to index
    %c1_22 = arith.constant 1 : index
    %c0_23 = arith.constant 0 : index
    %18 = vector.load %arg7[%17, %c1_22, %c0_23] : memref<18x18x4xf32, #tpu.memory_space<vmem>>, vector<16x16x4xf32>
    %19 = vector.shape_cast %18 : vector<16x16x4xf32> to vector<256x4xf32>
    %c1_i32 = arith.constant 1 : i32
    %20 = arith.addi %arg1, %c1_i32 : i32
    %21 = arith.index_cast %20 : i32 to index
    %c0_24 = arith.constant 0 : index
    %c0_25 = arith.constant 0 : index
    %22 = vector.load %arg7[%21, %c0_24, %c0_25] : memref<18x18x4xf32, #tpu.memory_space<vmem>>, vector<16x16x4xf32>
    %23 = vector.shape_cast %22 : vector<16x16x4xf32> to vector<256x4xf32>
    %c1_i32_26 = arith.constant 1 : i32
    %24 = arith.addi %arg1, %c1_i32_26 : i32
    %25 = arith.index_cast %24 : i32 to index
    %c1_27 = arith.constant 1 : index
    %c0_28 = arith.constant 0 : index
    %26 = vector.load %arg7[%25, %c1_27, %c0_28] : memref<18x18x4xf32, #tpu.memory_space<vmem>>, vector<16x16x4xf32>
    %27 = vector.shape_cast %26 : vector<16x16x4xf32> to vector<256x4xf32>
    %c0_i32_29 = arith.constant 0 : i32
    %28 = arith.addi %arg1, %c0_i32_29 : i32
    %29 = arith.index_cast %28 : i32 to index
    %c0_30 = arith.constant 0 : index
    %c0_31 = arith.constant 0 : index
    %30 = vector.load %arg8[%29, %c0_30, %c0_31] : memref<18x18x4xf32, #tpu.memory_space<vmem>>, vector<16x16x4xf32>
    %31 = vector.shape_cast %30 : vector<16x16x4xf32> to vector<256x4xf32>
    %c0_i32_32 = arith.constant 0 : i32
    %32 = arith.addi %arg1, %c0_i32_32 : i32
    %33 = arith.index_cast %32 : i32 to index
    %c1_33 = arith.constant 1 : index
    %c0_34 = arith.constant 0 : index
    %34 = vector.load %arg8[%33, %c1_33, %c0_34] : memref<18x18x4xf32, #tpu.memory_space<vmem>>, vector<16x16x4xf32>
    %35 = vector.shape_cast %34 : vector<16x16x4xf32> to vector<256x4xf32>
    %c1_i32_35 = arith.constant 1 : i32
    %36 = arith.addi %arg1, %c1_i32_35 : i32
    %37 = arith.index_cast %36 : i32 to index
    %c0_36 = arith.constant 0 : index
    %c0_37 = arith.constant 0 : index
    %38 = vector.load %arg8[%37, %c0_36, %c0_37] : memref<18x18x4xf32, #tpu.memory_space<vmem>>, vector<16x16x4xf32>
    %39 = vector.shape_cast %38 : vector<16x16x4xf32> to vector<256x4xf32>
    %c1_i32_38 = arith.constant 1 : i32
    %40 = arith.addi %arg1, %c1_i32_38 : i32
    %41 = arith.index_cast %40 : i32 to index
    %c1_39 = arith.constant 1 : index
    %c0_40 = arith.constant 0 : index
    %42 = vector.load %arg8[%41, %c1_39, %c0_40] : memref<18x18x4xf32, #tpu.memory_space<vmem>>, vector<16x16x4xf32>
    %43 = vector.shape_cast %42 : vector<16x16x4xf32> to vector<256x4xf32>
    %44 = tpu.concatenate %15, %19, %23, %27, %31, %35, %39, %43 in 1 : vector<256x4xf32>, vector<256x4xf32>, vector<256x4xf32>, vector<256x4xf32>, vector<256x4xf32>, vector<256x4xf32>, vector<256x4xf32>, vector<256x4xf32> -> vector<256x32xf32>
    %45 = arith.truncf %44 : vector<256x32xf32> to vector<256x32xbf16>
    %c0_41 = arith.constant 0 : index
    %c0_42 = arith.constant 0 : index
    %c0_43 = arith.constant 0 : index
    %c0_44 = arith.constant 0 : index
    %46 = vector.load %arg4[%c0_41, %c0_42, %c0_43, %c0_44] : memref<1x2x32x8xbf16, #tpu.memory_space<vmem>>, vector<1x1x32x8xbf16>
    %47 = vector.shape_cast %46 : vector<1x1x32x8xbf16> to vector<32x8xbf16>
    %cst_45 = arith.constant dense<0.000000e+00> : vector<256x8xf32>
    %48 = tpu.matmul %45, %47, %cst_45 {dimension_numbers = #tpu.dot_dimension_numbers<[1], [0], [0], [1], [0, 0, 1, 1], [], []>} : vector<256x32xbf16>, vector<32x8xbf16>, vector<256x8xf32> -> vector<256x8xf32>
    %c0_46 = arith.constant 0 : index
    %c0_47 = arith.constant 0 : index
    %49 = vector.load %arg5[%c0_46, %c0_47] : memref<1x8xf32, #tpu.memory_space<vmem>>, vector<1x8xf32>
    %50 = vector.shape_cast %49 : vector<1x8xf32> to vector<8xf32>
    %51 = vector.shape_cast %50 : vector<8xf32> to vector<1x8xf32>
    %52 = vector.broadcast %51 : vector<1x8xf32> to vector<256x8xf32>
    %53 = arith.addf %48, %52 : vector<256x8xf32>
    %cst_48 = arith.constant 0.000000e+00 : f32
    %54 = vector.broadcast %cst_48 : f32 to vector<256x8xf32>
    %55 = arith.cmpf oge, %53, %54 : vector<256x8xf32>
    %cst_49 = arith.constant 0.229166672 : f32
    %56 = vector.broadcast %cst_49 : f32 to vector<256x8xf32>
    %57 = arith.mulf %53, %56 : vector<256x8xf32>
    %58 = arith.select %55, %53, %57 : vector<256x8xi1>, vector<256x8xf32>
    %59 = vector.shape_cast %58 : vector<256x8xf32> to vector<16x16x8xf32>
    %c0_50 = arith.constant 0 : index
    %c0_51 = arith.constant 0 : index
    %c0_52 = arith.constant 0 : index
    %c0_53 = arith.constant 0 : index
    %c0_54 = arith.constant 0 : index
    %c0_55 = arith.constant 0 : index
    %60 = vector.load %arg6[%c0_50, %c0_51, %c0_52, %c0_53, %c0_54, %c0_55] : memref<1x1x2x16x16x8xf32, #tpu.memory_space<vmem>>, vector<1x1x1x16x16x8xf32>
    %61 = vector.shape_cast %60 : vector<1x1x1x16x16x8xf32> to vector<16x16x8xf32>
    %62 = vector.shape_cast %59 : vector<16x16x8xf32> to vector<1x1x1x16x16x8xf32>
    tpu.vector_store %arg6[%c0_50, %c0_51, %c0_52, %c0_53, %c0_54, %c0_55], %62 {strides = array<i32>} : memref<1x1x2x16x16x8xf32, #tpu.memory_space<vmem>>, vector<1x1x1x16x16x8xf32>,
    %c0_i32_56 = arith.constant 0 : i32
    %63 = arith.addi %arg1, %c0_i32_56 : i32
    %64 = arith.index_cast %63 : i32 to index
    %c1_57 = arith.constant 1 : index
    %c0_58 = arith.constant 0 : index
    %65 = vector.load %arg7[%64, %c1_57, %c0_58] : memref<18x18x4xf32, #tpu.memory_space<vmem>>, vector<16x16x4xf32>
    %66 = vector.shape_cast %65 : vector<16x16x4xf32> to vector<256x4xf32>
    %c0_i32_59 = arith.constant 0 : i32
    %67 = arith.addi %arg1, %c0_i32_59 : i32
    %68 = arith.index_cast %67 : i32 to index
    %c2 = arith.constant 2 : index
    %c0_60 = arith.constant 0 : index
    %69 = vector.load %arg7[%68, %c2, %c0_60] : memref<18x18x4xf32, #tpu.memory_space<vmem>>, vector<16x16x4xf32>
    %70 = vector.shape_cast %69 : vector<16x16x4xf32> to vector<256x4xf32>
    %c1_i32_61 = arith.constant 1 : i32
    %71 = arith.addi %arg1, %c1_i32_61 : i32
    %72 = arith.index_cast %71 : i32 to index
    %c1_62 = arith.constant 1 : index
    %c0_63 = arith.constant 0 : index
    %73 = vector.load %arg7[%72, %c1_62, %c0_63] : memref<18x18x4xf32, #tpu.memory_space<vmem>>, vector<16x16x4xf32>
    %74 = vector.shape_cast %73 : vector<16x16x4xf32> to vector<256x4xf32>
    %c1_i32_64 = arith.constant 1 : i32
    %75 = arith.addi %arg1, %c1_i32_64 : i32
    %76 = arith.index_cast %75 : i32 to index
    %c2_65 = arith.constant 2 : index
    %c0_66 = arith.constant 0 : index
    %77 = vector.load %arg7[%76, %c2_65, %c0_66] : memref<18x18x4xf32, #tpu.memory_space<vmem>>, vector<16x16x4xf32>
    %78 = vector.shape_cast %77 : vector<16x16x4xf32> to vector<256x4xf32>
    %c0_i32_67 = arith.constant 0 : i32
    %79 = arith.addi %arg1, %c0_i32_67 : i32
    %80 = arith.index_cast %79 : i32 to index
    %c1_68 = arith.constant 1 : index
    %c0_69 = arith.constant 0 : index
    %81 = vector.load %arg8[%80, %c1_68, %c0_69] : memref<18x18x4xf32, #tpu.memory_space<vmem>>, vector<16x16x4xf32>
    %82 = vector.shape_cast %81 : vector<16x16x4xf32> to vector<256x4xf32>
    %c0_i32_70 = arith.constant 0 : i32
    %83 = arith.addi %arg1, %c0_i32_70 : i32
    %84 = arith.index_cast %83 : i32 to index
    %c2_71 = arith.constant 2 : index
    %c0_72 = arith.constant 0 : index
    %85 = vector.load %arg8[%84, %c2_71, %c0_72] : memref<18x18x4xf32, #tpu.memory_space<vmem>>, vector<16x16x4xf32>
    %86 = vector.shape_cast %85 : vector<16x16x4xf32> to vector<256x4xf32>
    %c1_i32_73 = arith.constant 1 : i32
    %87 = arith.addi %arg1, %c1_i32_73 : i32
    %88 = arith.index_cast %87 : i32 to index
    %c1_74 = arith.constant 1 : index
    %c0_75 = arith.constant 0 : index
    %89 = vector.load %arg8[%88, %c1_74, %c0_75] : memref<18x18x4xf32, #tpu.memory_space<vmem>>, vector<16x16x4xf32>
    %90 = vector.shape_cast %89 : vector<16x16x4xf32> to vector<256x4xf32>
    %c1_i32_76 = arith.constant 1 : i32
    %91 = arith.addi %arg1, %c1_i32_76 : i32
    %92 = arith.index_cast %91 : i32 to index
    %c2_77 = arith.constant 2 : index
    %c0_78 = arith.constant 0 : index
    %93 = vector.load %arg8[%92, %c2_77, %c0_78] : memref<18x18x4xf32, #tpu.memory_space<vmem>>, vector<16x16x4xf32>
    %94 = vector.shape_cast %93 : vector<16x16x4xf32> to vector<256x4xf32>
    %95 = tpu.concatenate %66, %70, %74, %78, %82, %86, %90, %94 in 1 : vector<256x4xf32>, vector<256x4xf32>, vector<256x4xf32>, vector<256x4xf32>, vector<256x4xf32>, vector<256x4xf32>, vector<256x4xf32>, vector<256x4xf32> -> vector<256x32xf32>
    %96 = arith.truncf %95 : vector<256x32xf32> to vector<256x32xbf16>
    %c0_79 = arith.constant 0 : index
    %c1_80 = arith.constant 1 : index
    %c0_81 = arith.constant 0 : index
    %c0_82 = arith.constant 0 : index
    %97 = vector.load %arg4[%c0_79, %c1_80, %c0_81, %c0_82] : memref<1x2x32x8xbf16, #tpu.memory_space<vmem>>, vector<1x1x32x8xbf16>
    %98 = vector.shape_cast %97 : vector<1x1x32x8xbf16> to vector<32x8xbf16>
    %cst_83 = arith.constant dense<0.000000e+00> : vector<256x8xf32>
    %99 = tpu.matmul %96, %98, %cst_83 {dimension_numbers = #tpu.dot_dimension_numbers<[1], [0], [0], [1], [0, 0, 1, 1], [], []>} : vector<256x32xbf16>, vector<32x8xbf16>, vector<256x8xf32> -> vector<256x8xf32>
    %c0_84 = arith.constant 0 : index
    %c0_85 = arith.constant 0 : index
    %100 = vector.load %arg5[%c0_84, %c0_85] : memref<1x8xf32, #tpu.memory_space<vmem>>, vector<1x8xf32>
    %101 = vector.shape_cast %100 : vector<1x8xf32> to vector<8xf32>
    %102 = vector.shape_cast %101 : vector<8xf32> to vector<1x8xf32>
    %103 = vector.broadcast %102 : vector<1x8xf32> to vector<256x8xf32>
    %104 = arith.addf %99, %103 : vector<256x8xf32>
    %cst_86 = arith.constant 0.000000e+00 : f32
    %105 = vector.broadcast %cst_86 : f32 to vector<256x8xf32>
    %106 = arith.cmpf oge, %104, %105 : vector<256x8xf32>
    %cst_87 = arith.constant 0.229166672 : f32
    %107 = vector.broadcast %cst_87 : f32 to vector<256x8xf32>
    %108 = arith.mulf %104, %107 : vector<256x8xf32>
    %109 = arith.select %106, %104, %108 : vector<256x8xi1>, vector<256x8xf32>
    %110 = vector.shape_cast %109 : vector<256x8xf32> to vector<16x16x8xf32>
    %c0_88 = arith.constant 0 : index
    %c0_89 = arith.constant 0 : index
    %c1_90 = arith.constant 1 : index
    %c0_91 = arith.constant 0 : index
    %c0_92 = arith.constant 0 : index
    %c0_93 = arith.constant 0 : index
    %111 = vector.load %arg6[%c0_88, %c0_89, %c1_90, %c0_91, %c0_92, %c0_93] : memref<1x1x2x16x16x8xf32, #tpu.memory_space<vmem>>, vector<1x1x1x16x16x8xf32>
    %112 = vector.shape_cast %111 : vector<1x1x1x16x16x8xf32> to vector<16x16x8xf32>
    %113 = vector.shape_cast %110 : vector<16x16x8xf32> to vector<1x1x1x16x16x8xf32>
    tpu.vector_store %arg6[%c0_88, %c0_89, %c1_90, %c0_91, %c0_92, %c0_93], %113 {strides = array<i32>} : memref<1x1x2x16x16x8xf32, #tpu.memory_space<vmem>>, vector<1x1x1x16x16x8xf32>,
    return
  }
  func.func @transform_0(%arg0: i32, %arg1: i32) -> (i32, i32, i32, i32) {
    %c0_i32 = arith.constant 0 : i32
    %c0_i32_0 = arith.constant 0 : i32
    %c0_i32_1 = arith.constant 0 : i32
    %c0_i32_2 = arith.constant 0 : i32
    return %arg0, %c0_i32, %c0_i32_0, %c0_i32_1 : i32, i32, i32, i32
  }
  func.func @transform_1(%arg0: i32, %arg1: i32) -> (i32, i32, i32, i32) {
    %c0_i32 = arith.constant 0 : i32
    %c0_i32_0 = arith.constant 0 : i32
    %c0_i32_1 = arith.constant 0 : i32
    %c0_i32_2 = arith.constant 0 : i32
    return %arg0, %c0_i32, %c0_i32_0, %c0_i32_1 : i32, i32, i32, i32
  }
  func.func @transform_2(%arg0: i32, %arg1: i32) -> (i32, i32, i32, i32) {
    %c0_i32 = arith.constant 0 : i32
    %c0_i32_0 = arith.constant 0 : i32
    %c0_i32_1 = arith.constant 0 : i32
    %c0_i32_2 = arith.constant 0 : i32
    return %arg1, %c0_i32, %c0_i32_0, %c0_i32_1 : i32, i32, i32, i32
  }
  func.func @transform_3(%arg0: i32, %arg1: i32) -> (i32, i32) {
    %c0_i32 = arith.constant 0 : i32
    %c0_i32_0 = arith.constant 0 : i32
    %c0_i32_1 = arith.constant 0 : i32
    return %c0_i32, %c0_i32_0 : i32, i32
  }
  func.func @transform_4(%arg0: i32, %arg1: i32) -> (i32, i32, i32, i32, i32, i32) {
    %c0_i32 = arith.constant 0 : i32
    %c0_i32_0 = arith.constant 0 : i32
    %c0_i32_1 = arith.constant 0 : i32
    %c0_i32_2 = arith.constant 0 : i32
    %c0_i32_3 = arith.constant 0 : i32
    return %arg0, %arg1, %c0_i32, %c0_i32_0, %c0_i32_1, %c0_i32_2 : i32, i32, i32, i32, i32, i32
  }
}

module attributes {stable_mosaic.version = 11 : i64} {
  func.func @_conv3x3_bn_rrelu_kernel(%arg0: i32, %arg1: memref<1x16x16x4xbf16, #tpu.memory_space<vmem>>, %arg2: memref<36x4xbf16, #tpu.memory_space<vmem>>, %arg3: memref<1x4xf32, #tpu.memory_space<vmem>>, %arg4: memref<1x16x16x4xbf16, #tpu.memory_space<vmem>>, %arg5: memref<18x18x4xf32, #tpu.memory_space<vmem>>) attributes {dimension_semantics = [#tpu.dimension_semantics<parallel>], iteration_bounds = array<i64: 2>, scalar_prefetch = 0 : i64, scratch_operands = 1 : i64, tpu.core_type = #tpu.core_type<tc>, window_params = [{transform_indices = @transform_0, window_bounds = array<i64: 1, 16, 16, 4>}, {pipeline_mode = #tpu.pipeline_mode<synchronous>, transform_indices = @transform_1, window_bounds = array<i64: 36, 4>}, {pipeline_mode = #tpu.pipeline_mode<synchronous>, transform_indices = @transform_2, window_bounds = array<i64: 1, 4>}, {transform_indices = @transform_3, window_bounds = array<i64: 1, 16, 16, 4>}]} {
    %cst = arith.constant 0.000000e+00 : f32
    %0 = vector.broadcast %cst : f32 to vector<18x18x4xf32>
    %c0 = arith.constant 0 : index
    %c0_0 = arith.constant 0 : index
    %c0_1 = arith.constant 0 : index
    %1 = vector.load %arg5[%c0, %c0_0, %c0_1] : memref<18x18x4xf32, #tpu.memory_space<vmem>>, vector<18x18x4xf32>
    tpu.vector_store %arg5[%c0, %c0_0, %c0_1], %0 {strides = array<i32>} : memref<18x18x4xf32, #tpu.memory_space<vmem>>, vector<18x18x4xf32>,
    %c0_2 = arith.constant 0 : index
    %c0_3 = arith.constant 0 : index
    %c0_4 = arith.constant 0 : index
    %c0_5 = arith.constant 0 : index
    %2 = vector.load %arg1[%c0_2, %c0_3, %c0_4, %c0_5] : memref<1x16x16x4xbf16, #tpu.memory_space<vmem>>, vector<1x16x16x4xbf16>
    %3 = vector.shape_cast %2 : vector<1x16x16x4xbf16> to vector<16x16x4xbf16>
    %4 = arith.extf %3 : vector<16x16x4xbf16> to vector<16x16x4xf32>
    %c1 = arith.constant 1 : index
    %c1_6 = arith.constant 1 : index
    %c0_7 = arith.constant 0 : index
    %5 = vector.load %arg5[%c1, %c1_6, %c0_7] : memref<18x18x4xf32, #tpu.memory_space<vmem>>, vector<16x16x4xf32>
    tpu.vector_store %arg5[%c1, %c1_6, %c0_7], %4 {strides = array<i32>} : memref<18x18x4xf32, #tpu.memory_space<vmem>>, vector<16x16x4xf32>,
    %c0_8 = arith.constant 0 : index
    %c0_9 = arith.constant 0 : index
    %c0_10 = arith.constant 0 : index
    %6 = vector.load %arg5[%c0_8, %c0_9, %c0_10] : memref<18x18x4xf32, #tpu.memory_space<vmem>>, vector<16x16x4xf32>
    %7 = vector.shape_cast %6 : vector<16x16x4xf32> to vector<256x4xf32>
    %c0_11 = arith.constant 0 : index
    %c1_12 = arith.constant 1 : index
    %c0_13 = arith.constant 0 : index
    %8 = vector.load %arg5[%c0_11, %c1_12, %c0_13] : memref<18x18x4xf32, #tpu.memory_space<vmem>>, vector<16x16x4xf32>
    %9 = vector.shape_cast %8 : vector<16x16x4xf32> to vector<256x4xf32>
    %c0_14 = arith.constant 0 : index
    %c2 = arith.constant 2 : index
    %c0_15 = arith.constant 0 : index
    %10 = vector.load %arg5[%c0_14, %c2, %c0_15] : memref<18x18x4xf32, #tpu.memory_space<vmem>>, vector<16x16x4xf32>
    %11 = vector.shape_cast %10 : vector<16x16x4xf32> to vector<256x4xf32>
    %c1_16 = arith.constant 1 : index
    %c0_17 = arith.constant 0 : index
    %c0_18 = arith.constant 0 : index
    %12 = vector.load %arg5[%c1_16, %c0_17, %c0_18] : memref<18x18x4xf32, #tpu.memory_space<vmem>>, vector<16x16x4xf32>
    %13 = vector.shape_cast %12 : vector<16x16x4xf32> to vector<256x4xf32>
    %c1_19 = arith.constant 1 : index
    %c1_20 = arith.constant 1 : index
    %c0_21 = arith.constant 0 : index
    %14 = vector.load %arg5[%c1_19, %c1_20, %c0_21] : memref<18x18x4xf32, #tpu.memory_space<vmem>>, vector<16x16x4xf32>
    %15 = vector.shape_cast %14 : vector<16x16x4xf32> to vector<256x4xf32>
    %c1_22 = arith.constant 1 : index
    %c2_23 = arith.constant 2 : index
    %c0_24 = arith.constant 0 : index
    %16 = vector.load %arg5[%c1_22, %c2_23, %c0_24] : memref<18x18x4xf32, #tpu.memory_space<vmem>>, vector<16x16x4xf32>
    %17 = vector.shape_cast %16 : vector<16x16x4xf32> to vector<256x4xf32>
    %c2_25 = arith.constant 2 : index
    %c0_26 = arith.constant 0 : index
    %c0_27 = arith.constant 0 : index
    %18 = vector.load %arg5[%c2_25, %c0_26, %c0_27] : memref<18x18x4xf32, #tpu.memory_space<vmem>>, vector<16x16x4xf32>
    %19 = vector.shape_cast %18 : vector<16x16x4xf32> to vector<256x4xf32>
    %c2_28 = arith.constant 2 : index
    %c1_29 = arith.constant 1 : index
    %c0_30 = arith.constant 0 : index
    %20 = vector.load %arg5[%c2_28, %c1_29, %c0_30] : memref<18x18x4xf32, #tpu.memory_space<vmem>>, vector<16x16x4xf32>
    %21 = vector.shape_cast %20 : vector<16x16x4xf32> to vector<256x4xf32>
    %c2_31 = arith.constant 2 : index
    %c2_32 = arith.constant 2 : index
    %c0_33 = arith.constant 0 : index
    %22 = vector.load %arg5[%c2_31, %c2_32, %c0_33] : memref<18x18x4xf32, #tpu.memory_space<vmem>>, vector<16x16x4xf32>
    %23 = vector.shape_cast %22 : vector<16x16x4xf32> to vector<256x4xf32>
    %24 = tpu.concatenate %7, %9, %11, %13, %15, %17, %19, %21, %23 in 1 : vector<256x4xf32>, vector<256x4xf32>, vector<256x4xf32>, vector<256x4xf32>, vector<256x4xf32>, vector<256x4xf32>, vector<256x4xf32>, vector<256x4xf32>, vector<256x4xf32> -> vector<256x36xf32>
    %25 = arith.truncf %24 : vector<256x36xf32> to vector<256x36xbf16>
    %c0_34 = arith.constant 0 : index
    %c0_35 = arith.constant 0 : index
    %26 = vector.load %arg2[%c0_34, %c0_35] : memref<36x4xbf16, #tpu.memory_space<vmem>>, vector<36x4xbf16>
    %cst_36 = arith.constant dense<0.000000e+00> : vector<256x4xf32>
    %27 = tpu.matmul %25, %26, %cst_36 {dimension_numbers = #tpu.dot_dimension_numbers<[1], [0], [0], [1], [0, 0, 1, 1], [], []>} : vector<256x36xbf16>, vector<36x4xbf16>, vector<256x4xf32> -> vector<256x4xf32>
    %c0_37 = arith.constant 0 : index
    %c0_38 = arith.constant 0 : index
    %28 = vector.load %arg3[%c0_37, %c0_38] : memref<1x4xf32, #tpu.memory_space<vmem>>, vector<1x4xf32>
    %29 = vector.shape_cast %28 : vector<1x4xf32> to vector<4xf32>
    %30 = vector.shape_cast %29 : vector<4xf32> to vector<1x4xf32>
    %31 = vector.broadcast %30 : vector<1x4xf32> to vector<256x4xf32>
    %32 = arith.addf %27, %31 : vector<256x4xf32>
    %cst_39 = arith.constant 0.000000e+00 : f32
    %33 = vector.broadcast %cst_39 : f32 to vector<256x4xf32>
    %34 = arith.cmpf oge, %32, %33 : vector<256x4xf32>
    %cst_40 = arith.constant 0.229166672 : f32
    %35 = vector.broadcast %cst_40 : f32 to vector<256x4xf32>
    %36 = arith.mulf %32, %35 : vector<256x4xf32>
    %37 = arith.select %34, %32, %36 : vector<256x4xi1>, vector<256x4xf32>
    %38 = vector.shape_cast %37 : vector<256x4xf32> to vector<16x16x4xf32>
    %39 = arith.truncf %38 : vector<16x16x4xf32> to vector<16x16x4xbf16>
    %c0_41 = arith.constant 0 : index
    %c0_42 = arith.constant 0 : index
    %c0_43 = arith.constant 0 : index
    %c0_44 = arith.constant 0 : index
    %40 = vector.load %arg4[%c0_41, %c0_42, %c0_43, %c0_44] : memref<1x16x16x4xbf16, #tpu.memory_space<vmem>>, vector<1x16x16x4xbf16>
    %41 = vector.shape_cast %40 : vector<1x16x16x4xbf16> to vector<16x16x4xbf16>
    %42 = vector.shape_cast %39 : vector<16x16x4xbf16> to vector<1x16x16x4xbf16>
    tpu.vector_store %arg4[%c0_41, %c0_42, %c0_43, %c0_44], %42 {strides = array<i32>} : memref<1x16x16x4xbf16, #tpu.memory_space<vmem>>, vector<1x16x16x4xbf16>,
    return
  }
  func.func @transform_0(%arg0: i32) -> (i32, i32, i32, i32) {
    %c0_i32 = arith.constant 0 : i32
    %c0_i32_0 = arith.constant 0 : i32
    %c0_i32_1 = arith.constant 0 : i32
    %c0_i32_2 = arith.constant 0 : i32
    return %arg0, %c0_i32, %c0_i32_0, %c0_i32_1 : i32, i32, i32, i32
  }
  func.func @transform_1(%arg0: i32) -> (i32, i32) {
    %c0_i32 = arith.constant 0 : i32
    %c0_i32_0 = arith.constant 0 : i32
    %c0_i32_1 = arith.constant 0 : i32
    return %c0_i32, %c0_i32_0 : i32, i32
  }
  func.func @transform_2(%arg0: i32) -> (i32, i32) {
    %c0_i32 = arith.constant 0 : i32
    %c0_i32_0 = arith.constant 0 : i32
    %c0_i32_1 = arith.constant 0 : i32
    return %c0_i32, %c0_i32_0 : i32, i32
  }
  func.func @transform_3(%arg0: i32) -> (i32, i32, i32, i32) {
    %c0_i32 = arith.constant 0 : i32
    %c0_i32_0 = arith.constant 0 : i32
    %c0_i32_1 = arith.constant 0 : i32
    %c0_i32_2 = arith.constant 0 : i32
    return %arg0, %c0_i32, %c0_i32_0, %c0_i32_1 : i32, i32, i32, i32
  }
}

</mosaic_0001>

<llo_original>
// kernel: res_up_forward.2
$region0: #{res_up_forward.2}
  #allocation0 [shape = 'u32[]', space=smem, size = 0x4, offset = 0x4, fixed_abs, tag = 'smem constant byte address 0x4 - core index']
  #allocation1 [shape = 'u32[144,128]{1,0:T(1,128)}', space=vmem, size = 0x12000, scoped, tag = 'internal scratch']
  #allocation2 [shape = 'f32[18,18,4]{2,1,0:T(8,128)}', space=vmem, size = 0x36000, scoped, tag = 'scratch operand']
  %s0 = inlined_call_operand.vmem [shape: bf16[2,16,16,4], index: 0, kind: input, shape index: {}]
  %s1 = inlined_call_operand.vmem [shape: bf16[36,4], index: 1, kind: input, shape index: {}]
  %s2 = inlined_call_operand.vmem [shape: f32[1,4], index: 2, kind: input, shape index: {}]
  %s3 = inlined_call_operand.vmem [shape: bf16[2,16,16,4], index: 3, kind: output, shape index: {}]
  %s4 = sld [smem:[#allocation0]]
  $region45: #{res_up_forward.2} parent=0
    _
  %s6 = ssub.s32 1, %s4
  %s7 = scalar_select 0, %s6, %s4
  loop: start=0, step=1, limit=4
  $region2: #{res_up_forward.2} parent=0 // loop_pre_header
    _
  $region3: #{res_up_forward.2} parent=0 // loop_header
    %s9 = sphi 0, %s13
    %p10 = scmp.ge.s32.totalorder %s9, 4
    %s19 = sphi 0, %s21
    %s22 = sphi 0, %s19
    %s23 = sphi 0, %s22
    %s39 = sphi 0, %s23
    %s43 = sphi 0, %s43
    %s45 = sphi 0, %s43
    %s46 = sphi 0, %s45
    %s60 = sphi 0, %s46
    %s64 = sphi 0, %s64
    %s66 = sphi 0, %s64
    %s67 = sphi 0, %s66
    %s81 = sphi 0, %s67
    %s87 = sphi 0, %s89
    %s90 = sphi 0, %s87
    %s91 = sphi 0, %s90
    %s107 = sphi 0, %s91
  $region4: #{res_up_forward.2} parent=0 // loop_header_branch
    %12 = sbr.rel (%p10) target = $region8
  $region5: #{res_up_forward.2} parent=0 // loop_body
    %s14 = ssub.s32 %s9, 1
    %s15 = ssub.s32 %s9, 2
    %s16 = sadd.s32 %s9, 1
    %s17 = ssub.s32 %s9, %s16
    %p18 = scmp.eq.s32.totalorder %s17, 0
    %s20 = sadd.s32 %s19, 1
    %s21 = scalar_select %p18, %s19, %s20
    %p24 = pneg %p18
    %p25 = scmp.eq.s32.totalorder %s9, 1
    %p26 = por %p24, %p25
    %p27 = scmp.ne.s32.totalorder %s19, %s22
    %p28 = scmp.eq.s32.totalorder %s9, 0
    %p29 = por %p27, %p28
    %p30 = scmp.ne.s32.totalorder %s19, %s22
    %p31 = scmp.eq.s32.totalorder %s14, 1
    %p32 = por %p30, %p31
    %p33 = scmp.ne.s32.totalorder %s22, %s23
    %p34 = scmp.eq.s32.totalorder %s14, 0
    %p35 = por %p33, %p34
    %p36 = scmp.ne.s32.totalorder %s22, %s23
    %p37 = scmp.eq.s32.totalorder %s15, 1
    %p38 = por %p36, %p37
    %p40 = scmp.ne.s32.totalorder %s23, %s39
    %p41 = scmp.eq.s32.totalorder %s15, 0
    %p42 = por %p40, %p41
    %s44 = sadd.s32 %s43, 1
    %p47 = scmp.eq.s32.totalorder %s9, 1
    %p48 = scmp.ne.s32.totalorder %s43, %s45
    %p49 = scmp.eq.s32.totalorder %s9, 0
    %p50 = por %p48, %p49
    %p51 = scmp.ne.s32.totalorder %s43, %s45
    %p52 = scmp.eq.s32.totalorder %s14, 1
    %p53 = por %p51, %p52
    %p54 = scmp.ne.s32.totalorder %s45, %s46
    %p55 = scmp.eq.s32.totalorder %s14, 0
    %p56 = por %p54, %p55
    %p57 = scmp.ne.s32.totalorder %s45, %s46
    %p58 = scmp.eq.s32.totalorder %s15, 1
    %p59 = por %p57, %p58
    %p61 = scmp.ne.s32.totalorder %s46, %s60
    %p62 = scmp.eq.s32.totalorder %s15, 0
    %p63 = por %p61, %p62
    %s65 = sadd.s32 %s64, 1
    %p68 = scmp.eq.s32.totalorder %s9, 1
    %p69 = scmp.ne.s32.totalorder %s64, %s66
    %p70 = scmp.eq.s32.totalorder %s9, 0
    %p71 = por %p69, %p70
    %p72 = scmp.ne.s32.totalorder %s64, %s66
    %p73 = scmp.eq.s32.totalorder %s14, 1
    %p74 = por %p72, %p73
    %p75 = scmp.ne.s32.totalorder %s66, %s67
    %p76 = scmp.eq.s32.totalorder %s14, 0
    %p77 = por %p75, %p76
    %p78 = scmp.ne.s32.totalorder %s66, %s67
    %p79 = scmp.eq.s32.totalorder %s15, 1
    %p80 = por %p78, %p79
    %p82 = scmp.ne.s32.totalorder %s67, %s81
    %p83 = scmp.eq.s32.totalorder %s15, 0
    %p84 = por %p82, %p83
    %s85 = ssub.s32 %s9, %s16
    %p86 = scmp.eq.s32.totalorder %s85, 0
    %s88 = sadd.s32 %s87, 1
    %s89 = scalar_select %p86, %s87, %s88
    %p92 = pneg %p86
    %p93 = scmp.eq.s32.totalorder %s9, 1
    %p94 = por %p92, %p93
    %p95 = scmp.ne.s32.totalorder %s87, %s90
    %p96 = scmp.eq.s32.totalorder %s9, 0
    %p97 = por %p95, %p96
    %p98 = scmp.ne.s32.totalorder %s87, %s90
    %p99 = scmp.eq.s32.totalorder %s14, 1
    %p100 = por %p98, %p99
    %p101 = scmp.ne.s32.totalorder %s90, %s91
    %p102 = scmp.eq.s32.totalorder %s14, 0
    %p103 = por %p101, %p102
    %p104 = scmp.ne.s32.totalorder %s90, %s91
    %p105 = scmp.eq.s32.totalorder %s15, 1
    %p106 = por %p104, %p105
    %p108 = scmp.ne.s32.totalorder %s91, %s107
    %p109 = scmp.eq.s32.totalorder %s15, 0
    %p110 = por %p108, %p109
    %p111 = scmp.le.s32.totalorder 1, %s9
    %p112 = scmp.lt.s32.totalorder %s9, 3
    %p113 = pnand %p111, %p112
    %p114 = pneg %p113
    // Predicated region
    $region9: #{res_up_forward.2} parent=5 // pred_check
      _
    $region10: #{res_up_forward.2} parent=5 // pred_check_branch
      %116 = sbr.rel (%p113) target = $region12
    $region11: #{res_up_forward.2} parent=5 // pred_region
      %s117 = ssub.s32 %s9, 1
      // Predicated region
      $region13: #{res_up_forward.2} parent=11 // pred_check
        %p118 = pneg %p56
      $region14: #{res_up_forward.2} parent=11 // pred_check_branch
        %120 = sbr.rel (%p118) target = $region16
      $region15: #{res_up_forward.2} parent=11 // pred_region
        _
      $region16: #{res_up_forward.2} parent=11 // pred_fallthru
        _
      // Predicated region
      $region17: #{res_up_forward.2} parent=11 // pred_check
        %p121 = pneg %p77
      $region18: #{res_up_forward.2} parent=11 // pred_check_branch
        %123 = sbr.rel (%p121) target = $region20
      $region19: #{res_up_forward.2} parent=11 // pred_region
        _
      $region20: #{res_up_forward.2} parent=11 // pred_fallthru
        _
    $region12: #{res_up_forward.2} parent=5 // pred_fallthru
      _
    %p124 = scmp.lt.s32.totalorder %s9, 2
    // Predicated region
    $region21: #{res_up_forward.2} parent=5 // pred_check
      %p125 = pneg %p124
    $region22: #{res_up_forward.2} parent=5 // pred_check_branch
      %127 = sbr.rel (%p125) target = $region24
    $region23: #{res_up_forward.2} parent=5 // pred_region
      // Predicated region
      $region25: #{res_up_forward.2} parent=23 // pred_check
        %p128 = pneg %p29
      $region26: #{res_up_forward.2} parent=23 // pred_check_branch
        %130 = sbr.rel (%p128) target = $region28
      $region27: #{res_up_forward.2} parent=23 // pred_region
        %p131 = scmp.lt.s32.totalorder %s9, 1
        %s132 = scalar_select %p131, %s9, 1
        %s133 = smul.addr %s132, 32
        %s134 = smul.addr %s133, 4
        %s135 = scalar_lea.vmem %s0, %s134
      $region28: #{res_up_forward.2} parent=23 // pred_fallthru
        _
    $region24: #{res_up_forward.2} parent=5 // pred_fallthru
      _
    %p136 = scmp.le.s32.totalorder 1, %s9
    %p137 = scmp.lt.s32.totalorder %s9, 3
    %p138 = pnand %p136, %p137
    %p139 = pneg %p138
    // Predicated region
    $region29: #{res_up_forward.2} parent=5 // pred_check
      _
    $region30: #{res_up_forward.2} parent=5 // pred_check_branch
      %141 = sbr.rel (%p138) target = $region32
    $region31: #{res_up_forward.2} parent=5 // pred_region
      %s142 = ssub.s32 %s9, 1
      %p143 = scmp.lt.s32.totalorder %s14, 1
      %s144 = scalar_select %p143, %s14, 1
      %s145 = smul.addr %s144, 32
      %s146 = smul.addr %s145, 4
      %s147 = scalar_lea.vmem %s0, %s146
      %p148 = pneg %p35
      %p149 = pneg %p32
      %p150 = pneg %p56
      %p151 = pneg %p53
      %p152 = pneg %p77
      %p153 = pneg %p74
      %p154 = pneg %p103
      %p155 = pneg %p100
      %p156 = scmp.lt.s32.totalorder %s14, 1
      %s157 = scalar_select %p156, %s14, 1
      %s158 = smul.addr %s157, 32
      %s159 = smul.addr %s158, 4
      %s160 = scalar_lea.vmem %s3, %s159
      %p161 = scmp.lt.s32.totalorder %s14, 1
      %s162 = scalar_select %p161, %s14, 1
      %s163 = smul.addr %s162, 32
      %s164 = smul.addr %s163, 4
      %s165 = scalar_lea.vmem %s0, %s164
      %p166 = scmp.lt.s32.totalorder %s14, 1
      %s167 = scalar_select %p166, %s14, 1
      %s168 = smul.addr %s167, 32
      %s169 = smul.addr %s168, 4
      %s170 = scalar_lea.vmem %s3, %s169
      %vm172 = vcmask 31744
      %173 = vst.msk [vmem:[#allocation2] sm:$0xff] %vm172, 0.0
      %174 = vst.msk [vmem:[#allocation2 + $0x8] sm:$0xff] %vm172, 0.0
      %vm175 = vcmask 25600
      %176 = vst.msk [vmem:[#allocation2 + $0x10] sm:$0x3] %vm175, 0.0
      %177 = vst.msk [vmem:[#allocation2 + $0x18] sm:$0xff] %vm172, 0.0
      %178 = vst.msk [vmem:[#allocation2 + $0x20] sm:$0xff] %vm172, 0.0
      %179 = vst.msk [vmem:[#allocation2 + $0x28] sm:$0x3] %vm175, 0.0
      %180 = vst.msk [vmem:[#allocation2 + $0x30] sm:$0xff] %vm172, 0.0
      %181 = vst.msk [vmem:[#allocation2 + $0x38] sm:$0xff] %vm172, 0.0
      %182 = vst.msk [vmem:[#allocation2 + $0x40] sm:$0x3] %vm175, 0.0
      %183 = vst.msk [vmem:[#allocation2 + $0x48] sm:$0xff] %vm172, 0.0
      %184 = vst.msk [vmem:[#allocation2 + $0x50] sm:$0xff] %vm172, 0.0
      %185 = vst.msk [vmem:[#allocation2 + $0x58] sm:$0x3] %vm175, 0.0
      %186 = vst.msk [vmem:[#allocation2 + $0x60] sm:$0xff] %vm172, 0.0
      %187 = vst.msk [vmem:[#allocation2 + $0x68] sm:$0xff] %vm172, 0.0
      %188 = vst.msk [vmem:[#allocation2 + $0x70] sm:$0x3] %vm175, 0.0
      %189 = vst.msk [vmem:[#allocation2 + $0x78] sm:$0xff] %vm172, 0.0
      %190 = vst.msk [vmem:[#allocation2 + $0x80] sm:$0xff] %vm172, 0.0
      %191 = vst.msk [vmem:[#allocation2 + $0x88] sm:$0x3] %vm175, 0.0
      %192 = vst.msk [vmem:[#allocation2 + $0x90] sm:$0xff] %vm172, 0.0
      %193 = vst.msk [vmem:[#allocation2 + $0x98] sm:$0xff] %vm172, 0.0
      %194 = vst.msk [vmem:[#allocation2 + $0xa0] sm:$0x3] %vm175, 0.0
      %195 = vst.msk [vmem:[#allocation2 + $0xa8] sm:$0xff] %vm172, 0.0
      %196 = vst.msk [vmem:[#allocation2 + $0xb0] sm:$0xff] %vm172, 0.0
      %197 = vst.msk [vmem:[#allocation2 + $0xb8] sm:$0x3] %vm175, 0.0
      %198 = vst.msk [vmem:[#allocation2 + $0xc0] sm:$0xff] %vm172, 0.0
      %199 = vst.msk [vmem:[#allocation2 + $0xc8] sm:$0xff] %vm172, 0.0
      %200 = vst.msk [vmem:[#allocation2 + $0xd0] sm:$0x3] %vm175, 0.0
      %201 = vst.msk [vmem:[#allocation2 + $0xd8] sm:$0xff] %vm172, 0.0
      %202 = vst.msk [vmem:[#allocation2 + $0xe0] sm:$0xff] %vm172, 0.0
      %203 = vst.msk [vmem:[#allocation2 + $0xe8] sm:$0x3] %vm175, 0.0
      %204 = vst.msk [vmem:[#allocation2 + $0xf0] sm:$0xff] %vm172, 0.0
      %205 = vst.msk [vmem:[#allocation2 + $0xf8] sm:$0xff] %vm172, 0.0
      %206 = vst.msk [vmem:[#allocation2 + $0x100] sm:$0x3] %vm175, 0.0
      %207 = vst.msk [vmem:[#allocation2 + $0x108] sm:$0xff] %vm172, 0.0
      %208 = vst.msk [vmem:[#allocation2 + $0x110] sm:$0xff] %vm172, 0.0
      %209 = vst.msk [vmem:[#allocation2 + $0x118] sm:$0x3] %vm175, 0.0
      %210 = vst.msk [vmem:[#allocation2 + $0x120] sm:$0xff] %vm172, 0.0
      %211 = vst.msk [vmem:[#allocation2 + $0x128] sm:$0xff] %vm172, 0.0
      %212 = vst.msk [vmem:[#allocation2 + $0x130] sm:$0x3] %vm175, 0.0
      %213 = vst.msk [vmem:[#allocation2 + $0x138] sm:$0xff] %vm172, 0.0
      %214 = vst.msk [vmem:[#allocation2 + $0x140] sm:$0xff] %vm172, 0.0
      %215 = vst.msk [vmem:[#allocation2 + $0x148] sm:$0x3] %vm175, 0.0
      %216 = vst.msk [vmem:[#allocation2 + $0x150] sm:$0xff] %vm172, 0.0
      %217 = vst.msk [vmem:[#allocation2 + $0x158] sm:$0xff] %vm172, 0.0
      %218 = vst.msk [vmem:[#allocation2 + $0x160] sm:$0x3] %vm175, 0.0
      %219 = vst.msk [vmem:[#allocation2 + $0x168] sm:$0xff] %vm172, 0.0
      %220 = vst.msk [vmem:[#allocation2 + $0x170] sm:$0xff] %vm172, 0.0
      %221 = vst.msk [vmem:[#allocation2 + $0x178] sm:$0x3] %vm175, 0.0
      %222 = vst.msk [vmem:[#allocation2 + $0x180] sm:$0xff] %vm172, 0.0
      %223 = vst.msk [vmem:[#allocation2 + $0x188] sm:$0xff] %vm172, 0.0
      %224 = vst.msk [vmem:[#allocation2 + $0x190] sm:$0x3] %vm175, 0.0
      %225 = vst.msk [vmem:[#allocation2 + $0x198] sm:$0xff] %vm172, 0.0
      %226 = vst.msk [vmem:[#allocation2 + $0x1a0] sm:$0xff] %vm172, 0.0
      %227 = vst.msk [vmem:[#allocation2 + $0x1a8] sm:$0x3] %vm175, 0.0
      %v228 = vld [vmem:[%s165] sm:$0xf]
      %v229 = vld [vmem:[%s165 + $0x4] sm:$0xf]
      %v230 = vld [vmem:[%s165 + $0x8] sm:$0xf]
      %v231 = vld [vmem:[%s165 + $0xc] sm:$0xf]
      %v232 = vld [vmem:[%s165 + $0x10] sm:$0xf]
      %v233 = vld [vmem:[%s165 + $0x14] sm:$0xf]
      %v234 = vld [vmem:[%s165 + $0x18] sm:$0xf]
      %v235 = vld [vmem:[%s165 + $0x1c] sm:$0xf]
      %v236 = vld [vmem:[%s165 + $0x20] sm:$0xf]
      %v237 = vld [vmem:[%s165 + $0x24] sm:$0xf]
      %v238 = vld [vmem:[%s165 + $0x28] sm:$0xf]
      %v239 = vld [vmem:[%s165 + $0x2c] sm:$0xf]
      %v240 = vld [vmem:[%s165 + $0x30] sm:$0xf]
      %v241 = vld [vmem:[%s165 + $0x34] sm:$0xf]
      %v242 = vld [vmem:[%s165 + $0x38] sm:$0xf]
      %v243 = vld [vmem:[%s165 + $0x3c] sm:$0xf]
      %v244 = vld [vmem:[%s165 + $0x40] sm:$0xf]
      %v245 = vld [vmem:[%s165 + $0x44] sm:$0xf]
      %v246 = vld [vmem:[%s165 + $0x48] sm:$0xf]
      %v247 = vld [vmem:[%s165 + $0x4c] sm:$0xf]
      %v248 = vld [vmem:[%s165 + $0x50] sm:$0xf]
      %v249 = vld [vmem:[%s165 + $0x54] sm:$0xf]
      %v250 = vld [vmem:[%s165 + $0x58] sm:$0xf]
      %v251 = vld [vmem:[%s165 + $0x5c] sm:$0xf]
      %v252 = vld [vmem:[%s165 + $0x60] sm:$0xf]
      %v253 = vld [vmem:[%s165 + $0x64] sm:$0xf]
      %v254 = vld [vmem:[%s165 + $0x68] sm:$0xf]
      %v255 = vld [vmem:[%s165 + $0x6c] sm:$0xf]
      %v256 = vld [vmem:[%s165 + $0x70] sm:$0xf]
      %v257 = vld [vmem:[%s165 + $0x74] sm:$0xf]
      %v258 = vld [vmem:[%s165 + $0x78] sm:$0xf]
      %v259 = vld [vmem:[%s165 + $0x7c] sm:$0xf]
      %v260 = vunpack.c.l.bf16 %v228
      %v261 = vunpack.c.l.bf16 %v229
      %v262 = vunpack.c.l.bf16 %v230
      %v263 = vunpack.c.l.bf16 %v231
      %v264 = vunpack.c.l.bf16 %v232
      %v265 = vunpack.c.l.bf16 %v233
      %v266 = vunpack.c.l.bf16 %v234
      %v267 = vunpack.c.l.bf16 %v235
      %v268 = vunpack.c.l.bf16 %v236
      %v269 = vunpack.c.l.bf16 %v237
      %v270 = vunpack.c.l.bf16 %v238
      %v271 = vunpack.c.l.bf16 %v239
      %v272 = vunpack.c.l.bf16 %v240
      %v273 = vunpack.c.l.bf16 %v241
      %v274 = vunpack.c.l.bf16 %v242
      %v275 = vunpack.c.l.bf16 %v243
      %v276 = vunpack.c.l.bf16 %v244
      %v277 = vunpack.c.l.bf16 %v245
      %v278 = vunpack.c.l.bf16 %v246
      %v279 = vunpack.c.l.bf16 %v247
      %v280 = vunpack.c.l.bf16 %v248
      %v281 = vunpack.c.l.bf16 %v249
      %v282 = vunpack.c.l.bf16 %v250
      %v283 = vunpack.c.l.bf16 %v251
      %v284 = vunpack.c.l.bf16 %v252
      %v285 = vunpack.c.l.bf16 %v253
      %v286 = vunpack.c.l.bf16 %v254
      %v287 = vunpack.c.l.bf16 %v255
      %v288 = vunpack.c.l.bf16 %v256
      %v289 = vunpack.c.l.bf16 %v257
      %v290 = vunpack.c.l.bf16 %v258
      %v291 = vunpack.c.l.bf16 %v259
      %s292 = scalar_lea.vmem [#allocation2], 24
      %293 = vst.msk [vmem:[%s292 + $0x1] sm:$0xff] %vm172, %v260
      %294 = vst.msk [vmem:[%s292 + $0x9] sm:$0xff] %vm172, %v261
      %295 = vst.msk [vmem:[%s292 + $0x19] sm:$0xff] %vm172, %v262
      %296 = vst.msk [vmem:[%s292 + $0x21] sm:$0xff] %vm172, %v263
      %297 = vst.msk [vmem:[%s292 + $0x31] sm:$0xff] %vm172, %v264
      %298 = vst.msk [vmem:[%s292 + $0x39] sm:$0xff] %vm172, %v265
      %299 = vst.msk [vmem:[%s292 + $0x49] sm:$0xff] %vm172, %v266
      %300 = vst.msk [vmem:[%s292 + $0x51] sm:$0xff] %vm172, %v267
      %301 = vst.msk [vmem:[%s292 + $0x61] sm:$0xff] %vm172, %v268
      %302 = vst.msk [vmem:[%s292 + $0x69] sm:$0xff] %vm172, %v269
      %303 = vst.msk [vmem:[%s292 + $0x79] sm:$0xff] %vm172, %v270
      %304 = vst.msk [vmem:[%s292 + $0x81] sm:$0xff] %vm172, %v271
      %305 = vst.msk [vmem:[%s292 + $0x91] sm:$0xff] %vm172, %v272
      %306 = vst.msk [vmem:[%s292 + $0x99] sm:$0xff] %vm172, %v273
      %307 = vst.msk [vmem:[%s292 + $0xa9] sm:$0xff] %vm172, %v274
      %308 = vst.msk [vmem:[%s292 + $0xb1] sm:$0xff] %vm172, %v275
      %309 = vst.msk [vmem:[%s292 + $0xc1] sm:$0xff] %vm172, %v276
      %310 = vst.msk [vmem:[%s292 + $0xc9] sm:$0xff] %vm172, %v277
      %311 = vst.msk [vmem:[%s292 + $0xd9] sm:$0xff] %vm172, %v278
      %312 = vst.msk [vmem:[%s292 + $0xe1] sm:$0xff] %vm172, %v279
      %313 = vst.msk [vmem:[%s292 + $0xf1] sm:$0xff] %vm172, %v280
      %314 = vst.msk [vmem:[%s292 + $0xf9] sm:$0xff] %vm172, %v281
      %315 = vst.msk [vmem:[%s292 + $0x109] sm:$0xff] %vm172, %v282
      %316 = vst.msk [vmem:[%s292 + $0x111] sm:$0xff] %vm172, %v283
      %317 = vst.msk [vmem:[%s292 + $0x121] sm:$0xff] %vm172, %v284
      %318 = vst.msk [vmem:[%s292 + $0x129] sm:$0xff] %vm172, %v285
      %319 = vst.msk [vmem:[%s292 + $0x139] sm:$0xff] %vm172, %v286
      %320 = vst.msk [vmem:[%s292 + $0x141] sm:$0xff] %vm172, %v287
      %321 = vst.msk [vmem:[%s292 + $0x151] sm:$0xff] %vm172, %v288
      %322 = vst.msk [vmem:[%s292 + $0x159] sm:$0xff] %vm172, %v289
      %323 = vst.msk [vmem:[%s292 + $0x169] sm:$0xff] %vm172, %v290
      %324 = vst.msk [vmem:[%s292 + $0x171] sm:$0xff] %vm172, %v291
      %v325 = vld [vmem:[#allocation2] sm:$0xff]
      %v326 = vld [vmem:[#allocation2 + $0x8] sm:$0xff]
      %v327 = vld [vmem:[#allocation2 + $0x18] sm:$0xff]
      %v328 = vld [vmem:[#allocation2 + $0x20] sm:$0xff]
      %v329 = vld [vmem:[#allocation2 + $0x30] sm:$0xff]
      %v330 = vld [vmem:[#allocation2 + $0x38] sm:$0xff]
      %v331 = vld [vmem:[#allocation2 + $0x48] sm:$0xff]
      %v332 = vld [vmem:[#allocation2 + $0x50] sm:$0xff]
      %v333 = vld [vmem:[#allocation2 + $0x60] sm:$0xff]
      %v334 = vld [vmem:[#allocation2 + $0x68] sm:$0xff]
      %v335 = vld [vmem:[#allocation2 + $0x78] sm:$0xff]
      %v336 = vld [vmem:[#allocation2 + $0x80] sm:$0xff]
      %v337 = vld [vmem:[#allocation2 + $0x90] sm:$0xff]
      %v338 = vld [vmem:[#allocation2 + $0x98] sm:$0xff]
      %v339 = vld [vmem:[#allocation2 + $0xa8] sm:$0xff]
      %v340 = vld [vmem:[#allocation2 + $0xb0] sm:$0xff]
      %v341 = vld [vmem:[#allocation2 + $0xc0] sm:$0xff]
      %v342 = vld [vmem:[#allocation2 + $0xc8] sm:$0xff]
      %v343 = vld [vmem:[#allocation2 + $0xd8] sm:$0xff]
      %v344 = vld [vmem:[#allocation2 + $0xe0] sm:$0xff]
      %v345 = vld [vmem:[#allocation2 + $0xf0] sm:$0xff]
      %v346 = vld [vmem:[#allocation2 + $0xf8] sm:$0xff]
      %v347 = vld [vmem:[#allocation2 + $0x108] sm:$0xff]
      %v348 = vld [vmem:[#allocation2 + $0x110] sm:$0xff]
      %v349 = vld [vmem:[#allocation2 + $0x120] sm:$0xff]
      %v350 = vld [vmem:[#allocation2 + $0x128] sm:$0xff]
      %v351 = vld [vmem:[#allocation2 + $0x138] sm:$0xff]
      %v352 = vld [vmem:[#allocation2 + $0x140] sm:$0xff]
      %v353 = vld [vmem:[#allocation2 + $0x150] sm:$0xff]
      %v354 = vld [vmem:[#allocation2 + $0x158] sm:$0xff]
      %v355 = vld [vmem:[#allocation2 + $0x168] sm:$0xff]
      %v356 = vld [vmem:[#allocation2 + $0x170] sm:$0xff]
      %v357 = vld [vmem:[#allocation2 + $0x1] sm:$0xff]
      %v358 = vld [vmem:[#allocation2 + $0x9] sm:$0xff]
      %v359 = vld [vmem:[#allocation2 + $0x19] sm:$0xff]
      %v360 = vld [vmem:[#allocation2 + $0x21] sm:$0xff]
      %v361 = vld [vmem:[#allocation2 + $0x31] sm:$0xff]
      %v362 = vld [vmem:[#allocation2 + $0x39] sm:$0xff]
      %v363 = vld [vmem:[#allocation2 + $0x49] sm:$0xff]
      %v364 = vld [vmem:[#allocation2 + $0x51] sm:$0xff]
      %v365 = vld [vmem:[#allocation2 + $0x61] sm:$0xff]
      %v366 = vld [vmem:[#allocation2 + $0x69] sm:$0xff]
      %v367 = vld [vmem:[#allocation2 + $0x79] sm:$0xff]
      %v368 = vld [vmem:[#allocation2 + $0x81] sm:$0xff]
      %v369 = vld [vmem:[#allocation2 + $0x91] sm:$0xff]
      %v370 = vld [vmem:[#allocation2 + $0x99] sm:$0xff]
      %v371 = vld [vmem:[#allocation2 + $0xa9] sm:$0xff]
      %v372 = vld [vmem:[#allocation2 + $0xb1] sm:$0xff]
      %v373 = vld [vmem:[#allocation2 + $0xc1] sm:$0xff]
      %v374 = vld [vmem:[#allocation2 + $0xc9] sm:$0xff]
      %v375 = vld [vmem:[#allocation2 + $0xd9] sm:$0xff]
      %v376 = vld [vmem:[#allocation2 + $0xe1] sm:$0xff]
      %v377 = vld [vmem:[#allocation2 + $0xf1] sm:$0xff]
      %v378 = vld [vmem:[#allocation2 + $0xf9] sm:$0xff]
      %v379 = vld [vmem:[#allocation2 + $0x109] sm:$0xff]
      %v380 = vld [vmem:[#allocation2 + $0x111] sm:$0xff]
      %v381 = vld [vmem:[#allocation2 + $0x121] sm:$0xff]
      %v382 = vld [vmem:[#allocation2 + $0x129] sm:$0xff]
      %v383 = vld [vmem:[#allocation2 + $0x139] sm:$0xff]
      %v384 = vld [vmem:[#allocation2 + $0x141] sm:$0xff]
      %v385 = vld [vmem:[#allocation2 + $0x151] sm:$0xff]
      %v386 = vld [vmem:[#allocation2 + $0x159] sm:$0xff]
      %v387 = vld [vmem:[#allocation2 + $0x169] sm:$0xff]
      %v388 = vld [vmem:[#allocation2 + $0x171] sm:$0xff]
      %v389 = vld [vmem:[#allocation2 + $0x2] sm:$0xff]
      %v390 = vld [vmem:[#allocation2 + $0xa] sm:$0xff]
      %v391 = vld [vmem:[#allocation2 + $0x1a] sm:$0xff]
      %v392 = vld [vmem:[#allocation2 + $0x22] sm:$0xff]
      %v393 = vld [vmem:[#allocation2 + $0x32] sm:$0xff]
      %v394 = vld [vmem:[#allocation2 + $0x3a] sm:$0xff]
      %v395 = vld [vmem:[#allocation2 + $0x4a] sm:$0xff]
      %v396 = vld [vmem:[#allocation2 + $0x52] sm:$0xff]
      %v397 = vld [vmem:[#allocation2 + $0x62] sm:$0xff]
      %v398 = vld [vmem:[#allocation2 + $0x6a] sm:$0xff]
      %v399 = vld [vmem:[#allocation2 + $0x7a] sm:$0xff]
      %v400 = vld [vmem:[#allocation2 + $0x82] sm:$0xff]
      %v401 = vld [vmem:[#allocation2 + $0x92] sm:$0xff]
      %v402 = vld [vmem:[#allocation2 + $0x9a] sm:$0xff]
      %v403 = vld [vmem:[#allocation2 + $0xaa] sm:$0xff]
      %v404 = vld [vmem:[#allocation2 + $0xb2] sm:$0xff]
      %v405 = vld [vmem:[#allocation2 + $0xc2] sm:$0xff]
      %v406 = vld [vmem:[#allocation2 + $0xca] sm:$0xff]
      %v407 = vld [vmem:[#allocation2 + $0xda] sm:$0xff]
      %v408 = vld [vmem:[#allocation2 + $0xe2] sm:$0xff]
      %v409 = vld [vmem:[#allocation2 + $0xf2] sm:$0xff]
      %v410 = vld [vmem:[#allocation2 + $0xfa] sm:$0xff]
      %v411 = vld [vmem:[#allocation2 + $0x10a] sm:$0xff]
      %v412 = vld [vmem:[#allocation2 + $0x112] sm:$0xff]
      %v413 = vld [vmem:[#allocation2 + $0x122] sm:$0xff]
      %v414 = vld [vmem:[#allocation2 + $0x12a] sm:$0xff]
      %v415 = vld [vmem:[#allocation2 + $0x13a] sm:$0xff]
      %v416 = vld [vmem:[#allocation2 + $0x142] sm:$0xff]
      %v417 = vld [vmem:[#allocation2 + $0x152] sm:$0xff]
      %v418 = vld [vmem:[#allocation2 + $0x15a] sm:$0xff]
      %v419 = vld [vmem:[#allocation2 + $0x16a] sm:$0xff]
      %v420 = vld [vmem:[#allocation2 + $0x172] sm:$0xff]
      %v421 = vld [vmem:[%s292] sm:$0xff]
      %v422 = vld [vmem:[%s292 + $0x8] sm:$0xff]
      %v423 = vld [vmem:[%s292 + $0x18] sm:$0xff]
      %v424 = vld [vmem:[%s292 + $0x20] sm:$0xff]
      %v425 = vld [vmem:[%s292 + $0x30] sm:$0xff]
      %v426 = vld [vmem:[%s292 + $0x38] sm:$0xff]
      %v427 = vld [vmem:[%s292 + $0x48] sm:$0xff]
      %v428 = vld [vmem:[%s292 + $0x50] sm:$0xff]
      %v429 = vld [vmem:[%s292 + $0x60] sm:$0xff]
      %v430 = vld [vmem:[%s292 + $0x68] sm:$0xff]
      %v431 = vld [vmem:[%s292 + $0x78] sm:$0xff]
      %v432 = vld [vmem:[%s292 + $0x80] sm:$0xff]
      %v433 = vld [vmem:[%s292 + $0x90] sm:$0xff]
      %v434 = vld [vmem:[%s292 + $0x98] sm:$0xff]
      %v435 = vld [vmem:[%s292 + $0xa8] sm:$0xff]
      %v436 = vld [vmem:[%s292 + $0xb0] sm:$0xff]
      %v437 = vld [vmem:[%s292 + $0xc0] sm:$0xff]
      %v438 = vld [vmem:[%s292 + $0xc8] sm:$0xff]
      %v439 = vld [vmem:[%s292 + $0xd8] sm:$0xff]
      %v440 = vld [vmem:[%s292 + $0xe0] sm:$0xff]
      %v441 = vld [vmem:[%s292 + $0xf0] sm:$0xff]
      %v442 = vld [vmem:[%s292 + $0xf8] sm:$0xff]
      %v443 = vld [vmem:[%s292 + $0x108] sm:$0xff]
      %v444 = vld [vmem:[%s292 + $0x110] sm:$0xff]
      %v445 = vld [vmem:[%s292 + $0x120] sm:$0xff]
      %v446 = vld [vmem:[%s292 + $0x128] sm:$0xff]
      %v447 = vld [vmem:[%s292 + $0x138] sm:$0xff]
      %v448 = vld [vmem:[%s292 + $0x140] sm:$0xff]
      %v449 = vld [vmem:[%s292 + $0x150] sm:$0xff]
      %v450 = vld [vmem:[%s292 + $0x158] sm:$0xff]
      %v451 = vld [vmem:[%s292 + $0x168] sm:$0xff]
      %v452 = vld [vmem:[%s292 + $0x170] sm:$0xff]
      %v453 = vld [vmem:[%s292 + $0x1] sm:$0xff]
      %v454 = vld [vmem:[%s292 + $0x9] sm:$0xff]
      %v455 = vld [vmem:[%s292 + $0x19] sm:$0xff]
      %v456 = vld [vmem:[%s292 + $0x21] sm:$0xff]
      %v457 = vld [vmem:[%s292 + $0x31] sm:$0xff]
      %v458 = vld [vmem:[%s292 + $0x39] sm:$0xff]
      %v459 = vld [vmem:[%s292 + $0x49] sm:$0xff]
      %v460 = vld [vmem:[%s292 + $0x51] sm:$0xff]
      %v461 = vld [vmem:[%s292 + $0x61] sm:$0xff]
      %v462 = vld [vmem:[%s292 + $0x69] sm:$0xff]
      %v463 = vld [vmem:[%s292 + $0x79] sm:$0xff]
      %v464 = vld [vmem:[%s292 + $0x81] sm:$0xff]
      %v465 = vld [vmem:[%s292 + $0x91] sm:$0xff]
      %v466 = vld [vmem:[%s292 + $0x99] sm:$0xff]
      %v467 = vld [vmem:[%s292 + $0xa9] sm:$0xff]
      %v468 = vld [vmem:[%s292 + $0xb1] sm:$0xff]
      %v469 = vld [vmem:[%s292 + $0xc1] sm:$0xff]
      %v470 = vld [vmem:[%s292 + $0xc9] sm:$0xff]
      %v471 = vld [vmem:[%s292 + $0xd9] sm:$0xff]
      %v472 = vld [vmem:[%s292 + $0xe1] sm:$0xff]
      %v473 = vld [vmem:[%s292 + $0xf1] sm:$0xff]
      %v474 = vld [vmem:[%s292 + $0xf9] sm:$0xff]
      %v475 = vld [vmem:[%s292 + $0x109] sm:$0xff]
      %v476 = vld [vmem:[%s292 + $0x111] sm:$0xff]
      %v477 = vld [vmem:[%s292 + $0x121] sm:$0xff]
      %v478 = vld [vmem:[%s292 + $0x129] sm:$0xff]
      %v479 = vld [vmem:[%s292 + $0x139] sm:$0xff]
      %v480 = vld [vmem:[%s292 + $0x141] sm:$0xff]
      %v481 = vld [vmem:[%s292 + $0x151] sm:$0xff]
      %v482 = vld [vmem:[%s292 + $0x159] sm:$0xff]
      %v483 = vld [vmem:[%s292 + $0x169] sm:$0xff]
      %v484 = vld [vmem:[%s292 + $0x171] sm:$0xff]
      %v485 = vld [vmem:[%s292 + $0x2] sm:$0xff]
      %v486 = vld [vmem:[%s292 + $0xa] sm:$0xff]
      %v487 = vld [vmem:[%s292 + $0x1a] sm:$0xff]
      %v488 = vld [vmem:[%s292 + $0x22] sm:$0xff]
      %v489 = vld [vmem:[%s292 + $0x32] sm:$0xff]
      %v490 = vld [vmem:[%s292 + $0x3a] sm:$0xff]
      %v491 = vld [vmem:[%s292 + $0x4a] sm:$0xff]
      %v492 = vld [vmem:[%s292 + $0x52] sm:$0xff]
      %v493 = vld [vmem:[%s292 + $0x62] sm:$0xff]
      %v494 = vld [vmem:[%s292 + $0x6a] sm:$0xff]
      %v495 = vld [vmem:[%s292 + $0x7a] sm:$0xff]
      %v496 = vld [vmem:[%s292 + $0x82] sm:$0xff]
      %v497 = vld [vmem:[%s292 + $0x92] sm:$0xff]
      %v498 = vld [vmem:[%s292 + $0x9a] sm:$0xff]
      %v499 = vld [vmem:[%s292 + $0xaa] sm:$0xff]
      %v500 = vld [vmem:[%s292 + $0xb2] sm:$0xff]
      %v501 = vld [vmem:[%s292 + $0xc2] sm:$0xff]
      %v502 = vld [vmem:[%s292 + $0xca] sm:$0xff]
      %v503 = vld [vmem:[%s292 + $0xda] sm:$0xff]
      %v504 = vld [vmem:[%s292 + $0xe2] sm:$0xff]
      %v505 = vld [vmem:[%s292 + $0xf2] sm:$0xff]
      %v506 = vld [vmem:[%s292 + $0xfa] sm:$0xff]
      %v507 = vld [vmem:[%s292 + $0x10a] sm:$0xff]
      %v508 = vld [vmem:[%s292 + $0x112] sm:$0xff]
      %v509 = vld [vmem:[%s292 + $0x122] sm:$0xff]
      %v510 = vld [vmem:[%s292 + $0x12a] sm:$0xff]
      %v511 = vld [vmem:[%s292 + $0x13a] sm:$0xff]
      %v512 = vld [vmem:[%s292 + $0x142] sm:$0xff]
      %v513 = vld [vmem:[%s292 + $0x152] sm:$0xff]
      %v514 = vld [vmem:[%s292 + $0x15a] sm:$0xff]
      %v515 = vld [vmem:[%s292 + $0x16a] sm:$0xff]
      %v516 = vld [vmem:[%s292 + $0x172] sm:$0xff]
      %s517 = scalar_lea.vmem [#allocation2], 48
      %v518 = vld [vmem:[%s517] sm:$0xff]
      %v519 = vld [vmem:[%s517 + $0x8] sm:$0xff]
      %v520 = vld [vmem:[%s517 + $0x18] sm:$0xff]
      %v521 = vld [vmem:[%s517 + $0x20] sm:$0xff]
      %v522 = vld [vmem:[%s517 + $0x30] sm:$0xff]
      %v523 = vld [vmem:[%s517 + $0x38] sm:$0xff]
      %v524 = vld [vmem:[%s517 + $0x48] sm:$0xff]
      %v525 = vld [vmem:[%s517 + $0x50] sm:$0xff]
      %v526 = vld [vmem:[%s517 + $0x60] sm:$0xff]
      %v527 = vld [vmem:[%s517 + $0x68] sm:$0xff]
      %v528 = vld [vmem:[%s517 + $0x78] sm:$0xff]
      %v529 = vld [vmem:[%s517 + $0x80] sm:$0xff]
      %v530 = vld [vmem:[%s517 + $0x90] sm:$0xff]
      %v531 = vld [vmem:[%s517 + $0x98] sm:$0xff]
      %v532 = vld [vmem:[%s517 + $0xa8] sm:$0xff]
      %v533 = vld [vmem:[%s517 + $0xb0] sm:$0xff]
      %v534 = vld [vmem:[%s517 + $0xc0] sm:$0xff]
      %v535 = vld [vmem:[%s517 + $0xc8] sm:$0xff]
      %v536 = vld [vmem:[%s517 + $0xd8] sm:$0xff]
      %v537 = vld [vmem:[%s517 + $0xe0] sm:$0xff]
      %v538 = vld [vmem:[%s517 + $0xf0] sm:$0xff]
      %v539 = vld [vmem:[%s517 + $0xf8] sm:$0xff]
      %v540 = vld [vmem:[%s517 + $0x108] sm:$0xff]
      %v541 = vld [vmem:[%s517 + $0x110] sm:$0xff]
      %v542 = vld [vmem:[%s517 + $0x120] sm:$0xff]
      %v543 = vld [vmem:[%s517 + $0x128] sm:$0xff]
      %v544 = vld [vmem:[%s517 + $0x138] sm:$0xff]
      %v545 = vld [vmem:[%s517 + $0x140] sm:$0xff]
      %v546 = vld [vmem:[%s517 + $0x150] sm:$0xff]
      %v547 = vld [vmem:[%s517 + $0x158] sm:$0xff]
      %v548 = vld [vmem:[%s517 + $0x168] sm:$0xff]
      %v549 = vld [vmem:[%s517 + $0x170] sm:$0xff]
      %v550 = vld [vmem:[%s517 + $0x1] sm:$0xff]
      %v551 = vld [vmem:[%s517 + $0x9] sm:$0xff]
      %v552 = vld [vmem:[%s517 + $0x19] sm:$0xff]
      %v553 = vld [vmem:[%s517 + $0x21] sm:$0xff]
      %v554 = vld [vmem:[%s517 + $0x31] sm:$0xff]
      %v555 = vld [vmem:[%s517 + $0x39] sm:$0xff]
      %v556 = vld [vmem:[%s517 + $0x49] sm:$0xff]
      %v557 = vld [vmem:[%s517 + $0x51] sm:$0xff]
      %v558 = vld [vmem:[%s517 + $0x61] sm:$0xff]
      %v559 = vld [vmem:[%s517 + $0x69] sm:$0xff]
      %v560 = vld [vmem:[%s517 + $0x79] sm:$0xff]
      %v561 = vld [vmem:[%s517 + $0x81] sm:$0xff]
      %v562 = vld [vmem:[%s517 + $0x91] sm:$0xff]
      %v563 = vld [vmem:[%s517 + $0x99] sm:$0xff]
      %v564 = vld [vmem:[%s517 + $0xa9] sm:$0xff]
      %v565 = vld [vmem:[%s517 + $0xb1] sm:$0xff]
      %v566 = vld [vmem:[%s517 + $0xc1] sm:$0xff]
      %v567 = vld [vmem:[%s517 + $0xc9] sm:$0xff]
      %v568 = vld [vmem:[%s517 + $0xd9] sm:$0xff]
      %v569 = vld [vmem:[%s517 + $0xe1] sm:$0xff]
      %v570 = vld [vmem:[%s517 + $0xf1] sm:$0xff]
      %v571 = vld [vmem:[%s517 + $0xf9] sm:$0xff]
      %v572 = vld [vmem:[%s517 + $0x109] sm:$0xff]
      %v573 = vld [vmem:[%s517 + $0x111] sm:$0xff]
      %v574 = vld [vmem:[%s517 + $0x121] sm:$0xff]
      %v575 = vld [vmem:[%s517 + $0x129] sm:$0xff]
      %v576 = vld [vmem:[%s517 + $0x139] sm:$0xff]
      %v577 = vld [vmem:[%s517 + $0x141] sm:$0xff]
      %v578 = vld [vmem:[%s517 + $0x151] sm:$0xff]
      %v579 = vld [vmem:[%s517 + $0x159] sm:$0xff]
      %v580 = vld [vmem:[%s517 + $0x169] sm:$0xff]
      %v581 = vld [vmem:[%s517 + $0x171] sm:$0xff]
      %v582 = vld [vmem:[%s517 + $0x2] sm:$0xff]
      %v583 = vld [vmem:[%s517 + $0xa] sm:$0xff]
      %v584 = vld [vmem:[%s517 + $0x1a] sm:$0xff]
      %v585 = vld [vmem:[%s517 + $0x22] sm:$0xff]
      %v586 = vld [vmem:[%s517 + $0x32] sm:$0xff]
      %v587 = vld [vmem:[%s517 + $0x3a] sm:$0xff]
      %v588 = vld [vmem:[%s517 + $0x4a] sm:$0xff]
      %v589 = vld [vmem:[%s517 + $0x52] sm:$0xff]
      %v590 = vld [vmem:[%s517 + $0x62] sm:$0xff]
      %v591 = vld [vmem:[%s517 + $0x6a] sm:$0xff]
      %v592 = vld [vmem:[%s517 + $0x7a] sm:$0xff]
      %v593 = vld [vmem:[%s517 + $0x82] sm:$0xff]
      %v594 = vld [vmem:[%s517 + $0x92] sm:$0xff]
      %v595 = vld [vmem:[%s517 + $0x9a] sm:$0xff]
      %v596 = vld [vmem:[%s517 + $0xaa] sm:$0xff]
      %v597 = vld [vmem:[%s517 + $0xb2] sm:$0xff]
      %v598 = vld [vmem:[%s517 + $0xc2] sm:$0xff]
      %v599 = vld [vmem:[%s517 + $0xca] sm:$0xff]
      %v600 = vld [vmem:[%s517 + $0xda] sm:$0xff]
      %v601 = vld [vmem:[%s517 + $0xe2] sm:$0xff]
      %v602 = vld [vmem:[%s517 + $0xf2] sm:$0xff]
      %v603 = vld [vmem:[%s517 + $0xfa] sm:$0xff]
      %v604 = vld [vmem:[%s517 + $0x10a] sm:$0xff]
      %v605 = vld [vmem:[%s517 + $0x112] sm:$0xff]
      %v606 = vld [vmem:[%s517 + $0x122] sm:$0xff]
      %v607 = vld [vmem:[%s517 + $0x12a] sm:$0xff]
      %v608 = vld [vmem:[%s517 + $0x13a] sm:$0xff]
      %v609 = vld [vmem:[%s517 + $0x142] sm:$0xff]
      %v610 = vld [vmem:[%s517 + $0x152] sm:$0xff]
      %v611 = vld [vmem:[%s517 + $0x15a] sm:$0xff]
      %v612 = vld [vmem:[%s517 + $0x16a] sm:$0xff]
      %v613 = vld [vmem:[%s517 + $0x172] sm:$0xff]
      %646 = vrot.lane.b32.xlu0 %v357, 4
      %v647 = vpop.permute.xlu0 %646
      %648 = vrot.lane.b32.xlu0 %v358, 4
      %v649 = vpop.permute.xlu0 %648
      %650 = vrot.lane.b32.xlu0 %v359, 4
      %v651 = vpop.permute.xlu0 %650
      %652 = vrot.lane.b32.xlu0 %v360, 4
      %v653 = vpop.permute.xlu0 %652
      %654 = vrot.lane.b32.xlu0 %v361, 4
      %v655 = vpop.permute.xlu0 %654
      %656 = vrot.lane.b32.xlu0 %v362, 4
      %v657 = vpop.permute.xlu0 %656
      %658 = vrot.lane.b32.xlu0 %v363, 4
      %v659 = vpop.permute.xlu0 %658
      %660 = vrot.lane.b32.xlu0 %v364, 4
      %v661 = vpop.permute.xlu0 %660
      %662 = vrot.lane.b32.xlu0 %v365, 4
      %v663 = vpop.permute.xlu0 %662
      %664 = vrot.lane.b32.xlu0 %v366, 4
      %v665 = vpop.permute.xlu0 %664
      %666 = vrot.lane.b32.xlu0 %v367, 4
      %v667 = vpop.permute.xlu0 %666
      %668 = vrot.lane.b32.xlu0 %v368, 4
      %v669 = vpop.permute.xlu0 %668
      %670 = vrot.lane.b32.xlu0 %v369, 4
      %v671 = vpop.permute.xlu0 %670
      %672 = vrot.lane.b32.xlu0 %v370, 4
      %v673 = vpop.permute.xlu0 %672
      %674 = vrot.lane.b32.xlu0 %v371, 4
      %v675 = vpop.permute.xlu0 %674
      %676 = vrot.lane.b32.xlu0 %v372, 4
      %v677 = vpop.permute.xlu0 %676
      %678 = vrot.lane.b32.xlu0 %v373, 4
      %v679 = vpop.permute.xlu0 %678
      %680 = vrot.lane.b32.xlu0 %v374, 4
      %v681 = vpop.permute.xlu0 %680
      %682 = vrot.lane.b32.xlu0 %v375, 4
      %v683 = vpop.permute.xlu0 %682
      %684 = vrot.lane.b32.xlu0 %v376, 4
      %v685 = vpop.permute.xlu0 %684
      %686 = vrot.lane.b32.xlu0 %v377, 4
      %v687 = vpop.permute.xlu0 %686
      %688 = vrot.lane.b32.xlu0 %v378, 4
      %v689 = vpop.permute.xlu0 %688
      %690 = vrot.lane.b32.xlu0 %v379, 4
      %v691 = vpop.permute.xlu0 %690
      %692 = vrot.lane.b32.xlu0 %v380, 4
      %v693 = vpop.permute.xlu0 %692
      %694 = vrot.lane.b32.xlu0 %v381, 4
      %v695 = vpop.permute.xlu0 %694
      %696 = vrot.lane.b32.xlu0 %v382, 4
      %v697 = vpop.permute.xlu0 %696
      %698 = vrot.lane.b32.xlu0 %v383, 4
      %v699 = vpop.permute.xlu0 %698
      %700 = vrot.lane.b32.xlu0 %v384, 4
      %v701 = vpop.permute.xlu0 %700
      %702 = vrot.lane.b32.xlu0 %v385, 4
      %v703 = vpop.permute.xlu0 %702
      %704 = vrot.lane.b32.xlu0 %v386, 4
      %v705 = vpop.permute.xlu0 %704
      %706 = vrot.lane.b32.xlu0 %v387, 4
      %v707 = vpop.permute.xlu0 %706
      %708 = vrot.lane.b32.xlu0 %v388, 4
      %v709 = vpop.permute.xlu0 %708
      %774 = vrot.lane.b32.xlu0 %v389, 8
      %v775 = vpop.permute.xlu0 %774
      %776 = vrot.lane.b32.xlu0 %v390, 8
      %v777 = vpop.permute.xlu0 %776
      %778 = vrot.lane.b32.xlu0 %v391, 8
      %v779 = vpop.permute.xlu0 %778
      %780 = vrot.lane.b32.xlu0 %v392, 8
      %v781 = vpop.permute.xlu0 %780
      %782 = vrot.lane.b32.xlu0 %v393, 8
      %v783 = vpop.permute.xlu0 %782
      %784 = vrot.lane.b32.xlu0 %v394, 8
      %v785 = vpop.permute.xlu0 %784
      %786 = vrot.lane.b32.xlu0 %v395, 8
      %v787 = vpop.permute.xlu0 %786
      %788 = vrot.lane.b32.xlu0 %v396, 8
      %v789 = vpop.permute.xlu0 %788
      %790 = vrot.lane.b32.xlu0 %v397, 8
      %v791 = vpop.permute.xlu0 %790
      %792 = vrot.lane.b32.xlu0 %v398, 8
      %v793 = vpop.permute.xlu0 %792
      %794 = vrot.lane.b32.xlu0 %v399, 8
      %v795 = vpop.permute.xlu0 %794
      %796 = vrot.lane.b32.xlu0 %v400, 8
      %v797 = vpop.permute.xlu0 %796
      %798 = vrot.lane.b32.xlu0 %v401, 8
      %v799 = vpop.permute.xlu0 %798
      %800 = vrot.lane.b32.xlu0 %v402, 8
      %v801 = vpop.permute.xlu0 %800
      %802 = vrot.lane.b32.xlu0 %v403, 8
      %v803 = vpop.permute.xlu0 %802
      %804 = vrot.lane.b32.xlu0 %v404, 8
      %v805 = vpop.permute.xlu0 %804
      %806 = vrot.lane.b32.xlu0 %v405, 8
      %v807 = vpop.permute.xlu0 %806
      %808 = vrot.lane.b32.xlu0 %v406, 8
      %v809 = vpop.permute.xlu0 %808
      %810 = vrot.lane.b32.xlu0 %v407, 8
      %v811 = vpop.permute.xlu0 %810
      %812 = vrot.lane.b32.xlu0 %v408, 8
      %v813 = vpop.permute.xlu0 %812
      %814 = vrot.lane.b32.xlu0 %v409, 8
      %v815 = vpop.permute.xlu0 %814
      %816 = vrot.lane.b32.xlu0 %v410, 8
      %v817 = vpop.permute.xlu0 %816
      %818 = vrot.lane.b32.xlu0 %v411, 8
      %v819 = vpop.permute.xlu0 %818
      %820 = vrot.lane.b32.xlu0 %v412, 8
      %v821 = vpop.permute.xlu0 %820
      %822 = vrot.lane.b32.xlu0 %v413, 8
      %v823 = vpop.permute.xlu0 %822
      %824 = vrot.lane.b32.xlu0 %v414, 8
      %v825 = vpop.permute.xlu0 %824
      %826 = vrot.lane.b32.xlu0 %v415, 8
      %v827 = vpop.permute.xlu0 %826
      %828 = vrot.lane.b32.xlu0 %v416, 8
      %v829 = vpop.permute.xlu0 %828
      %830 = vrot.lane.b32.xlu0 %v417, 8
      %v831 = vpop.permute.xlu0 %830
      %832 = vrot.lane.b32.xlu0 %v418, 8
      %v833 = vpop.permute.xlu0 %832
      %834 = vrot.lane.b32.xlu0 %v419, 8
      %v835 = vpop.permute.xlu0 %834
      %836 = vrot.lane.b32.xlu0 %v420, 8
      %v837 = vpop.permute.xlu0 %836
      %902 = vrot.lane.b32.xlu0 %v421, 12
      %v903 = vpop.permute.xlu0 %902
      %904 = vrot.lane.b32.xlu0 %v422, 12
      %v905 = vpop.permute.xlu0 %904
      %906 = vrot.lane.b32.xlu0 %v423, 12
      %v907 = vpop.permute.xlu0 %906
      %908 = vrot.lane.b32.xlu0 %v424, 12
      %v909 = vpop.permute.xlu0 %908
      %910 = vrot.lane.b32.xlu0 %v425, 12
      %v911 = vpop.permute.xlu0 %910
      %912 = vrot.lane.b32.xlu0 %v426, 12
      %v913 = vpop.permute.xlu0 %912
      %914 = vrot.lane.b32.xlu0 %v427, 12
      %v915 = vpop.permute.xlu0 %914
      %916 = vrot.lane.b32.xlu0 %v428, 12
      %v917 = vpop.permute.xlu0 %916
      %918 = vrot.lane.b32.xlu0 %v429, 12
      %v919 = vpop.permute.xlu0 %918
      %920 = vrot.lane.b32.xlu0 %v430, 12
      %v921 = vpop.permute.xlu0 %920
      %922 = vrot.lane.b32.xlu0 %v431, 12
      %v923 = vpop.permute.xlu0 %922
      %924 = vrot.lane.b32.xlu0 %v432, 12
      %v925 = vpop.permute.xlu0 %924
      %926 = vrot.lane.b32.xlu0 %v433, 12
      %v927 = vpop.permute.xlu0 %926
      %928 = vrot.lane.b32.xlu0 %v434, 12
      %v929 = vpop.permute.xlu0 %928
      %930 = vrot.lane.b32.xlu0 %v435, 12
      %v931 = vpop.permute.xlu0 %930
      %932 = vrot.lane.b32.xlu0 %v436, 12
      %v933 = vpop.permute.xlu0 %932
      %934 = vrot.lane.b32.xlu0 %v437, 12
      %v935 = vpop.permute.xlu0 %934
      %936 = vrot.lane.b32.xlu0 %v438, 12
      %v937 = vpop.permute.xlu0 %936
      %938 = vrot.lane.b32.xlu0 %v439, 12
      %v939 = vpop.permute.xlu0 %938
      %940 = vrot.lane.b32.xlu0 %v440, 12
      %v941 = vpop.permute.xlu0 %940
      %942 = vrot.lane.b32.xlu0 %v441, 12
      %v943 = vpop.permute.xlu0 %942
      %944 = vrot.lane.b32.xlu0 %v442, 12
      %v945 = vpop.permute.xlu0 %944
      %946 = vrot.lane.b32.xlu0 %v443, 12
      %v947 = vpop.permute.xlu0 %946
      %948 = vrot.lane.b32.xlu0 %v444, 12
      %v949 = vpop.permute.xlu0 %948
      %950 = vrot.lane.b32.xlu0 %v445, 12
      %v951 = vpop.permute.xlu0 %950
      %952 = vrot.lane.b32.xlu0 %v446, 12
      %v953 = vpop.permute.xlu0 %952
      %954 = vrot.lane.b32.xlu0 %v447, 12
      %v955 = vpop.permute.xlu0 %954
      %956 = vrot.lane.b32.xlu0 %v448, 12
      %v957 = vpop.permute.xlu0 %956
      %958 = vrot.lane.b32.xlu0 %v449, 12
      %v959 = vpop.permute.xlu0 %958
      %960 = vrot.lane.b32.xlu0 %v450, 12
      %v961 = vpop.permute.xlu0 %960
      %962 = vrot.lane.b32.xlu0 %v451, 12
      %v963 = vpop.permute.xlu0 %962
      %964 = vrot.lane.b32.xlu0 %v452, 12
      %v965 = vpop.permute.xlu0 %964
      %1030 = vrot.lane.b32.xlu0 %v453, 16
      %v1031 = vpop.permute.xlu0 %1030
      %1032 = vrot.lane.b32.xlu0 %v454, 16
      %v1033 = vpop.permute.xlu0 %1032
      %1034 = vrot.lane.b32.xlu0 %v455, 16
      %v1035 = vpop.permute.xlu0 %1034
      %1036 = vrot.lane.b32.xlu0 %v456, 16
      %v1037 = vpop.permute.xlu0 %1036
      %1038 = vrot.lane.b32.xlu0 %v457, 16
      %v1039 = vpop.permute.xlu0 %1038
      %1040 = vrot.lane.b32.xlu0 %v458, 16
      %v1041 = vpop.permute.xlu0 %1040
      %1042 = vrot.lane.b32.xlu0 %v459, 16
      %v1043 = vpop.permute.xlu0 %1042
      %1044 = vrot.lane.b32.xlu0 %v460, 16
      %v1045 = vpop.permute.xlu0 %1044
      %1046 = vrot.lane.b32.xlu0 %v461, 16
      %v1047 = vpop.permute.xlu0 %1046
      %1048 = vrot.lane.b32.xlu0 %v462, 16
      %v1049 = vpop.permute.xlu0 %1048
      %1050 = vrot.lane.b32.xlu0 %v463, 16
      %v1051 = vpop.permute.xlu0 %1050
      %1052 = vrot.lane.b32.xlu0 %v464, 16
      %v1053 = vpop.permute.xlu0 %1052
      %1054 = vrot.lane.b32.xlu0 %v465, 16
      %v1055 = vpop.permute.xlu0 %1054
      %1056 = vrot.lane.b32.xlu0 %v466, 16
      %v1057 = vpop.permute.xlu0 %1056
      %1058 = vrot.lane.b32.xlu0 %v467, 16
      %v1059 = vpop.permute.xlu0 %1058
      %1060 = vrot.lane.b32.xlu0 %v468, 16
      %v1061 = vpop.permute.xlu0 %1060
      %1062 = vrot.lane.b32.xlu0 %v469, 16
      %v1063 = vpop.permute.xlu0 %1062
      %1064 = vrot.lane.b32.xlu0 %v470, 16
      %v1065 = vpop.permute.xlu0 %1064
      %1066 = vrot.lane.b32.xlu0 %v471, 16
      %v1067 = vpop.permute.xlu0 %1066
      %1068 = vrot.lane.b32.xlu0 %v472, 16
      %v1069 = vpop.permute.xlu0 %1068
      %1070 = vrot.lane.b32.xlu0 %v473, 16
      %v1071 = vpop.permute.xlu0 %1070
      %1072 = vrot.lane.b32.xlu0 %v474, 16
      %v1073 = vpop.permute.xlu0 %1072
      %1074 = vrot.lane.b32.xlu0 %v475, 16
      %v1075 = vpop.permute.xlu0 %1074
      %1076 = vrot.lane.b32.xlu0 %v476, 16
      %v1077 = vpop.permute.xlu0 %1076
      %1078 = vrot.lane.b32.xlu0 %v477, 16
      %v1079 = vpop.permute.xlu0 %1078
      %1080 = vrot.lane.b32.xlu0 %v478, 16
      %v1081 = vpop.permute.xlu0 %1080
      %1082 = vrot.lane.b32.xlu0 %v479, 16
      %v1083 = vpop.permute.xlu0 %1082
      %1084 = vrot.lane.b32.xlu0 %v480, 16
      %v1085 = vpop.permute.xlu0 %1084
      %1086 = vrot.lane.b32.xlu0 %v481, 16
      %v1087 = vpop.permute.xlu0 %1086
      %1088 = vrot.lane.b32.xlu0 %v482, 16
      %v1089 = vpop.permute.xlu0 %1088
      %1090 = vrot.lane.b32.xlu0 %v483, 16
      %v1091 = vpop.permute.xlu0 %1090
      %1092 = vrot.lane.b32.xlu0 %v484, 16
      %v1093 = vpop.permute.xlu0 %1092
      %1158 = vrot.lane.b32.xlu0 %v485, 20
      %v1159 = vpop.permute.xlu0 %1158
      %1160 = vrot.lane.b32.xlu0 %v486, 20
      %v1161 = vpop.permute.xlu0 %1160
      %1162 = vrot.lane.b32.xlu0 %v487, 20
      %v1163 = vpop.permute.xlu0 %1162
      %1164 = vrot.lane.b32.xlu0 %v488, 20
      %v1165 = vpop.permute.xlu0 %1164
      %1166 = vrot.lane.b32.xlu0 %v489, 20
      %v1167 = vpop.permute.xlu0 %1166
      %1168 = vrot.lane.b32.xlu0 %v490, 20
      %v1169 = vpop.permute.xlu0 %1168
      %1170 = vrot.lane.b32.xlu0 %v491, 20
      %v1171 = vpop.permute.xlu0 %1170
      %1172 = vrot.lane.b32.xlu0 %v492, 20
      %v1173 = vpop.permute.xlu0 %1172
      %1174 = vrot.lane.b32.xlu0 %v493, 20
      %v1175 = vpop.permute.xlu0 %1174
      %1176 = vrot.lane.b32.xlu0 %v494, 20
      %v1177 = vpop.permute.xlu0 %1176
      %1178 = vrot.lane.b32.xlu0 %v495, 20
      %v1179 = vpop.permute.xlu0 %1178
      %1180 = vrot.lane.b32.xlu0 %v496, 20
      %v1181 = vpop.permute.xlu0 %1180
      %1182 = vrot.lane.b32.xlu0 %v497, 20
      %v1183 = vpop.permute.xlu0 %1182
      %1184 = vrot.lane.b32.xlu0 %v498, 20
      %v1185 = vpop.permute.xlu0 %1184
      %1186 = vrot.lane.b32.xlu0 %v499, 20
      %v1187 = vpop.permute.xlu0 %1186
      %1188 = vrot.lane.b32.xlu0 %v500, 20
      %v1189 = vpop.permute.xlu0 %1188
      %1190 = vrot.lane.b32.xlu0 %v501, 20
      %v1191 = vpop.permute.xlu0 %1190
      %1192 = vrot.lane.b32.xlu0 %v502, 20
      %v1193 = vpop.permute.xlu0 %1192
      %1194 = vrot.lane.b32.xlu0 %v503, 20
      %v1195 = vpop.permute.xlu0 %1194
      %1196 = vrot.lane.b32.xlu0 %v504, 20
      %v1197 = vpop.permute.xlu0 %1196
      %1198 = vrot.lane.b32.xlu0 %v505, 20
      %v1199 = vpop.permute.xlu0 %1198
      %1200 = vrot.lane.b32.xlu0 %v506, 20
      %v1201 = vpop.permute.xlu0 %1200
      %1202 = vrot.lane.b32.xlu0 %v507, 20
      %v1203 = vpop.permute.xlu0 %1202
      %1204 = vrot.lane.b32.xlu0 %v508, 20
      %v1205 = vpop.permute.xlu0 %1204
      %1206 = vrot.lane.b32.xlu0 %v509, 20
      %v1207 = vpop.permute.xlu0 %1206
      %1208 = vrot.lane.b32.xlu0 %v510, 20
      %v1209 = vpop.permute.xlu0 %1208
      %1210 = vrot.lane.b32.xlu0 %v511, 20
      %v1211 = vpop.permute.xlu0 %1210
      %1212 = vrot.lane.b32.xlu0 %v512, 20
      %v1213 = vpop.permute.xlu0 %1212
      %1214 = vrot.lane.b32.xlu0 %v513, 20
      %v1215 = vpop.permute.xlu0 %1214
      %1216 = vrot.lane.b32.xlu0 %v514, 20
      %v1217 = vpop.permute.xlu0 %1216
      %1218 = vrot.lane.b32.xlu0 %v515, 20
      %v1219 = vpop.permute.xlu0 %1218
      %1220 = vrot.lane.b32.xlu0 %v516, 20
      %v1221 = vpop.permute.xlu0 %1220
      %1286 = vrot.lane.b32.xlu0 %v518, 24
      %v1287 = vpop.permute.xlu0 %1286
      %1288 = vrot.lane.b32.xlu0 %v519, 24
      %v1289 = vpop.permute.xlu0 %1288
      %1290 = vrot.lane.b32.xlu0 %v520, 24
      %v1291 = vpop.permute.xlu0 %1290
      %1292 = vrot.lane.b32.xlu0 %v521, 24
      %v1293 = vpop.permute.xlu0 %1292
      %1294 = vrot.lane.b32.xlu0 %v522, 24
      %v1295 = vpop.permute.xlu0 %1294
      %1296 = vrot.lane.b32.xlu0 %v523, 24
      %v1297 = vpop.permute.xlu0 %1296
      %1298 = vrot.lane.b32.xlu0 %v524, 24
      %v1299 = vpop.permute.xlu0 %1298
      %1300 = vrot.lane.b32.xlu0 %v525, 24
      %v1301 = vpop.permute.xlu0 %1300
      %1302 = vrot.lane.b32.xlu0 %v526, 24
      %v1303 = vpop.permute.xlu0 %1302
      %1304 = vrot.lane.b32.xlu0 %v527, 24
      %v1305 = vpop.permute.xlu0 %1304
      %1306 = vrot.lane.b32.xlu0 %v528, 24
      %v1307 = vpop.permute.xlu0 %1306
      %1308 = vrot.lane.b32.xlu0 %v529, 24
      %v1309 = vpop.permute.xlu0 %1308
      %1310 = vrot.lane.b32.xlu0 %v530, 24
      %v1311 = vpop.permute.xlu0 %1310
      %1312 = vrot.lane.b32.xlu0 %v531, 24
      %v1313 = vpop.permute.xlu0 %1312
      %1314 = vrot.lane.b32.xlu0 %v532, 24
      %v1315 = vpop.permute.xlu0 %1314
      %1316 = vrot.lane.b32.xlu0 %v533, 24
      %v1317 = vpop.permute.xlu0 %1316
      %1318 = vrot.lane.b32.xlu0 %v534, 24
      %v1319 = vpop.permute.xlu0 %1318
      %1320 = vrot.lane.b32.xlu0 %v535, 24
      %v1321 = vpop.permute.xlu0 %1320
      %1322 = vrot.lane.b32.xlu0 %v536, 24
      %v1323 = vpop.permute.xlu0 %1322
      %1324 = vrot.lane.b32.xlu0 %v537, 24
      %v1325 = vpop.permute.xlu0 %1324
      %1326 = vrot.lane.b32.xlu0 %v538, 24
      %v1327 = vpop.permute.xlu0 %1326
      %1328 = vrot.lane.b32.xlu0 %v539, 24
      %v1329 = vpop.permute.xlu0 %1328
      %1330 = vrot.lane.b32.xlu0 %v540, 24
      %v1331 = vpop.permute.xlu0 %1330
      %1332 = vrot.lane.b32.xlu0 %v541, 24
      %v1333 = vpop.permute.xlu0 %1332
      %1334 = vrot.lane.b32.xlu0 %v542, 24
      %v1335 = vpop.permute.xlu0 %1334
      %1336 = vrot.lane.b32.xlu0 %v543, 24
      %v1337 = vpop.permute.xlu0 %1336
      %1338 = vrot.lane.b32.xlu0 %v544, 24
      %v1339 = vpop.permute.xlu0 %1338
      %1340 = vrot.lane.b32.xlu0 %v545, 24
      %v1341 = vpop.permute.xlu0 %1340
      %1342 = vrot.lane.b32.xlu0 %v546, 24
      %v1343 = vpop.permute.xlu0 %1342
      %1344 = vrot.lane.b32.xlu0 %v547, 24
      %v1345 = vpop.permute.xlu0 %1344
      %1346 = vrot.lane.b32.xlu0 %v548, 24
      %v1347 = vpop.permute.xlu0 %1346
      %1348 = vrot.lane.b32.xlu0 %v549, 24
      %v1349 = vpop.permute.xlu0 %1348
      %1414 = vrot.lane.b32.xlu0 %v550, 28
      %v1415 = vpop.permute.xlu0 %1414
      %1416 = vrot.lane.b32.xlu0 %v551, 28
      %v1417 = vpop.permute.xlu0 %1416
      %1418 = vrot.lane.b32.xlu0 %v552, 28
      %v1419 = vpop.permute.xlu0 %1418
      %1420 = vrot.lane.b32.xlu0 %v553, 28
      %v1421 = vpop.permute.xlu0 %1420
      %1422 = vrot.lane.b32.xlu0 %v554, 28
      %v1423 = vpop.permute.xlu0 %1422
      %1424 = vrot.lane.b32.xlu0 %v555, 28
      %v1425 = vpop.permute.xlu0 %1424
      %1426 = vrot.lane.b32.xlu0 %v556, 28
      %v1427 = vpop.permute.xlu0 %1426
      %1428 = vrot.lane.b32.xlu0 %v557, 28
      %v1429 = vpop.permute.xlu0 %1428
      %1430 = vrot.lane.b32.xlu0 %v558, 28
      %v1431 = vpop.permute.xlu0 %1430
      %1432 = vrot.lane.b32.xlu0 %v559, 28
      %v1433 = vpop.permute.xlu0 %1432
      %1434 = vrot.lane.b32.xlu0 %v560, 28
      %v1435 = vpop.permute.xlu0 %1434
      %1436 = vrot.lane.b32.xlu0 %v561, 28
      %v1437 = vpop.permute.xlu0 %1436
      %1438 = vrot.lane.b32.xlu0 %v562, 28
      %v1439 = vpop.permute.xlu0 %1438
      %1440 = vrot.lane.b32.xlu0 %v563, 28
      %v1441 = vpop.permute.xlu0 %1440
      %1442 = vrot.lane.b32.xlu0 %v564, 28
      %v1443 = vpop.permute.xlu0 %1442
      %1444 = vrot.lane.b32.xlu0 %v565, 28
      %v1445 = vpop.permute.xlu0 %1444
      %1446 = vrot.lane.b32.xlu0 %v566, 28
      %v1447 = vpop.permute.xlu0 %1446
      %1448 = vrot.lane.b32.xlu0 %v567, 28
      %v1449 = vpop.permute.xlu0 %1448
      %1450 = vrot.lane.b32.xlu0 %v568, 28
      %v1451 = vpop.permute.xlu0 %1450
      %1452 = vrot.lane.b32.xlu0 %v569, 28
      %v1453 = vpop.permute.xlu0 %1452
      %1454 = vrot.lane.b32.xlu0 %v570, 28
      %v1455 = vpop.permute.xlu0 %1454
      %1456 = vrot.lane.b32.xlu0 %v571, 28
      %v1457 = vpop.permute.xlu0 %1456
      %1458 = vrot.lane.b32.xlu0 %v572, 28
      %v1459 = vpop.permute.xlu0 %1458
      %1460 = vrot.lane.b32.xlu0 %v573, 28
      %v1461 = vpop.permute.xlu0 %1460
      %1462 = vrot.lane.b32.xlu0 %v574, 28
      %v1463 = vpop.permute.xlu0 %1462
      %1464 = vrot.lane.b32.xlu0 %v575, 28
      %v1465 = vpop.permute.xlu0 %1464
      %1466 = vrot.lane.b32.xlu0 %v576, 28
      %v1467 = vpop.permute.xlu0 %1466
      %1468 = vrot.lane.b32.xlu0 %v577, 28
      %v1469 = vpop.permute.xlu0 %1468
      %1470 = vrot.lane.b32.xlu0 %v578, 28
      %v1471 = vpop.permute.xlu0 %1470
      %1472 = vrot.lane.b32.xlu0 %v579, 28
      %v1473 = vpop.permute.xlu0 %1472
      %1474 = vrot.lane.b32.xlu0 %v580, 28
      %v1475 = vpop.permute.xlu0 %1474
      %1476 = vrot.lane.b32.xlu0 %v581, 28
      %v1477 = vpop.permute.xlu0 %1476
      %1542 = vrot.lane.b32.xlu0 %v582, 32
      %v1543 = vpop.permute.xlu0 %1542
      %1544 = vrot.lane.b32.xlu0 %v583, 32
      %v1545 = vpop.permute.xlu0 %1544
      %1546 = vrot.lane.b32.xlu0 %v584, 32
      %v1547 = vpop.permute.xlu0 %1546
      %1548 = vrot.lane.b32.xlu0 %v585, 32
      %v1549 = vpop.permute.xlu0 %1548
      %1550 = vrot.lane.b32.xlu0 %v586, 32
      %v1551 = vpop.permute.xlu0 %1550
      %1552 = vrot.lane.b32.xlu0 %v587, 32
      %v1553 = vpop.permute.xlu0 %1552
      %1554 = vrot.lane.b32.xlu0 %v588, 32
      %v1555 = vpop.permute.xlu0 %1554
      %1556 = vrot.lane.b32.xlu0 %v589, 32
      %v1557 = vpop.permute.xlu0 %1556
      %1558 = vrot.lane.b32.xlu0 %v590, 32
      %v1559 = vpop.permute.xlu0 %1558
      %1560 = vrot.lane.b32.xlu0 %v591, 32
      %v1561 = vpop.permute.xlu0 %1560
      %1562 = vrot.lane.b32.xlu0 %v592, 32
      %v1563 = vpop.permute.xlu0 %1562
      %1564 = vrot.lane.b32.xlu0 %v593, 32
      %v1565 = vpop.permute.xlu0 %1564
      %1566 = vrot.lane.b32.xlu0 %v594, 32
      %v1567 = vpop.permute.xlu0 %1566
      %1568 = vrot.lane.b32.xlu0 %v595, 32
      %v1569 = vpop.permute.xlu0 %1568
      %1570 = vrot.lane.b32.xlu0 %v596, 32
      %v1571 = vpop.permute.xlu0 %1570
      %1572 = vrot.lane.b32.xlu0 %v597, 32
      %v1573 = vpop.permute.xlu0 %1572
      %1574 = vrot.lane.b32.xlu0 %v598, 32
      %v1575 = vpop.permute.xlu0 %1574
      %1576 = vrot.lane.b32.xlu0 %v599, 32
      %v1577 = vpop.permute.xlu0 %1576
      %1578 = vrot.lane.b32.xlu0 %v600, 32
      %v1579 = vpop.permute.xlu0 %1578
      %1580 = vrot.lane.b32.xlu0 %v601, 32
      %v1581 = vpop.permute.xlu0 %1580
      %1582 = vrot.lane.b32.xlu0 %v602, 32
      %v1583 = vpop.permute.xlu0 %1582
      %1584 = vrot.lane.b32.xlu0 %v603, 32
      %v1585 = vpop.permute.xlu0 %1584
      %1586 = vrot.lane.b32.xlu0 %v604, 32
      %v1587 = vpop.permute.xlu0 %1586
      %1588 = vrot.lane.b32.xlu0 %v605, 32
      %v1589 = vpop.permute.xlu0 %1588
      %1590 = vrot.lane.b32.xlu0 %v606, 32
      %v1591 = vpop.permute.xlu0 %1590
      %1592 = vrot.lane.b32.xlu0 %v607, 32
      %v1593 = vpop.permute.xlu0 %1592
      %1594 = vrot.lane.b32.xlu0 %v608, 32
      %v1595 = vpop.permute.xlu0 %1594
      %1596 = vrot.lane.b32.xlu0 %v609, 32
      %v1597 = vpop.permute.xlu0 %1596
      %1598 = vrot.lane.b32.xlu0 %v610, 32
      %v1599 = vpop.permute.xlu0 %1598
      %1600 = vrot.lane.b32.xlu0 %v611, 32
      %v1601 = vpop.permute.xlu0 %1600
      %1602 = vrot.lane.b32.xlu0 %v612, 32
      %v1603 = vpop.permute.xlu0 %1602
      %1604 = vrot.lane.b32.xlu0 %v613, 32
      %v1605 = vpop.permute.xlu0 %1604
      %v1638 = vsel %vm172, %v325, %v647
      %v1639 = vsel %vm172, %v326, %v649
      %v1640 = vsel %vm172, %v327, %v651
      %v1641 = vsel %vm172, %v328, %v653
      %v1642 = vsel %vm172, %v329, %v655
      %v1643 = vsel %vm172, %v330, %v657
      %v1644 = vsel %vm172, %v331, %v659
      %v1645 = vsel %vm172, %v332, %v661
      %v1646 = vsel %vm172, %v333, %v663
      %v1647 = vsel %vm172, %v334, %v665
      %v1648 = vsel %vm172, %v335, %v667
      %v1649 = vsel %vm172, %v336, %v669
      %v1650 = vsel %vm172, %v337, %v671
      %v1651 = vsel %vm172, %v338, %v673
      %v1652 = vsel %vm172, %v339, %v675
      %v1653 = vsel %vm172, %v340, %v677
      %v1654 = vsel %vm172, %v341, %v679
      %v1655 = vsel %vm172, %v342, %v681
      %v1656 = vsel %vm172, %v343, %v683
      %v1657 = vsel %vm172, %v344, %v685
      %v1658 = vsel %vm172, %v345, %v687
      %v1659 = vsel %vm172, %v346, %v689
      %v1660 = vsel %vm172, %v347, %v691
      %v1661 = vsel %vm172, %v348, %v693
      %v1662 = vsel %vm172, %v349, %v695
      %v1663 = vsel %vm172, %v350, %v697
      %v1664 = vsel %vm172, %v351, %v699
      %v1665 = vsel %vm172, %v352, %v701
      %v1666 = vsel %vm172, %v353, %v703
      %v1667 = vsel %vm172, %v354, %v705
      %v1668 = vsel %vm172, %v355, %v707
      %v1669 = vsel %vm172, %v356, %v709
      %vm1670 = vcmask 64512
      %v1671 = vsel %vm1670, %v1638, %v775
      %v1672 = vsel %vm1670, %v1639, %v777
      %v1673 = vsel %vm1670, %v1640, %v779
      %v1674 = vsel %vm1670, %v1641, %v781
      %v1675 = vsel %vm1670, %v1642, %v783
      %v1676 = vsel %vm1670, %v1643, %v785
      %v1677 = vsel %vm1670, %v1644, %v787
      %v1678 = vsel %vm1670, %v1645, %v789
      %v1679 = vsel %vm1670, %v1646, %v791
      %v1680 = vsel %vm1670, %v1647, %v793
      %v1681 = vsel %vm1670, %v1648, %v795
      %v1682 = vsel %vm1670, %v1649, %v797
      %v1683 = vsel %vm1670, %v1650, %v799
      %v1684 = vsel %vm1670, %v1651, %v801
      %v1685 = vsel %vm1670, %v1652, %v803
      %v1686 = vsel %vm1670, %v1653, %v805
      %v1687 = vsel %vm1670, %v1654, %v807
      %v1688 = vsel %vm1670, %v1655, %v809
      %v1689 = vsel %vm1670, %v1656, %v811
      %v1690 = vsel %vm1670, %v1657, %v813
      %v1691 = vsel %vm1670, %v1658, %v815
      %v1692 = vsel %vm1670, %v1659, %v817
      %v1693 = vsel %vm1670, %v1660, %v819
      %v1694 = vsel %vm1670, %v1661, %v821
      %v1695 = vsel %vm1670, %v1662, %v823
      %v1696 = vsel %vm1670, %v1663, %v825
      %v1697 = vsel %vm1670, %v1664, %v827
      %v1698 = vsel %vm1670, %v1665, %v829
      %v1699 = vsel %vm1670, %v1666, %v831
      %v1700 = vsel %vm1670, %v1667, %v833
      %v1701 = vsel %vm1670, %v1668, %v835
      %v1702 = vsel %vm1670, %v1669, %v837
      %vm1703 = vcmask 97280
      %v1704 = vsel %vm1703, %v1671, %v903
      %v1705 = vsel %vm1703, %v1672, %v905
      %v1706 = vsel %vm1703, %v1673, %v907
      %v1707 = vsel %vm1703, %v1674, %v909
      %v1708 = vsel %vm1703, %v1675, %v911
      %v1709 = vsel %vm1703, %v1676, %v913
      %v1710 = vsel %vm1703, %v1677, %v915
      %v1711 = vsel %vm1703, %v1678, %v917
      %v1712 = vsel %vm1703, %v1679, %v919
      %v1713 = vsel %vm1703, %v1680, %v921
      %v1714 = vsel %vm1703, %v1681, %v923
      %v1715 = vsel %vm1703, %v1682, %v925
      %v1716 = vsel %vm1703, %v1683, %v927
      %v1717 = vsel %vm1703, %v1684, %v929
      %v1718 = vsel %vm1703, %v1685, %v931
      %v1719 = vsel %vm1703, %v1686, %v933
      %v1720 = vsel %vm1703, %v1687, %v935
      %v1721 = vsel %vm1703, %v1688, %v937
      %v1722 = vsel %vm1703, %v1689, %v939
      %v1723 = vsel %vm1703, %v1690, %v941
      %v1724 = vsel %vm1703, %v1691, %v943
      %v1725 = vsel %vm1703, %v1692, %v945
      %v1726 = vsel %vm1703, %v1693, %v947
      %v1727 = vsel %vm1703, %v1694, %v949
      %v1728 = vsel %vm1703, %v1695, %v951
      %v1729 = vsel %vm1703, %v1696, %v953
      %v1730 = vsel %vm1703, %v1697, %v955
      %v1731 = vsel %vm1703, %v1698, %v957
      %v1732 = vsel %vm1703, %v1699, %v959
      %v1733 = vsel %vm1703, %v1700, %v961
      %v1734 = vsel %vm1703, %v1701, %v963
      %v1735 = vsel %vm1703, %v1702, %v965
      %vm1736 = vcmask 130048
      %v1737 = vsel %vm1736, %v1704, %v1031
      %v1738 = vsel %vm1736, %v1705, %v1033
      %v1739 = vsel %vm1736, %v1706, %v1035
      %v1740 = vsel %vm1736, %v1707, %v1037
      %v1741 = vsel %vm1736, %v1708, %v1039
      %v1742 = vsel %vm1736, %v1709, %v1041
      %v1743 = vsel %vm1736, %v1710, %v1043
      %v1744 = vsel %vm1736, %v1711, %v1045
      %v1745 = vsel %vm1736, %v1712, %v1047
      %v1746 = vsel %vm1736, %v1713, %v1049
      %v1747 = vsel %vm1736, %v1714, %v1051
      %v1748 = vsel %vm1736, %v1715, %v1053
      %v1749 = vsel %vm1736, %v1716, %v1055
      %v1750 = vsel %vm1736, %v1717, %v1057
      %v1751 = vsel %vm1736, %v1718, %v1059
      %v1752 = vsel %vm1736, %v1719, %v1061
      %v1753 = vsel %vm1736, %v1720, %v1063
      %v1754 = vsel %vm1736, %v1721, %v1065
      %v1755 = vsel %vm1736, %v1722, %v1067
      %v1756 = vsel %vm1736, %v1723, %v1069
      %v1757 = vsel %vm1736, %v1724, %v1071
      %v1758 = vsel %vm1736, %v1725, %v1073
      %v1759 = vsel %vm1736, %v1726, %v1075
      %v1760 = vsel %vm1736, %v1727, %v1077
      %v1761 = vsel %vm1736, %v1728, %v1079
      %v1762 = vsel %vm1736, %v1729, %v1081
      %v1763 = vsel %vm1736, %v1730, %v1083
      %v1764 = vsel %vm1736, %v1731, %v1085
      %v1765 = vsel %vm1736, %v1732, %v1087
      %v1766 = vsel %vm1736, %v1733, %v1089
      %v1767 = vsel %vm1736, %v1734, %v1091
      %v1768 = vsel %vm1736, %v1735, %v1093
      %vm1769 = vcmask 162816
      %v1770 = vsel %vm1769, %v1737, %v1159
      %v1771 = vsel %vm1769, %v1738, %v1161
      %v1772 = vsel %vm1769, %v1739, %v1163
      %v1773 = vsel %vm1769, %v1740, %v1165
      %v1774 = vsel %vm1769, %v1741, %v1167
      %v1775 = vsel %vm1769, %v1742, %v1169
      %v1776 = vsel %vm1769, %v1743, %v1171
      %v1777 = vsel %vm1769, %v1744, %v1173
      %v1778 = vsel %vm1769, %v1745, %v1175
      %v1779 = vsel %vm1769, %v1746, %v1177
      %v1780 = vsel %vm1769, %v1747, %v1179
      %v1781 = vsel %vm1769, %v1748, %v1181
      %v1782 = vsel %vm1769, %v1749, %v1183
      %v1783 = vsel %vm1769, %v1750, %v1185
      %v1784 = vsel %vm1769, %v1751, %v1187
      %v1785 = vsel %vm1769, %v1752, %v1189
      %v1786 = vsel %vm1769, %v1753, %v1191
      %v1787 = vsel %vm1769, %v1754, %v1193
      %v1788 = vsel %vm1769, %v1755, %v1195
      %v1789 = vsel %vm1769, %v1756, %v1197
      %v1790 = vsel %vm1769, %v1757, %v1199
      %v1791 = vsel %vm1769, %v1758, %v1201
      %v1792 = vsel %vm1769, %v1759, %v1203
      %v1793 = vsel %vm1769, %v1760, %v1205
      %v1794 = vsel %vm1769, %v1761, %v1207
      %v1795 = vsel %vm1769, %v1762, %v1209
      %v1796 = vsel %vm1769, %v1763, %v1211
      %v1797 = vsel %vm1769, %v1764, %v1213
      %v1798 = vsel %vm1769, %v1765, %v1215
      %v1799 = vsel %vm1769, %v1766, %v1217
      %v1800 = vsel %vm1769, %v1767, %v1219
      %v1801 = vsel %vm1769, %v1768, %v1221
      %vm1802 = vcmask 195584
      %v1803 = vsel %vm1802, %v1770, %v1287
      %v1804 = vsel %vm1802, %v1771, %v1289
      %v1805 = vsel %vm1802, %v1772, %v1291
      %v1806 = vsel %vm1802, %v1773, %v1293
      %v1807 = vsel %vm1802, %v1774, %v1295
      %v1808 = vsel %vm1802, %v1775, %v1297
      %v1809 = vsel %vm1802, %v1776, %v1299
      %v1810 = vsel %vm1802, %v1777, %v1301
      %v1811 = vsel %vm1802, %v1778, %v1303
      %v1812 = vsel %vm1802, %v1779, %v1305
      %v1813 = vsel %vm1802, %v1780, %v1307
      %v1814 = vsel %vm1802, %v1781, %v1309
      %v1815 = vsel %vm1802, %v1782, %v1311
      %v1816 = vsel %vm1802, %v1783, %v1313
      %v1817 = vsel %vm1802, %v1784, %v1315
      %v1818 = vsel %vm1802, %v1785, %v1317
      %v1819 = vsel %vm1802, %v1786, %v1319
      %v1820 = vsel %vm1802, %v1787, %v1321
      %v1821 = vsel %vm1802, %v1788, %v1323
      %v1822 = vsel %vm1802, %v1789, %v1325
      %v1823 = vsel %vm1802, %v1790, %v1327
      %v1824 = vsel %vm1802, %v1791, %v1329
      %v1825 = vsel %vm1802, %v1792, %v1331
      %v1826 = vsel %vm1802, %v1793, %v1333
      %v1827 = vsel %vm1802, %v1794, %v1335
      %v1828 = vsel %vm1802, %v1795, %v1337
      %v1829 = vsel %vm1802, %v1796, %v1339
      %v1830 = vsel %vm1802, %v1797, %v1341
      %v1831 = vsel %vm1802, %v1798, %v1343
      %v1832 = vsel %vm1802, %v1799, %v1345
      %v1833 = vsel %vm1802, %v1800, %v1347
      %v1834 = vsel %vm1802, %v1801, %v1349
      %vm1835 = vcmask 228352
      %v1836 = vsel %vm1835, %v1803, %v1415
      %v1837 = vsel %vm1835, %v1804, %v1417
      %v1838 = vsel %vm1835, %v1805, %v1419
      %v1839 = vsel %vm1835, %v1806, %v1421
      %v1840 = vsel %vm1835, %v1807, %v1423
      %v1841 = vsel %vm1835, %v1808, %v1425
      %v1842 = vsel %vm1835, %v1809, %v1427
      %v1843 = vsel %vm1835, %v1810, %v1429
      %v1844 = vsel %vm1835, %v1811, %v1431
      %v1845 = vsel %vm1835, %v1812, %v1433
      %v1846 = vsel %vm1835, %v1813, %v1435
      %v1847 = vsel %vm1835, %v1814, %v1437
      %v1848 = vsel %vm1835, %v1815, %v1439
      %v1849 = vsel %vm1835, %v1816, %v1441
      %v1850 = vsel %vm1835, %v1817, %v1443
      %v1851 = vsel %vm1835, %v1818, %v1445
      %v1852 = vsel %vm1835, %v1819, %v1447
      %v1853 = vsel %vm1835, %v1820, %v1449
      %v1854 = vsel %vm1835, %v1821, %v1451
      %v1855 = vsel %vm1835, %v1822, %v1453
      %v1856 = vsel %vm1835, %v1823, %v1455
      %v1857 = vsel %vm1835, %v1824, %v1457
      %v1858 = vsel %vm1835, %v1825, %v1459
      %v1859 = vsel %vm1835, %v1826, %v1461
      %v1860 = vsel %vm1835, %v1827, %v1463
      %v1861 = vsel %vm1835, %v1828, %v1465
      %v1862 = vsel %vm1835, %v1829, %v1467
      %v1863 = vsel %vm1835, %v1830, %v1469
      %v1864 = vsel %vm1835, %v1831, %v1471
      %v1865 = vsel %vm1835, %v1832, %v1473
      %v1866 = vsel %vm1835, %v1833, %v1475
      %v1867 = vsel %vm1835, %v1834, %v1477
      %vm1868 = vcmask 261120
      %v1869 = vsel %vm1868, %v1836, %v1543
      %v1870 = vsel %vm1868, %v1837, %v1545
      %v1871 = vsel %vm1868, %v1838, %v1547
      %v1872 = vsel %vm1868, %v1839, %v1549
      %v1873 = vsel %vm1868, %v1840, %v1551
      %v1874 = vsel %vm1868, %v1841, %v1553
      %v1875 = vsel %vm1868, %v1842, %v1555
      %v1876 = vsel %vm1868, %v1843, %v1557
      %v1877 = vsel %vm1868, %v1844, %v1559
      %v1878 = vsel %vm1868, %v1845, %v1561
      %v1879 = vsel %vm1868, %v1846, %v1563
      %v1880 = vsel %vm1868, %v1847, %v1565
      %v1881 = vsel %vm1868, %v1848, %v1567
      %v1882 = vsel %vm1868, %v1849, %v1569
      %v1883 = vsel %vm1868, %v1850, %v1571
      %v1884 = vsel %vm1868, %v1851, %v1573
      %v1885 = vsel %vm1868, %v1852, %v1575
      %v1886 = vsel %vm1868, %v1853, %v1577
      %v1887 = vsel %vm1868, %v1854, %v1579
      %v1888 = vsel %vm1868, %v1855, %v1581
      %v1889 = vsel %vm1868, %v1856, %v1583
      %v1890 = vsel %vm1868, %v1857, %v1585
      %v1891 = vsel %vm1868, %v1858, %v1587
      %v1892 = vsel %vm1868, %v1859, %v1589
      %v1893 = vsel %vm1868, %v1860, %v1591
      %v1894 = vsel %vm1868, %v1861, %v1593
      %v1895 = vsel %vm1868, %v1862, %v1595
      %v1896 = vsel %vm1868, %v1863, %v1597
      %v1897 = vsel %vm1868, %v1864, %v1599
      %v1898 = vsel %vm1868, %v1865, %v1601
      %v1899 = vsel %vm1868, %v1866, %v1603
      %v1900 = vsel %vm1868, %v1867, %v1605
      %v1901 = vpack.c.bf16 %v1870, %v1869
      %v1902 = vpack.c.bf16 %v1872, %v1871
      %v1903 = vpack.c.bf16 %v1874, %v1873
      %v1904 = vpack.c.bf16 %v1876, %v1875
      %v1905 = vpack.c.bf16 %v1878, %v1877
      %v1906 = vpack.c.bf16 %v1880, %v1879
      %v1907 = vpack.c.bf16 %v1882, %v1881
      %v1908 = vpack.c.bf16 %v1884, %v1883
      %v1909 = vpack.c.bf16 %v1886, %v1885
      %v1910 = vpack.c.bf16 %v1888, %v1887
      %v1911 = vpack.c.bf16 %v1890, %v1889
      %v1912 = vpack.c.bf16 %v1892, %v1891
      %v1913 = vpack.c.bf16 %v1894, %v1893
      %v1914 = vpack.c.bf16 %v1896, %v1895
      %v1915 = vpack.c.bf16 %v1898, %v1897
      %v1916 = vpack.c.bf16 %v1900, %v1899
      %v1917 = vld [vmem:[%s1] sm:$0xf]
      %v1918 = vld [vmem:[%s1 + $0x4] sm:$0xf]
      %v1919 = vld [vmem:[%s1 + $0x8] sm:$0xf]
      %v1920 = vld [vmem:[%s1 + $0xc] sm:$0xf]
      %v1921 = vld [vmem:[%s1 + $0x10] sm:$0x3]
      %v1922 = vld [vmem:[%s2] sm:$0x1]
      %v1924 = vlaneseq
      %v1925 = vshrl.u32 %v1924, 7
      %v1926 = vsub.s32 0, %v1925
      %v1927 = vrot.slane %v1922, %v1926
      %v1934 = vunpack.c.l.b16 %v1917
      %v1935 = vunpack.c.l.b16 %v1918
      %v1936 = vunpack.c.l.b16 %v1919
      %v1937 = vunpack.c.l.b16 %v1920
      %v1938 = vunpack.c.l.b16 %v1921
      %v1939 = vpack.c.b16 %v1935, %v1934
      %v1940 = vpack.c.b16 %v1937, %v1936
      %v1941 = vpack.c.b16 %v1938, %v1938
      %vm1944 = vcmask 293888
      %v1946 = vsel %vm1944, %v1901, 0
      %v1949 = vsel %vm1944, %v1902, 0
      %v1952 = vsel %vm1944, %v1903, 0
      %v1955 = vsel %vm1944, %v1904, 0
      %v1958 = vsel %vm1944, %v1905, 0
      %v1961 = vsel %vm1944, %v1906, 0
      %v1964 = vsel %vm1944, %v1907, 0
      %v1967 = vsel %vm1944, %v1908, 0
      %v1970 = vsel %vm1944, %v1909, 0
      %v1973 = vsel %vm1944, %v1910, 0
      %v1976 = vsel %vm1944, %v1911, 0
      %v1979 = vsel %vm1944, %v1912, 0
      %v1982 = vsel %vm1944, %v1913, 0
      %v1985 = vsel %vm1944, %v1914, 0
      %v1988 = vsel %vm1944, %v1915, 0
      %v1991 = vsel %vm1944, %v1916, 0
      %vm1993 = vcmask 1041408
      %v1995 = vsel %vm1993, %v1941, 0
      %1997 = vmatprep.subr.bf16.mxu0 0
      %1998 = vmatpush1.bf16.msra.mxu0 %v1939
      %1999 = vmatprep.subr.bf16.mxu0 0
      %2000 = vmatpush1.bf16.msra.mxu0 %v1940
      %2001 = vmatprep.subr.bf16.mxu0 0
      %2002 = vmatpush1.bf16.msra.mxu0 %v1995
      %2003 = vmatprep.subr.bf16.mxu0 0
      %2004 = vmatpush1.bf16.msra.mxu0 0
      %2005 = vmatprep.subr.bf16.mxu0 0
      %2006 = vmatpush1.bf16.msra.mxu0 0
      %2007 = vmatprep.subr.bf16.mxu0 0
      %2008 = vmatpush1.bf16.msra.mxu0 0
      %2009 = vmatprep.subr.bf16.mxu0 0
      %2010 = vmatpush1.bf16.msra.mxu0 0
      %2011 = vmatprep.subr.bf16.mxu0 0
      %2012 = vmatpush1.bf16.msra.mxu0 0
      %2013 = vmatprep.subr.bf16.mxu0 0
      %2014 = vmatpush1.bf16.msra.mxu0 0
      %2015 = vmatprep.subr.bf16.mxu0 0
      %2016 = vmatpush1.bf16.msra.mxu0 0
      %2017 = vmatprep.subr.bf16.mxu0 0
      %2018 = vmatpush1.bf16.msra.mxu0 0
      %2019 = vmatprep.subr.bf16.mxu0 0
      %2020 = vmatpush1.bf16.msra.mxu0 0
      %2021 = vmatprep.subr.bf16.mxu0 0
      %2022 = vmatpush1.bf16.msra.mxu0 0
      %2023 = vmatprep.subr.bf16.mxu0 0
      %2024 = vmatpush1.bf16.msra.mxu0 0
      %2025 = vmatprep.subr.bf16.mxu0 0
      %2026 = vmatpush1.bf16.msra.mxu0 0
      %2027 = vmatprep.subr.bf16.mxu0 0
      %2028 = vmatpush1.bf16.msra.mxu0 0
      %2029 = vmatprep.mubr.bf16.mxu0 0
      %2030 = vmatmul.mubr.bf16.gmra.mrb[0].mxu0 %v1946
      %v2031 = vpop.f32.mrb[0].mxu0
      %v2032 = vadd.f32 %v1927, %v2031
      %v2033 = vpop.f32.mrb[0].mxu0
      %v2034 = vpop.f32.mrb[0].mxu0
      %v2035 = vadd.f32 %v1927, %v2034
      %v2036 = vpop.f32.mrb[0].mxu0
      %2037 = vmatprep.mubr.bf16.mxu0 0
      %2038 = vmatmul.mubr.bf16.gmra.mrb[0].mxu0 %v1949
      %v2039 = vpop.f32.mrb[0].mxu0
      %v2040 = vadd.f32 %v1927, %v2039
      %v2041 = vpop.f32.mrb[0].mxu0
      %v2042 = vpop.f32.mrb[0].mxu0
      %v2043 = vadd.f32 %v1927, %v2042
      %v2044 = vpop.f32.mrb[0].mxu0
      %2045 = vmatprep.mubr.bf16.mxu0 0
      %2046 = vmatmul.mubr.bf16.gmra.mrb[0].mxu0 %v1952
      %v2047 = vpop.f32.mrb[0].mxu0
      %v2048 = vadd.f32 %v1927, %v2047
      %v2049 = vpop.f32.mrb[0].mxu0
      %v2050 = vpop.f32.mrb[0].mxu0
      %v2051 = vadd.f32 %v1927, %v2050
      %v2052 = vpop.f32.mrb[0].mxu0
      %2053 = vmatprep.mubr.bf16.mxu0 0
      %2054 = vmatmul.mubr.bf16.gmra.mrb[0].mxu0 %v1955
      %v2055 = vpop.f32.mrb[0].mxu0
      %v2056 = vadd.f32 %v1927, %v2055
      %v2057 = vpop.f32.mrb[0].mxu0
      %v2058 = vpop.f32.mrb[0].mxu0
      %v2059 = vadd.f32 %v1927, %v2058
      %v2060 = vpop.f32.mrb[0].mxu0
      %2061 = vmatprep.mubr.bf16.mxu0 0
      %2062 = vmatmul.mubr.bf16.gmra.mrb[0].mxu0 %v1958
      %v2063 = vpop.f32.mrb[0].mxu0
      %v2064 = vadd.f32 %v1927, %v2063
      %v2065 = vpop.f32.mrb[0].mxu0
      %v2066 = vpop.f32.mrb[0].mxu0
      %v2067 = vadd.f32 %v1927, %v2066
      %v2068 = vpop.f32.mrb[0].mxu0
      %2069 = vmatprep.mubr.bf16.mxu0 0
      %2070 = vmatmul.mubr.bf16.gmra.mrb[0].mxu0 %v1961
      %v2071 = vpop.f32.mrb[0].mxu0
      %v2072 = vadd.f32 %v1927, %v2071
      %v2073 = vpop.f32.mrb[0].mxu0
      %v2074 = vpop.f32.mrb[0].mxu0
      %v2075 = vadd.f32 %v1927, %v2074
      %v2076 = vpop.f32.mrb[0].mxu0
      %2077 = vmatprep.mubr.bf16.mxu0 0
      %2078 = vmatmul.mubr.bf16.gmra.mrb[0].mxu0 %v1964
      %v2079 = vpop.f32.mrb[0].mxu0
      %v2080 = vadd.f32 %v1927, %v2079
      %v2081 = vpop.f32.mrb[0].mxu0
      %v2082 = vpop.f32.mrb[0].mxu0
      %v2083 = vadd.f32 %v1927, %v2082
      %v2084 = vpop.f32.mrb[0].mxu0
      %2085 = vmatprep.mubr.bf16.mxu0 0
      %2086 = vmatmul.mubr.bf16.gmra.mrb[0].mxu0 %v1967
      %v2087 = vpop.f32.mrb[0].mxu0
      %v2088 = vadd.f32 %v1927, %v2087
      %v2089 = vpop.f32.mrb[0].mxu0
      %v2090 = vpop.f32.mrb[0].mxu0
      %v2091 = vadd.f32 %v1927, %v2090
      %v2092 = vpop.f32.mrb[0].mxu0
      %2093 = vmatprep.mubr.bf16.mxu0 0
      %2094 = vmatmul.mubr.bf16.gmra.mrb[0].mxu0 %v1970
      %v2095 = vpop.f32.mrb[0].mxu0
      %v2096 = vadd.f32 %v1927, %v2095
      %v2097 = vpop.f32.mrb[0].mxu0
      %v2098 = vpop.f32.mrb[0].mxu0
      %v2099 = vadd.f32 %v1927, %v2098
      %v2100 = vpop.f32.mrb[0].mxu0
      %2101 = vmatprep.mubr.bf16.mxu0 0
      %2102 = vmatmul.mubr.bf16.gmra.mrb[0].mxu0 %v1973
      %v2103 = vpop.f32.mrb[0].mxu0
      %v2104 = vadd.f32 %v1927, %v2103
      %v2105 = vpop.f32.mrb[0].mxu0
      %v2106 = vpop.f32.mrb[0].mxu0
      %v2107 = vadd.f32 %v1927, %v2106
      %v2108 = vpop.f32.mrb[0].mxu0
      %2109 = vmatprep.mubr.bf16.mxu0 0
      %2110 = vmatmul.mubr.bf16.gmra.mrb[0].mxu0 %v1976
      %v2111 = vpop.f32.mrb[0].mxu0
      %v2112 = vadd.f32 %v1927, %v2111
      %v2113 = vpop.f32.mrb[0].mxu0
      %v2114 = vpop.f32.mrb[0].mxu0
      %v2115 = vadd.f32 %v1927, %v2114
      %v2116 = vpop.f32.mrb[0].mxu0
      %2117 = vmatprep.mubr.bf16.mxu0 0
      %2118 = vmatmul.mubr.bf16.gmra.mrb[0].mxu0 %v1979
      %v2119 = vpop.f32.mrb[0].mxu0
      %v2120 = vadd.f32 %v1927, %v2119
      %v2121 = vpop.f32.mrb[0].mxu0
      %v2122 = vpop.f32.mrb[0].mxu0
      %v2123 = vadd.f32 %v1927, %v2122
      %v2124 = vpop.f32.mrb[0].mxu0
      %2125 = vmatprep.mubr.bf16.mxu0 0
      %2126 = vmatmul.mubr.bf16.gmra.mrb[0].mxu0 %v1982
      %v2127 = vpop.f32.mrb[0].mxu0
      %v2128 = vadd.f32 %v1927, %v2127
      %v2129 = vpop.f32.mrb[0].mxu0
      %v2130 = vpop.f32.mrb[0].mxu0
      %v2131 = vadd.f32 %v1927, %v2130
      %v2132 = vpop.f32.mrb[0].mxu0
      %2133 = vmatprep.mubr.bf16.mxu0 0
      %2134 = vmatmul.mubr.bf16.gmra.mrb[0].mxu0 %v1985
      %v2135 = vpop.f32.mrb[0].mxu0
      %v2136 = vadd.f32 %v1927, %v2135
      %v2137 = vpop.f32.mrb[0].mxu0
      %v2138 = vpop.f32.mrb[0].mxu0
      %v2139 = vadd.f32 %v1927, %v2138
      %v2140 = vpop.f32.mrb[0].mxu0
      %2141 = vmatprep.mubr.bf16.mxu0 0
      %2142 = vmatmul.mubr.bf16.gmra.mrb[0].mxu0 %v1988
      %v2143 = vpop.f32.mrb[0].mxu0
      %v2144 = vadd.f32 %v1927, %v2143
      %v2145 = vpop.f32.mrb[0].mxu0
      %v2146 = vpop.f32.mrb[0].mxu0
      %v2147 = vadd.f32 %v1927, %v2146
      %v2148 = vpop.f32.mrb[0].mxu0
      %2149 = vmatprep.mubr.bf16.mxu0 0
      %2150 = vmatmul.mubr.bf16.gmra.mrb[0].mxu0 %v1991
      %v2151 = vpop.f32.mrb[0].mxu0
      %v2152 = vadd.f32 %v1927, %v2151
      %v2153 = vpop.f32.mrb[0].mxu0
      %v2154 = vpop.f32.mrb[0].mxu0
      %v2155 = vadd.f32 %v1927, %v2154
      %v2156 = vpop.f32.mrb[0].mxu0
      %2157 = vdwg.mxu0
      %vm2158 = vcmp.ge.f32.partialorder %v2032, 0.0
      %vm2159 = vcmp.ge.f32.partialorder %v2035, 0.0
      %vm2160 = vcmp.ge.f32.partialorder %v2040, 0.0
      %vm2161 = vcmp.ge.f32.partialorder %v2043, 0.0
      %vm2162 = vcmp.ge.f32.partialorder %v2048, 0.0
      %vm2163 = vcmp.ge.f32.partialorder %v2051, 0.0
      %vm2164 = vcmp.ge.f32.partialorder %v2056, 0.0
      %vm2165 = vcmp.ge.f32.partialorder %v2059, 0.0
      %vm2166 = vcmp.ge.f32.partialorder %v2064, 0.0
      %vm2167 = vcmp.ge.f32.partialorder %v2067, 0.0
      %vm2168 = vcmp.ge.f32.partialorder %v2072, 0.0
      %vm2169 = vcmp.ge.f32.partialorder %v2075, 0.0
      %vm2170 = vcmp.ge.f32.partialorder %v2080, 0.0
      %vm2171 = vcmp.ge.f32.partialorder %v2083, 0.0
      %vm2172 = vcmp.ge.f32.partialorder %v2088, 0.0
      %vm2173 = vcmp.ge.f32.partialorder %v2091, 0.0
      %vm2174 = vcmp.ge.f32.partialorder %v2096, 0.0
      %vm2175 = vcmp.ge.f32.partialorder %v2099, 0.0
      %vm2176 = vcmp.ge.f32.partialorder %v2104, 0.0
      %vm2177 = vcmp.ge.f32.partialorder %v2107, 0.0
      %vm2178 = vcmp.ge.f32.partialorder %v2112, 0.0
      %vm2179 = vcmp.ge.f32.partialorder %v2115, 0.0
      %vm2180 = vcmp.ge.f32.partialorder %v2120, 0.0
      %vm2181 = vcmp.ge.f32.partialorder %v2123, 0.0
      %vm2182 = vcmp.ge.f32.partialorder %v2128, 0.0
      %vm2183 = vcmp.ge.f32.partialorder %v2131, 0.0
      %vm2184 = vcmp.ge.f32.partialorder %v2136, 0.0
      %vm2185 = vcmp.ge.f32.partialorder %v2139, 0.0
      %vm2186 = vcmp.ge.f32.partialorder %v2144, 0.0
      %vm2187 = vcmp.ge.f32.partialorder %v2147, 0.0
      %vm2188 = vcmp.ge.f32.partialorder %v2152, 0.0
      %vm2189 = vcmp.ge.f32.partialorder %v2155, 0.0
      %v2190 = vmul.f32 %v2032, 0.22916667
      %v2191 = vmul.f32 %v2035, 0.22916667
      %v2192 = vmul.f32 %v2040, 0.22916667
      %v2193 = vmul.f32 %v2043, 0.22916667
      %v2194 = vmul.f32 %v2048, 0.22916667
      %v2195 = vmul.f32 %v2051, 0.22916667
      %v2196 = vmul.f32 %v2056, 0.22916667
      %v2197 = vmul.f32 %v2059, 0.22916667
      %v2198 = vmul.f32 %v2064, 0.22916667
      %v2199 = vmul.f32 %v2067, 0.22916667
      %v2200 = vmul.f32 %v2072, 0.22916667
      %v2201 = vmul.f32 %v2075, 0.22916667
      %v2202 = vmul.f32 %v2080, 0.22916667
      %v2203 = vmul.f32 %v2083, 0.22916667
      %v2204 = vmul.f32 %v2088, 0.22916667
      %v2205 = vmul.f32 %v2091, 0.22916667
      %v2206 = vmul.f32 %v2096, 0.22916667
      %v2207 = vmul.f32 %v2099, 0.22916667
      %v2208 = vmul.f32 %v2104, 0.22916667
      %v2209 = vmul.f32 %v2107, 0.22916667
      %v2210 = vmul.f32 %v2112, 0.22916667
      %v2211 = vmul.f32 %v2115, 0.22916667
      %v2212 = vmul.f32 %v2120, 0.22916667
      %v2213 = vmul.f32 %v2123, 0.22916667
      %v2214 = vmul.f32 %v2128, 0.22916667
      %v2215 = vmul.f32 %v2131, 0.22916667
      %v2216 = vmul.f32 %v2136, 0.22916667
      %v2217 = vmul.f32 %v2139, 0.22916667
      %v2218 = vmul.f32 %v2144, 0.22916667
      %v2219 = vmul.f32 %v2147, 0.22916667
      %v2220 = vmul.f32 %v2152, 0.22916667
      %v2221 = vmul.f32 %v2155, 0.22916667
      %v2222 = vsel %vm2158, %v2032, %v2190
      %v2223 = vsel %vm2159, %v2035, %v2191
      %v2224 = vsel %vm2160, %v2040, %v2192
      %v2225 = vsel %vm2161, %v2043, %v2193
      %v2226 = vsel %vm2162, %v2048, %v2194
      %v2227 = vsel %vm2163, %v2051, %v2195
      %v2228 = vsel %vm2164, %v2056, %v2196
      %v2229 = vsel %vm2165, %v2059, %v2197
      %v2230 = vsel %vm2166, %v2064, %v2198
      %v2231 = vsel %vm2167, %v2067, %v2199
      %v2232 = vsel %vm2168, %v2072, %v2200
      %v2233 = vsel %vm2169, %v2075, %v2201
      %v2234 = vsel %vm2170, %v2080, %v2202
      %v2235 = vsel %vm2171, %v2083, %v2203
      %v2236 = vsel %vm2172, %v2088, %v2204
      %v2237 = vsel %vm2173, %v2091, %v2205
      %v2238 = vsel %vm2174, %v2096, %v2206
      %v2239 = vsel %vm2175, %v2099, %v2207
      %v2240 = vsel %vm2176, %v2104, %v2208
      %v2241 = vsel %vm2177, %v2107, %v2209
      %v2242 = vsel %vm2178, %v2112, %v2210
      %v2243 = vsel %vm2179, %v2115, %v2211
      %v2244 = vsel %vm2180, %v2120, %v2212
      %v2245 = vsel %vm2181, %v2123, %v2213
      %v2246 = vsel %vm2182, %v2128, %v2214
      %v2247 = vsel %vm2183, %v2131, %v2215
      %v2248 = vsel %vm2184, %v2136, %v2216
      %v2249 = vsel %vm2185, %v2139, %v2217
      %v2250 = vsel %vm2186, %v2144, %v2218
      %v2251 = vsel %vm2187, %v2147, %v2219
      %v2252 = vsel %vm2188, %v2152, %v2220
      %v2253 = vsel %vm2189, %v2155, %v2221
      %v2254 = vpack.c.bf16 %v2223, %v2222
      %v2255 = vpack.c.bf16 %v2225, %v2224
      %v2256 = vpack.c.bf16 %v2227, %v2226
      %v2257 = vpack.c.bf16 %v2229, %v2228
      %v2258 = vpack.c.bf16 %v2231, %v2230
      %v2259 = vpack.c.bf16 %v2233, %v2232
      %v2260 = vpack.c.bf16 %v2235, %v2234
      %v2261 = vpack.c.bf16 %v2237, %v2236
      %v2262 = vpack.c.bf16 %v2239, %v2238
      %v2263 = vpack.c.bf16 %v2241, %v2240
      %v2264 = vpack.c.bf16 %v2243, %v2242
      %v2265 = vpack.c.bf16 %v2245, %v2244
      %v2266 = vpack.c.bf16 %v2247, %v2246
      %v2267 = vpack.c.bf16 %v2249, %v2248
      %v2268 = vpack.c.bf16 %v2251, %v2250
      %v2269 = vpack.c.bf16 %v2253, %v2252
      %v2286 = vunpack.c.l.b16 %v2254
      %v2287 = vunpack.c.h.b16 %v2254
      %v2288 = vunpack.c.l.b16 %v2255
      %v2289 = vunpack.c.h.b16 %v2255
      %v2290 = vunpack.c.l.b16 %v2256
      %v2291 = vunpack.c.h.b16 %v2256
      %v2292 = vunpack.c.l.b16 %v2257
      %v2293 = vunpack.c.h.b16 %v2257
      %v2294 = vunpack.c.l.b16 %v2258
      %v2295 = vunpack.c.h.b16 %v2258
      %v2296 = vunpack.c.l.b16 %v2259
      %v2297 = vunpack.c.h.b16 %v2259
      %v2298 = vunpack.c.l.b16 %v2260
      %v2299 = vunpack.c.h.b16 %v2260
      %v2300 = vunpack.c.l.b16 %v2261
      %v2301 = vunpack.c.h.b16 %v2261
      %v2302 = vunpack.c.l.b16 %v2262
      %v2303 = vunpack.c.h.b16 %v2262
      %v2304 = vunpack.c.l.b16 %v2263
      %v2305 = vunpack.c.h.b16 %v2263
      %v2306 = vunpack.c.l.b16 %v2264
      %v2307 = vunpack.c.h.b16 %v2264
      %v2308 = vunpack.c.l.b16 %v2265
      %v2309 = vunpack.c.h.b16 %v2265
      %v2310 = vunpack.c.l.b16 %v2266
      %v2311 = vunpack.c.h.b16 %v2266
      %v2312 = vunpack.c.l.b16 %v2267
      %v2313 = vunpack.c.h.b16 %v2267
      %v2314 = vunpack.c.l.b16 %v2268
      %v2315 = vunpack.c.h.b16 %v2268
      %v2316 = vunpack.c.l.b16 %v2269
      %v2317 = vunpack.c.h.b16 %v2269
      %v2318 = vpack.c.b16 %v2286, %v2286
      %v2319 = vpack.c.b16 %v2287, %v2287
      %v2320 = vpack.c.b16 %v2288, %v2288
      %v2321 = vpack.c.b16 %v2289, %v2289
      %v2322 = vpack.c.b16 %v2290, %v2290
      %v2323 = vpack.c.b16 %v2291, %v2291
      %v2324 = vpack.c.b16 %v2292, %v2292
      %v2325 = vpack.c.b16 %v2293, %v2293
      %v2326 = vpack.c.b16 %v2294, %v2294
      %v2327 = vpack.c.b16 %v2295, %v2295
      %v2328 = vpack.c.b16 %v2296, %v2296
      %v2329 = vpack.c.b16 %v2297, %v2297
      %v2330 = vpack.c.b16 %v2298, %v2298
      %v2331 = vpack.c.b16 %v2299, %v2299
      %v2332 = vpack.c.b16 %v2300, %v2300
      %v2333 = vpack.c.b16 %v2301, %v2301
      %v2334 = vpack.c.b16 %v2302, %v2302
      %v2335 = vpack.c.b16 %v2303, %v2303
      %v2336 = vpack.c.b16 %v2304, %v2304
      %v2337 = vpack.c.b16 %v2305, %v2305
      %v2338 = vpack.c.b16 %v2306, %v2306
      %v2339 = vpack.c.b16 %v2307, %v2307
      %v2340 = vpack.c.b16 %v2308, %v2308
      %v2341 = vpack.c.b16 %v2309, %v2309
      %v2342 = vpack.c.b16 %v2310, %v2310
      %v2343 = vpack.c.b16 %v2311, %v2311
      %v2344 = vpack.c.b16 %v2312, %v2312
      %v2345 = vpack.c.b16 %v2313, %v2313
      %v2346 = vpack.c.b16 %v2314, %v2314
      %v2347 = vpack.c.b16 %v2315, %v2315
      %v2348 = vpack.c.b16 %v2316, %v2316
      %v2349 = vpack.c.b16 %v2317, %v2317
      %vm2382 = vcmask 27648
      %2383 = vst.msk [vmem:[%s170] sm:$0xf] %vm2382, %v2318
      %2384 = vst.msk [vmem:[%s170 + $0x4] sm:$0xf] %vm2382, %v2319
      %2385 = vst.msk [vmem:[%s170 + $0x8] sm:$0xf] %vm2382, %v2320
      %2386 = vst.msk [vmem:[%s170 + $0xc] sm:$0xf] %vm2382, %v2321
      %2387 = vst.msk [vmem:[%s170 + $0x10] sm:$0xf] %vm2382, %v2322
      %2388 = vst.msk [vmem:[%s170 + $0x14] sm:$0xf] %vm2382, %v2323
      %2389 = vst.msk [vmem:[%s170 + $0x18] sm:$0xf] %vm2382, %v2324
      %2390 = vst.msk [vmem:[%s170 + $0x1c] sm:$0xf] %vm2382, %v2325
      %2391 = vst.msk [vmem:[%s170 + $0x20] sm:$0xf] %vm2382, %v2326
      %2392 = vst.msk [vmem:[%s170 + $0x24] sm:$0xf] %vm2382, %v2327
      %2393 = vst.msk [vmem:[%s170 + $0x28] sm:$0xf] %vm2382, %v2328
      %2394 = vst.msk [vmem:[%s170 + $0x2c] sm:$0xf] %vm2382, %v2329
      %2395 = vst.msk [vmem:[%s170 + $0x30] sm:$0xf] %vm2382, %v2330
      %2396 = vst.msk [vmem:[%s170 + $0x34] sm:$0xf] %vm2382, %v2331
      %2397 = vst.msk [vmem:[%s170 + $0x38] sm:$0xf] %vm2382, %v2332
      %2398 = vst.msk [vmem:[%s170 + $0x3c] sm:$0xf] %vm2382, %v2333
      %2399 = vst.msk [vmem:[%s170 + $0x40] sm:$0xf] %vm2382, %v2334
      %2400 = vst.msk [vmem:[%s170 + $0x44] sm:$0xf] %vm2382, %v2335
      %2401 = vst.msk [vmem:[%s170 + $0x48] sm:$0xf] %vm2382, %v2336
      %2402 = vst.msk [vmem:[%s170 + $0x4c] sm:$0xf] %vm2382, %v2337
      %2403 = vst.msk [vmem:[%s170 + $0x50] sm:$0xf] %vm2382, %v2338
      %2404 = vst.msk [vmem:[%s170 + $0x54] sm:$0xf] %vm2382, %v2339
      %2405 = vst.msk [vmem:[%s170 + $0x58] sm:$0xf] %vm2382, %v2340
      %2406 = vst.msk [vmem:[%s170 + $0x5c] sm:$0xf] %vm2382, %v2341
      %2407 = vst.msk [vmem:[%s170 + $0x60] sm:$0xf] %vm2382, %v2342
      %2408 = vst.msk [vmem:[%s170 + $0x64] sm:$0xf] %vm2382, %v2343
      %2409 = vst.msk [vmem:[%s170 + $0x68] sm:$0xf] %vm2382, %v2344
      %2410 = vst.msk [vmem:[%s170 + $0x6c] sm:$0xf] %vm2382, %v2345
      %2411 = vst.msk [vmem:[%s170 + $0x70] sm:$0xf] %vm2382, %v2346
      %2412 = vst.msk [vmem:[%s170 + $0x74] sm:$0xf] %vm2382, %v2347
      %2413 = vst.msk [vmem:[%s170 + $0x78] sm:$0xf] %vm2382, %v2348
      %2414 = vst.msk [vmem:[%s170 + $0x7c] sm:$0xf] %vm2382, %v2349
      %p2415 = scmp.lt.s32.totalorder %s14, 1
      %s2416 = scalar_select %p2415, %s14, 1
      %s2417 = smul.addr %s2416, 32
      %s2418 = smul.addr %s2417, 4
      %s2419 = scalar_lea.vmem %s3, %s2418
      // Predicated region
      $region33: #{res_up_forward.2} parent=31 // pred_check
        %p2420 = pneg %p100
      $region34: #{res_up_forward.2} parent=31 // pred_check_branch
        %2422 = sbr.rel (%p2420) target = $region36
      $region35: #{res_up_forward.2} parent=31 // pred_region
        _
      $region36: #{res_up_forward.2} parent=31 // pred_fallthru
        _
    $region32: #{res_up_forward.2} parent=5 // pred_fallthru
      _
    %p2423 = scmp.le.s32.totalorder 2, %s9
    // Predicated region
    $region37: #{res_up_forward.2} parent=5 // pred_check
      %p2424 = pneg %p2423
    $region38: #{res_up_forward.2} parent=5 // pred_check_branch
      %2426 = sbr.rel (%p2424) target = $region40
    $region39: #{res_up_forward.2} parent=5 // pred_region
      %s2427 = ssub.s32 %s9, 2
      // Predicated region
      $region41: #{res_up_forward.2} parent=39 // pred_check
        %p2428 = pneg %p106
      $region42: #{res_up_forward.2} parent=39 // pred_check_branch
        %2430 = sbr.rel (%p2428) target = $region44
      $region43: #{res_up_forward.2} parent=39 // pred_region
        %p2431 = scmp.lt.s32.totalorder %s15, 1
        %s2432 = scalar_select %p2431, %s15, 1
        %s2433 = smul.addr %s2432, 32
        %s2434 = smul.addr %s2433, 4
        %s2435 = scalar_lea.vmem %s3, %s2434
      $region44: #{res_up_forward.2} parent=39 // pred_fallthru
        _
    $region40: #{res_up_forward.2} parent=5 // pred_fallthru
      _
  $region6: #{res_up_forward.2} parent=0 // loop_footer
    %s13 = sadd.s32 1, %s9
  $region7: #{res_up_forward.2} parent=0 // loop_footer_branch
    %8 = sbr.rel target = $region3
  $region8: #{res_up_forward.2} parent=0 // loop_exit
    _

// kernel: res_up_forward.3
$region0: #{res_up_forward.3}
  #allocation0 [shape = 'u32[]', space=smem, size = 0x4, offset = 0x4, fixed_abs, tag = 'smem constant byte address 0x4 - core index']
  #allocation1 [shape = 'u32[144,128]{1,0:T(1,128)}', space=vmem, size = 0x12000, scoped, tag = 'internal scratch']
  #allocation2 [shape = 'f32[18,18,4]{2,1,0:T(8,128)}', space=vmem, size = 0x36000, scoped, tag = 'scratch operand']
  #allocation3 [shape = 'f32[18,18,4]{2,1,0:T(8,128)}', space=vmem, size = 0x36000, scoped, tag = 'scratch operand']
  %s0 = inlined_call_operand.vmem [shape: bf16[2,16,16,4], index: 0, kind: input, shape index: {}]
  %s1 = inlined_call_operand.vmem [shape: bf16[2,16,16,4], index: 1, kind: input, shape index: {}]
  %s2 = inlined_call_operand.vmem [shape: bf16[2,2,32,8], index: 2, kind: input, shape index: {}]
  %s3 = inlined_call_operand.vmem [shape: f32[1,8], index: 3, kind: input, shape index: {}]
  %s4 = inlined_call_operand.vmem [shape: f32[2,2,2,16,16,8], index: 4, kind: output, shape index: {}]
  %s5 = sld [smem:[#allocation0]]
  $region49: #{res_up_forward.3} parent=0
    _
  %s7 = ssub.s32 1, %s5
  %s8 = scalar_select 0, %s7, %s5
  loop: start=0, step=1, limit=6
  $region2: #{res_up_forward.3} parent=0 // loop_pre_header
    _
  $region3: #{res_up_forward.3} parent=0 // loop_header
    %s10 = sphi 0, %s14
    %p11 = scmp.ge.s32.totalorder %s10, 6
    %s17 = sphi 0, %s29
    %s18 = sphi 0, %s25
    %s19 = sphi 0, %s17
    %s20 = sphi 0, %s18
    %s21 = sphi 0, %s19
    %s22 = sphi 0, %s20
    %s32 = sphi 0, %s34
    %s35 = sphi 0, %s32
    %s36 = sphi 0, %s35
    %s52 = sphi 0, %s36
    %s58 = sphi 0, %s60
    %s61 = sphi 0, %s58
    %s62 = sphi 0, %s61
    %s78 = sphi 0, %s62
    %s84 = sphi 0, %s86
    %s87 = sphi 0, %s84
    %s88 = sphi 0, %s87
    %s104 = sphi 0, %s88
    %s108 = sphi 0, %s108
    %s110 = sphi 0, %s108
    %s111 = sphi 0, %s110
    %s125 = sphi 0, %s111
    %s133 = sphi 0, %s135
    %s136 = sphi 0, %s133
    %s137 = sphi 0, %s136
    %s153 = sphi 0, %s137
  $region4: #{res_up_forward.3} parent=0 // loop_header_branch
    %13 = sbr.rel (%p11) target = $region8
  $region5: #{res_up_forward.3} parent=0 // loop_body
    %s15 = ssub.s32 %s10, 1
    %s16 = ssub.s32 %s10, 2
    %s23 = sadd.s32 1, %s18
    %p24 = scmp.ge.s32.totalorder %s23, 2
    %s25 = scalar_select %p24, 0, %s23
    %s26 = sadd.s32 1, %s17
    %s27 = scalar_select %p24, %s26, %s17
    %p28 = scmp.ge.s32.totalorder %s27, 2
    %s29 = scalar_select %p28, 0, %s27
    %s30 = ssub.s32 %s17, %s29
    %p31 = scmp.eq.s32.totalorder %s30, 0
    %s33 = sadd.s32 %s32, 1
    %s34 = scalar_select %p31, %s32, %s33
    %p37 = pneg %p31
    %p38 = scmp.eq.s32.totalorder %s10, 3
    %p39 = por %p37, %p38
    %p40 = scmp.ne.s32.totalorder %s32, %s35
    %p41 = scmp.eq.s32.totalorder %s10, 0
    %p42 = por %p40, %p41
    %p43 = scmp.ne.s32.totalorder %s32, %s35
    %p44 = scmp.eq.s32.totalorder %s15, 3
    %p45 = por %p43, %p44
    %p46 = scmp.ne.s32.totalorder %s35, %s36
    %p47 = scmp.eq.s32.totalorder %s15, 0
    %p48 = por %p46, %p47
    %p49 = scmp.ne.s32.totalorder %s35, %s36
    %p50 = scmp.eq.s32.totalorder %s16, 3
    %p51 = por %p49, %p50
    %p53 = scmp.ne.s32.totalorder %s36, %s52
    %p54 = scmp.eq.s32.totalorder %s16, 0
    %p55 = por %p53, %p54
    %s56 = ssub.s32 %s17, %s29
    %p57 = scmp.eq.s32.totalorder %s56, 0
    %s59 = sadd.s32 %s58, 1
    %s60 = scalar_select %p57, %s58, %s59
    %p63 = pneg %p57
    %p64 = scmp.eq.s32.totalorder %s10, 3
    %p65 = por %p63, %p64
    %p66 = scmp.ne.s32.totalorder %s58, %s61
    %p67 = scmp.eq.s32.totalorder %s10, 0
    %p68 = por %p66, %p67
    %p69 = scmp.ne.s32.totalorder %s58, %s61
    %p70 = scmp.eq.s32.totalorder %s15, 3
    %p71 = por %p69, %p70
    %p72 = scmp.ne.s32.totalorder %s61, %s62
    %p73 = scmp.eq.s32.totalorder %s15, 0
    %p74 = por %p72, %p73
    %p75 = scmp.ne.s32.totalorder %s61, %s62
    %p76 = scmp.eq.s32.totalorder %s16, 3
    %p77 = por %p75, %p76
    %p79 = scmp.ne.s32.totalorder %s62, %s78
    %p80 = scmp.eq.s32.totalorder %s16, 0
    %p81 = por %p79, %p80
    %s82 = ssub.s32 %s18, %s25
    %p83 = scmp.eq.s32.totalorder %s82, 0
    %s85 = sadd.s32 %s84, 1
    %s86 = scalar_select %p83, %s84, %s85
    %p89 = pneg %p83
    %p90 = scmp.eq.s32.totalorder %s10, 3
    %p91 = por %p89, %p90
    %p92 = scmp.ne.s32.totalorder %s84, %s87
    %p93 = scmp.eq.s32.totalorder %s10, 0
    %p94 = por %p92, %p93
    %p95 = scmp.ne.s32.totalorder %s84, %s87
    %p96 = scmp.eq.s32.totalorder %s15, 3
    %p97 = por %p95, %p96
    %p98 = scmp.ne.s32.totalorder %s87, %s88
    %p99 = scmp.eq.s32.totalorder %s15, 0
    %p100 = por %p98, %p99
    %p101 = scmp.ne.s32.totalorder %s87, %s88
    %p102 = scmp.eq.s32.totalorder %s16, 3
    %p103 = por %p101, %p102
    %p105 = scmp.ne.s32.totalorder %s88, %s104
    %p106 = scmp.eq.s32.totalorder %s16, 0
    %p107 = por %p105, %p106
    %s109 = sadd.s32 %s108, 1
    %p112 = scmp.eq.s32.totalorder %s10, 3
    %p113 = scmp.ne.s32.totalorder %s108, %s110
    %p114 = scmp.eq.s32.totalorder %s10, 0
    %p115 = por %p113, %p114
    %p116 = scmp.ne.s32.totalorder %s108, %s110
    %p117 = scmp.eq.s32.totalorder %s15, 3
    %p118 = por %p116, %p117
    %p119 = scmp.ne.s32.totalorder %s110, %s111
    %p120 = scmp.eq.s32.totalorder %s15, 0
    %p121 = por %p119, %p120
    %p122 = scmp.ne.s32.totalorder %s110, %s111
    %p123 = scmp.eq.s32.totalorder %s16, 3
    %p124 = por %p122, %p123
    %p126 = scmp.ne.s32.totalorder %s111, %s125
    %p127 = scmp.eq.s32.totalorder %s16, 0
    %p128 = por %p126, %p127
    %s129 = ssub.s32 %s17, %s29
    %s130 = ssub.s32 %s18, %s25
    %s131 = sor.u32 %s129, %s130
    %p132 = scmp.eq.s32.totalorder %s131, 0
    %s134 = sadd.s32 %s133, 1
    %s135 = scalar_select %p132, %s133, %s134
    %p138 = pneg %p132
    %p139 = scmp.eq.s32.totalorder %s10, 3
    %p140 = por %p138, %p139
    %p141 = scmp.ne.s32.totalorder %s133, %s136
    %p142 = scmp.eq.s32.totalorder %s10, 0
    %p143 = por %p141, %p142
    %p144 = scmp.ne.s32.totalorder %s133, %s136
    %p145 = scmp.eq.s32.totalorder %s15, 3
    %p146 = por %p144, %p145
    %p147 = scmp.ne.s32.totalorder %s136, %s137
    %p148 = scmp.eq.s32.totalorder %s15, 0
    %p149 = por %p147, %p148
    %p150 = scmp.ne.s32.totalorder %s136, %s137
    %p151 = scmp.eq.s32.totalorder %s16, 3
    %p152 = por %p150, %p151
    %p154 = scmp.ne.s32.totalorder %s137, %s153
    %p155 = scmp.eq.s32.totalorder %s16, 0
    %p156 = por %p154, %p155
    %p157 = scmp.le.s32.totalorder 1, %s10
    %p158 = scmp.lt.s32.totalorder %s10, 5
    %p159 = pnand %p157, %p158
    %p160 = pneg %p159
    // Predicated region
    $region9: #{res_up_forward.3} parent=5 // pred_check
      _
    $region10: #{res_up_forward.3} parent=5 // pred_check_branch
      %162 = sbr.rel (%p159) target = $region12
    $region11: #{res_up_forward.3} parent=5 // pred_region
      %s163 = ssub.s32 %s10, 1
      // Predicated region
      $region13: #{res_up_forward.3} parent=11 // pred_check
        %p164 = pneg %p121
      $region14: #{res_up_forward.3} parent=11 // pred_check_branch
        %166 = sbr.rel (%p164) target = $region16
      $region15: #{res_up_forward.3} parent=11 // pred_region
        _
      $region16: #{res_up_forward.3} parent=11 // pred_fallthru
        _
    $region12: #{res_up_forward.3} parent=5 // pred_fallthru
      _
    %p167 = scmp.lt.s32.totalorder %s10, 4
    // Predicated region
    $region17: #{res_up_forward.3} parent=5 // pred_check
      %p168 = pneg %p167
    $region18: #{res_up_forward.3} parent=5 // pred_check_branch
      %170 = sbr.rel (%p168) target = $region20
    $region19: #{res_up_forward.3} parent=5 // pred_region
      // Predicated region
      $region21: #{res_up_forward.3} parent=19 // pred_check
        %p171 = pneg %p42
      $region22: #{res_up_forward.3} parent=19 // pred_check_branch
        %173 = sbr.rel (%p171) target = $region24
      $region23: #{res_up_forward.3} parent=19 // pred_region
        %p174 = scmp.lt.s32.totalorder %s17, 1
        %s175 = scalar_select %p174, %s17, 1
        %s176 = smul.addr %s175, 32
        %s177 = smul.addr %s176, 4
        %s178 = scalar_lea.vmem %s0, %s177
      $region24: #{res_up_forward.3} parent=19 // pred_fallthru
        _
      // Predicated region
      $region25: #{res_up_forward.3} parent=19 // pred_check
        %p179 = pneg %p68
      $region26: #{res_up_forward.3} parent=19 // pred_check_branch
        %181 = sbr.rel (%p179) target = $region28
      $region27: #{res_up_forward.3} parent=19 // pred_region
        %p182 = scmp.lt.s32.totalorder %s17, 1
        %s183 = scalar_select %p182, %s17, 1
        %s184 = smul.addr %s183, 32
        %s185 = smul.addr %s184, 4
        %s186 = scalar_lea.vmem %s1, %s185
      $region28: #{res_up_forward.3} parent=19 // pred_fallthru
        _
      // Predicated region
      $region29: #{res_up_forward.3} parent=19 // pred_check
        %p187 = pneg %p94
      $region30: #{res_up_forward.3} parent=19 // pred_check_branch
        %189 = sbr.rel (%p187) target = $region32
      $region31: #{res_up_forward.3} parent=19 // pred_region
        %p190 = scmp.lt.s32.totalorder %s18, 1
        %s191 = scalar_select %p190, %s18, 1
        %s192 = smul.addr %s191, 8
        %s193 = smul.addr %s192, 4
        %s194 = scalar_lea.vmem %s2, %s193
      $region32: #{res_up_forward.3} parent=19 // pred_fallthru
        _
    $region20: #{res_up_forward.3} parent=5 // pred_fallthru
      _
    %p195 = scmp.le.s32.totalorder 1, %s10
    %p196 = scmp.lt.s32.totalorder %s10, 5
    %p197 = pnand %p195, %p196
    %p198 = pneg %p197
    // Predicated region
    $region33: #{res_up_forward.3} parent=5 // pred_check
      _
    $region34: #{res_up_forward.3} parent=5 // pred_check_branch
      %200 = sbr.rel (%p197) target = $region36
    $region35: #{res_up_forward.3} parent=5 // pred_region
      %s201 = ssub.s32 %s10, 1
      %p202 = scmp.lt.s32.totalorder %s19, 1
      %s203 = scalar_select %p202, %s19, 1
      %s204 = smul.addr %s203, 32
      %s205 = smul.addr %s204, 4
      %s206 = scalar_lea.vmem %s0, %s205
      %p207 = pneg %p48
      %p208 = pneg %p45
      %p209 = scmp.lt.s32.totalorder %s19, 1
      %s210 = scalar_select %p209, %s19, 1
      %s211 = smul.addr %s210, 32
      %s212 = smul.addr %s211, 4
      %s213 = scalar_lea.vmem %s1, %s212
      %p214 = pneg %p74
      %p215 = pneg %p71
      %p216 = scmp.lt.s32.totalorder %s20, 1
      %s217 = scalar_select %p216, %s20, 1
      %s218 = smul.addr %s217, 8
      %s219 = smul.addr %s218, 4
      %s220 = scalar_lea.vmem %s2, %s219
      %p221 = pneg %p100
      %p222 = pneg %p97
      %p223 = pneg %p121
      %p224 = pneg %p118
      %p225 = pneg %p149
      %p226 = pneg %p146
      %p227 = scmp.lt.s32.totalorder %s19, 1
      %s228 = scalar_select %p227, %s19, 1
      %p229 = scmp.lt.s32.totalorder %s20, 1
      %s230 = scalar_select %p229, %s20, 1
      %s231 = smul.addr %s230, 64
      %s232 = smul.addr %s228, 128
      %s233 = sadd.s32 %s231, %s232
      %s234 = smul.addr %s233, 8
      %s235 = scalar_lea.vmem %s4, %s234
      %p236 = scmp.lt.s32.totalorder %s19, 1
      %s237 = scalar_select %p236, %s19, 1
      %s238 = smul.addr %s237, 32
      %s239 = smul.addr %s238, 4
      %s240 = scalar_lea.vmem %s0, %s239
      %p241 = scmp.lt.s32.totalorder %s19, 1
      %s242 = scalar_select %p241, %s19, 1
      %s243 = smul.addr %s242, 32
      %s244 = smul.addr %s243, 4
      %s245 = scalar_lea.vmem %s1, %s244
      %p246 = scmp.lt.s32.totalorder %s20, 1
      %s247 = scalar_select %p246, %s20, 1
      %s248 = smul.addr %s247, 8
      %s249 = smul.addr %s248, 4
      %s250 = scalar_lea.vmem %s2, %s249
      %p251 = scmp.lt.s32.totalorder %s19, 1
      %s252 = scalar_select %p251, %s19, 1
      %p253 = scmp.lt.s32.totalorder %s20, 1
      %s254 = scalar_select %p253, %s20, 1
      %s255 = smul.addr %s254, 64
      %s256 = smul.addr %s252, 128
      %s257 = sadd.s32 %s255, %s256
      %s258 = smul.addr %s257, 8
      %s259 = scalar_lea.vmem %s4, %s258
      %vm261 = vcmask 31744
      %262 = vst.msk [vmem:[#allocation2] sm:$0xff] %vm261, 0.0
      %263 = vst.msk [vmem:[#allocation2 + $0x8] sm:$0xff] %vm261, 0.0
      %vm264 = vcmask 25600
      %265 = vst.msk [vmem:[#allocation2 + $0x10] sm:$0x3] %vm264, 0.0
      %266 = vst.msk [vmem:[#allocation2 + $0x18] sm:$0xff] %vm261, 0.0
      %267 = vst.msk [vmem:[#allocation2 + $0x20] sm:$0xff] %vm261, 0.0
      %268 = vst.msk [vmem:[#allocation2 + $0x28] sm:$0x3] %vm264, 0.0
      %269 = vst.msk [vmem:[#allocation2 + $0x30] sm:$0xff] %vm261, 0.0
      %270 = vst.msk [vmem:[#allocation2 + $0x38] sm:$0xff] %vm261, 0.0
      %271 = vst.msk [vmem:[#allocation2 + $0x40] sm:$0x3] %vm264, 0.0
      %272 = vst.msk [vmem:[#allocation2 + $0x48] sm:$0xff] %vm261, 0.0
      %273 = vst.msk [vmem:[#allocation2 + $0x50] sm:$0xff] %vm261, 0.0
      %274 = vst.msk [vmem:[#allocation2 + $0x58] sm:$0x3] %vm264, 0.0
      %275 = vst.msk [vmem:[#allocation2 + $0x60] sm:$0xff] %vm261, 0.0
      %276 = vst.msk [vmem:[#allocation2 + $0x68] sm:$0xff] %vm261, 0.0
      %277 = vst.msk [vmem:[#allocation2 + $0x70] sm:$0x3] %vm264, 0.0
      %278 = vst.msk [vmem:[#allocation2 + $0x78] sm:$0xff] %vm261, 0.0
      %279 = vst.msk [vmem:[#allocation2 + $0x80] sm:$0xff] %vm261, 0.0
      %280 = vst.msk [vmem:[#allocation2 + $0x88] sm:$0x3] %vm264, 0.0
      %281 = vst.msk [vmem:[#allocation2 + $0x90] sm:$0xff] %vm261, 0.0
      %282 = vst.msk [vmem:[#allocation2 + $0x98] sm:$0xff] %vm261, 0.0
      %283 = vst.msk [vmem:[#allocation2 + $0xa0] sm:$0x3] %vm264, 0.0
      %284 = vst.msk [vmem:[#allocation2 + $0xa8] sm:$0xff] %vm261, 0.0
      %285 = vst.msk [vmem:[#allocation2 + $0xb0] sm:$0xff] %vm261, 0.0
      %286 = vst.msk [vmem:[#allocation2 + $0xb8] sm:$0x3] %vm264, 0.0
      %287 = vst.msk [vmem:[#allocation2 + $0xc0] sm:$0xff] %vm261, 0.0
      %288 = vst.msk [vmem:[#allocation2 + $0xc8] sm:$0xff] %vm261, 0.0
      %289 = vst.msk [vmem:[#allocation2 + $0xd0] sm:$0x3] %vm264, 0.0
      %290 = vst.msk [vmem:[#allocation2 + $0xd8] sm:$0xff] %vm261, 0.0
      %291 = vst.msk [vmem:[#allocation2 + $0xe0] sm:$0xff] %vm261, 0.0
      %292 = vst.msk [vmem:[#allocation2 + $0xe8] sm:$0x3] %vm264, 0.0
      %293 = vst.msk [vmem:[#allocation2 + $0xf0] sm:$0xff] %vm261, 0.0
      %294 = vst.msk [vmem:[#allocation2 + $0xf8] sm:$0xff] %vm261, 0.0
      %295 = vst.msk [vmem:[#allocation2 + $0x100] sm:$0x3] %vm264, 0.0
      %296 = vst.msk [vmem:[#allocation2 + $0x108] sm:$0xff] %vm261, 0.0
      %297 = vst.msk [vmem:[#allocation2 + $0x110] sm:$0xff] %vm261, 0.0
      %298 = vst.msk [vmem:[#allocation2 + $0x118] sm:$0x3] %vm264, 0.0
      %299 = vst.msk [vmem:[#allocation2 + $0x120] sm:$0xff] %vm261, 0.0
      %300 = vst.msk [vmem:[#allocation2 + $0x128] sm:$0xff] %vm261, 0.0
      %301 = vst.msk [vmem:[#allocation2 + $0x130] sm:$0x3] %vm264, 0.0
      %302 = vst.msk [vmem:[#allocation2 + $0x138] sm:$0xff] %vm261, 0.0
      %303 = vst.msk [vmem:[#allocation2 + $0x140] sm:$0xff] %vm261, 0.0
      %304 = vst.msk [vmem:[#allocation2 + $0x148] sm:$0x3] %vm264, 0.0
      %305 = vst.msk [vmem:[#allocation2 + $0x150] sm:$0xff] %vm261, 0.0
      %306 = vst.msk [vmem:[#allocation2 + $0x158] sm:$0xff] %vm261, 0.0
      %307 = vst.msk [vmem:[#allocation2 + $0x160] sm:$0x3] %vm264, 0.0
      %308 = vst.msk [vmem:[#allocation2 + $0x168] sm:$0xff] %vm261, 0.0
      %309 = vst.msk [vmem:[#allocation2 + $0x170] sm:$0xff] %vm261, 0.0
      %310 = vst.msk [vmem:[#allocation2 + $0x178] sm:$0x3] %vm264, 0.0
      %311 = vst.msk [vmem:[#allocation2 + $0x180] sm:$0xff] %vm261, 0.0
      %312 = vst.msk [vmem:[#allocation2 + $0x188] sm:$0xff] %vm261, 0.0
      %313 = vst.msk [vmem:[#allocation2 + $0x190] sm:$0x3] %vm264, 0.0
      %314 = vst.msk [vmem:[#allocation2 + $0x198] sm:$0xff] %vm261, 0.0
      %315 = vst.msk [vmem:[#allocation2 + $0x1a0] sm:$0xff] %vm261, 0.0
      %316 = vst.msk [vmem:[#allocation2 + $0x1a8] sm:$0x3] %vm264, 0.0
      %v317 = vld [vmem:[%s240] sm:$0xf]
      %v318 = vld [vmem:[%s240 + $0x4] sm:$0xf]
      %v319 = vld [vmem:[%s240 + $0x8] sm:$0xf]
      %v320 = vld [vmem:[%s240 + $0xc] sm:$0xf]
      %v321 = vld [vmem:[%s240 + $0x10] sm:$0xf]
      %v322 = vld [vmem:[%s240 + $0x14] sm:$0xf]
      %v323 = vld [vmem:[%s240 + $0x18] sm:$0xf]
      %v324 = vld [vmem:[%s240 + $0x1c] sm:$0xf]
      %v325 = vld [vmem:[%s240 + $0x20] sm:$0xf]
      %v326 = vld [vmem:[%s240 + $0x24] sm:$0xf]
      %v327 = vld [vmem:[%s240 + $0x28] sm:$0xf]
      %v328 = vld [vmem:[%s240 + $0x2c] sm:$0xf]
      %v329 = vld [vmem:[%s240 + $0x30] sm:$0xf]
      %v330 = vld [vmem:[%s240 + $0x34] sm:$0xf]
      %v331 = vld [vmem:[%s240 + $0x38] sm:$0xf]
      %v332 = vld [vmem:[%s240 + $0x3c] sm:$0xf]
      %v333 = vld [vmem:[%s240 + $0x40] sm:$0xf]
      %v334 = vld [vmem:[%s240 + $0x44] sm:$0xf]
      %v335 = vld [vmem:[%s240 + $0x48] sm:$0xf]
      %v336 = vld [vmem:[%s240 + $0x4c] sm:$0xf]
      %v337 = vld [vmem:[%s240 + $0x50] sm:$0xf]
      %v338 = vld [vmem:[%s240 + $0x54] sm:$0xf]
      %v339 = vld [vmem:[%s240 + $0x58] sm:$0xf]
      %v340 = vld [vmem:[%s240 + $0x5c] sm:$0xf]
      %v341 = vld [vmem:[%s240 + $0x60] sm:$0xf]
      %v342 = vld [vmem:[%s240 + $0x64] sm:$0xf]
      %v343 = vld [vmem:[%s240 + $0x68] sm:$0xf]
      %v344 = vld [vmem:[%s240 + $0x6c] sm:$0xf]
      %v345 = vld [vmem:[%s240 + $0x70] sm:$0xf]
      %v346 = vld [vmem:[%s240 + $0x74] sm:$0xf]
      %v347 = vld [vmem:[%s240 + $0x78] sm:$0xf]
      %v348 = vld [vmem:[%s240 + $0x7c] sm:$0xf]
      %v349 = vunpack.c.l.bf16 %v317
      %v350 = vunpack.c.l.bf16 %v318
      %v351 = vunpack.c.l.bf16 %v319
      %v352 = vunpack.c.l.bf16 %v320
      %v353 = vunpack.c.l.bf16 %v321
      %v354 = vunpack.c.l.bf16 %v322
      %v355 = vunpack.c.l.bf16 %v323
      %v356 = vunpack.c.l.bf16 %v324
      %v357 = vunpack.c.l.bf16 %v325
      %v358 = vunpack.c.l.bf16 %v326
      %v359 = vunpack.c.l.bf16 %v327
      %v360 = vunpack.c.l.bf16 %v328
      %v361 = vunpack.c.l.bf16 %v329
      %v362 = vunpack.c.l.bf16 %v330
      %v363 = vunpack.c.l.bf16 %v331
      %v364 = vunpack.c.l.bf16 %v332
      %v365 = vunpack.c.l.bf16 %v333
      %v366 = vunpack.c.l.bf16 %v334
      %v367 = vunpack.c.l.bf16 %v335
      %v368 = vunpack.c.l.bf16 %v336
      %v369 = vunpack.c.l.bf16 %v337
      %v370 = vunpack.c.l.bf16 %v338
      %v371 = vunpack.c.l.bf16 %v339
      %v372 = vunpack.c.l.bf16 %v340
      %v373 = vunpack.c.l.bf16 %v341
      %v374 = vunpack.c.l.bf16 %v342
      %v375 = vunpack.c.l.bf16 %v343
      %v376 = vunpack.c.l.bf16 %v344
      %v377 = vunpack.c.l.bf16 %v345
      %v378 = vunpack.c.l.bf16 %v346
      %v379 = vunpack.c.l.bf16 %v347
      %v380 = vunpack.c.l.bf16 %v348
      %s381 = scalar_lea.vmem [#allocation2], 24
      %382 = vst.msk [vmem:[%s381 + $0x1] sm:$0xff] %vm261, %v349
      %383 = vst.msk [vmem:[%s381 + $0x9] sm:$0xff] %vm261, %v350
      %384 = vst.msk [vmem:[%s381 + $0x19] sm:$0xff] %vm261, %v351
      %385 = vst.msk [vmem:[%s381 + $0x21] sm:$0xff] %vm261, %v352
      %386 = vst.msk [vmem:[%s381 + $0x31] sm:$0xff] %vm261, %v353
      %387 = vst.msk [vmem:[%s381 + $0x39] sm:$0xff] %vm261, %v354
      %388 = vst.msk [vmem:[%s381 + $0x49] sm:$0xff] %vm261, %v355
      %389 = vst.msk [vmem:[%s381 + $0x51] sm:$0xff] %vm261, %v356
      %390 = vst.msk [vmem:[%s381 + $0x61] sm:$0xff] %vm261, %v357
      %391 = vst.msk [vmem:[%s381 + $0x69] sm:$0xff] %vm261, %v358
      %392 = vst.msk [vmem:[%s381 + $0x79] sm:$0xff] %vm261, %v359
      %393 = vst.msk [vmem:[%s381 + $0x81] sm:$0xff] %vm261, %v360
      %394 = vst.msk [vmem:[%s381 + $0x91] sm:$0xff] %vm261, %v361
      %395 = vst.msk [vmem:[%s381 + $0x99] sm:$0xff] %vm261, %v362
      %396 = vst.msk [vmem:[%s381 + $0xa9] sm:$0xff] %vm261, %v363
      %397 = vst.msk [vmem:[%s381 + $0xb1] sm:$0xff] %vm261, %v364
      %398 = vst.msk [vmem:[%s381 + $0xc1] sm:$0xff] %vm261, %v365
      %399 = vst.msk [vmem:[%s381 + $0xc9] sm:$0xff] %vm261, %v366
      %400 = vst.msk [vmem:[%s381 + $0xd9] sm:$0xff] %vm261, %v367
      %401 = vst.msk [vmem:[%s381 + $0xe1] sm:$0xff] %vm261, %v368
      %402 = vst.msk [vmem:[%s381 + $0xf1] sm:$0xff] %vm261, %v369
      %403 = vst.msk [vmem:[%s381 + $0xf9] sm:$0xff] %vm261, %v370
      %404 = vst.msk [vmem:[%s381 + $0x109] sm:$0xff] %vm261, %v371
      %405 = vst.msk [vmem:[%s381 + $0x111] sm:$0xff] %vm261, %v372
      %406 = vst.msk [vmem:[%s381 + $0x121] sm:$0xff] %vm261, %v373
      %407 = vst.msk [vmem:[%s381 + $0x129] sm:$0xff] %vm261, %v374
      %408 = vst.msk [vmem:[%s381 + $0x139] sm:$0xff] %vm261, %v375
      %409 = vst.msk [vmem:[%s381 + $0x141] sm:$0xff] %vm261, %v376
      %410 = vst.msk [vmem:[%s381 + $0x151] sm:$0xff] %vm261, %v377
      %411 = vst.msk [vmem:[%s381 + $0x159] sm:$0xff] %vm261, %v378
      %412 = vst.msk [vmem:[%s381 + $0x169] sm:$0xff] %vm261, %v379
      %413 = vst.msk [vmem:[%s381 + $0x171] sm:$0xff] %vm261, %v380
      %414 = vst.msk [vmem:[#allocation3] sm:$0xff] %vm261, 0.0
      %415 = vst.msk [vmem:[#allocation3 + $0x8] sm:$0xff] %vm261, 0.0
      %416 = vst.msk [vmem:[#allocation3 + $0x10] sm:$0x3] %vm264, 0.0
      %417 = vst.msk [vmem:[#allocation3 + $0x18] sm:$0xff] %vm261, 0.0
      %418 = vst.msk [vmem:[#allocation3 + $0x20] sm:$0xff] %vm261, 0.0
      %419 = vst.msk [vmem:[#allocation3 + $0x28] sm:$0x3] %vm264, 0.0
      %420 = vst.msk [vmem:[#allocation3 + $0x30] sm:$0xff] %vm261, 0.0
      %421 = vst.msk [vmem:[#allocation3 + $0x38] sm:$0xff] %vm261, 0.0
      %422 = vst.msk [vmem:[#allocation3 + $0x40] sm:$0x3] %vm264, 0.0
      %423 = vst.msk [vmem:[#allocation3 + $0x48] sm:$0xff] %vm261, 0.0
      %424 = vst.msk [vmem:[#allocation3 + $0x50] sm:$0xff] %vm261, 0.0
      %425 = vst.msk [vmem:[#allocation3 + $0x58] sm:$0x3] %vm264, 0.0
      %426 = vst.msk [vmem:[#allocation3 + $0x60] sm:$0xff] %vm261, 0.0
      %427 = vst.msk [vmem:[#allocation3 + $0x68] sm:$0xff] %vm261, 0.0
      %428 = vst.msk [vmem:[#allocation3 + $0x70] sm:$0x3] %vm264, 0.0
      %429 = vst.msk [vmem:[#allocation3 + $0x78] sm:$0xff] %vm261, 0.0
      %430 = vst.msk [vmem:[#allocation3 + $0x80] sm:$0xff] %vm261, 0.0
      %431 = vst.msk [vmem:[#allocation3 + $0x88] sm:$0x3] %vm264, 0.0
      %432 = vst.msk [vmem:[#allocation3 + $0x90] sm:$0xff] %vm261, 0.0
      %433 = vst.msk [vmem:[#allocation3 + $0x98] sm:$0xff] %vm261, 0.0
      %434 = vst.msk [vmem:[#allocation3 + $0xa0] sm:$0x3] %vm264, 0.0
      %435 = vst.msk [vmem:[#allocation3 + $0xa8] sm:$0xff] %vm261, 0.0
      %436 = vst.msk [vmem:[#allocation3 + $0xb0] sm:$0xff] %vm261, 0.0
      %437 = vst.msk [vmem:[#allocation3 + $0xb8] sm:$0x3] %vm264, 0.0
      %438 = vst.msk [vmem:[#allocation3 + $0xc0] sm:$0xff] %vm261, 0.0
      %439 = vst.msk [vmem:[#allocation3 + $0xc8] sm:$0xff] %vm261, 0.0
      %440 = vst.msk [vmem:[#allocation3 + $0xd0] sm:$0x3] %vm264, 0.0
      %441 = vst.msk [vmem:[#allocation3 + $0xd8] sm:$0xff] %vm261, 0.0
      %442 = vst.msk [vmem:[#allocation3 + $0xe0] sm:$0xff] %vm261, 0.0
      %443 = vst.msk [vmem:[#allocation3 + $0xe8] sm:$0x3] %vm264, 0.0
      %444 = vst.msk [vmem:[#allocation3 + $0xf0] sm:$0xff] %vm261, 0.0
      %445 = vst.msk [vmem:[#allocation3 + $0xf8] sm:$0xff] %vm261, 0.0
      %446 = vst.msk [vmem:[#allocation3 + $0x100] sm:$0x3] %vm264, 0.0
      %447 = vst.msk [vmem:[#allocation3 + $0x108] sm:$0xff] %vm261, 0.0
      %448 = vst.msk [vmem:[#allocation3 + $0x110] sm:$0xff] %vm261, 0.0
      %449 = vst.msk [vmem:[#allocation3 + $0x118] sm:$0x3] %vm264, 0.0
      %450 = vst.msk [vmem:[#allocation3 + $0x120] sm:$0xff] %vm261, 0.0
      %451 = vst.msk [vmem:[#allocation3 + $0x128] sm:$0xff] %vm261, 0.0
      %452 = vst.msk [vmem:[#allocation3 + $0x130] sm:$0x3] %vm264, 0.0
      %453 = vst.msk [vmem:[#allocation3 + $0x138] sm:$0xff] %vm261, 0.0
      %454 = vst.msk [vmem:[#allocation3 + $0x140] sm:$0xff] %vm261, 0.0
      %455 = vst.msk [vmem:[#allocation3 + $0x148] sm:$0x3] %vm264, 0.0
      %456 = vst.msk [vmem:[#allocation3 + $0x150] sm:$0xff] %vm261, 0.0
      %457 = vst.msk [vmem:[#allocation3 + $0x158] sm:$0xff] %vm261, 0.0
      %458 = vst.msk [vmem:[#allocation3 + $0x160] sm:$0x3] %vm264, 0.0
      %459 = vst.msk [vmem:[#allocation3 + $0x168] sm:$0xff] %vm261, 0.0
      %460 = vst.msk [vmem:[#allocation3 + $0x170] sm:$0xff] %vm261, 0.0
      %461 = vst.msk [vmem:[#allocation3 + $0x178] sm:$0x3] %vm264, 0.0
      %462 = vst.msk [vmem:[#allocation3 + $0x180] sm:$0xff] %vm261, 0.0
      %463 = vst.msk [vmem:[#allocation3 + $0x188] sm:$0xff] %vm261, 0.0
      %464 = vst.msk [vmem:[#allocation3 + $0x190] sm:$0x3] %vm264, 0.0
      %465 = vst.msk [vmem:[#allocation3 + $0x198] sm:$0xff] %vm261, 0.0
      %466 = vst.msk [vmem:[#allocation3 + $0x1a0] sm:$0xff] %vm261, 0.0
      %467 = vst.msk [vmem:[#allocation3 + $0x1a8] sm:$0x3] %vm264, 0.0
      %v468 = vld [vmem:[%s245] sm:$0xf]
      %v469 = vld [vmem:[%s245 + $0x4] sm:$0xf]
      %v470 = vld [vmem:[%s245 + $0x8] sm:$0xf]
      %v471 = vld [vmem:[%s245 + $0xc] sm:$0xf]
      %v472 = vld [vmem:[%s245 + $0x10] sm:$0xf]
      %v473 = vld [vmem:[%s245 + $0x14] sm:$0xf]
      %v474 = vld [vmem:[%s245 + $0x18] sm:$0xf]
      %v475 = vld [vmem:[%s245 + $0x1c] sm:$0xf]
      %v476 = vld [vmem:[%s245 + $0x20] sm:$0xf]
      %v477 = vld [vmem:[%s245 + $0x24] sm:$0xf]
      %v478 = vld [vmem:[%s245 + $0x28] sm:$0xf]
      %v479 = vld [vmem:[%s245 + $0x2c] sm:$0xf]
      %v480 = vld [vmem:[%s245 + $0x30] sm:$0xf]
      %v481 = vld [vmem:[%s245 + $0x34] sm:$0xf]
      %v482 = vld [vmem:[%s245 + $0x38] sm:$0xf]
      %v483 = vld [vmem:[%s245 + $0x3c] sm:$0xf]
      %v484 = vld [vmem:[%s245 + $0x40] sm:$0xf]
      %v485 = vld [vmem:[%s245 + $0x44] sm:$0xf]
      %v486 = vld [vmem:[%s245 + $0x48] sm:$0xf]
      %v487 = vld [vmem:[%s245 + $0x4c] sm:$0xf]
      %v488 = vld [vmem:[%s245 + $0x50] sm:$0xf]
      %v489 = vld [vmem:[%s245 + $0x54] sm:$0xf]
      %v490 = vld [vmem:[%s245 + $0x58] sm:$0xf]
      %v491 = vld [vmem:[%s245 + $0x5c] sm:$0xf]
      %v492 = vld [vmem:[%s245 + $0x60] sm:$0xf]
      %v493 = vld [vmem:[%s245 + $0x64] sm:$0xf]
      %v494 = vld [vmem:[%s245 + $0x68] sm:$0xf]
      %v495 = vld [vmem:[%s245 + $0x6c] sm:$0xf]
      %v496 = vld [vmem:[%s245 + $0x70] sm:$0xf]
      %v497 = vld [vmem:[%s245 + $0x74] sm:$0xf]
      %v498 = vld [vmem:[%s245 + $0x78] sm:$0xf]
      %v499 = vld [vmem:[%s245 + $0x7c] sm:$0xf]
      %v500 = vunpack.c.l.bf16 %v468
      %v501 = vunpack.c.l.bf16 %v469
      %v502 = vunpack.c.l.bf16 %v470
      %v503 = vunpack.c.l.bf16 %v471
      %v504 = vunpack.c.l.bf16 %v472
      %v505 = vunpack.c.l.bf16 %v473
      %v506 = vunpack.c.l.bf16 %v474
      %v507 = vunpack.c.l.bf16 %v475
      %v508 = vunpack.c.l.bf16 %v476
      %v509 = vunpack.c.l.bf16 %v477
      %v510 = vunpack.c.l.bf16 %v478
      %v511 = vunpack.c.l.bf16 %v479
      %v512 = vunpack.c.l.bf16 %v480
      %v513 = vunpack.c.l.bf16 %v481
      %v514 = vunpack.c.l.bf16 %v482
      %v515 = vunpack.c.l.bf16 %v483
      %v516 = vunpack.c.l.bf16 %v484
      %v517 = vunpack.c.l.bf16 %v485
      %v518 = vunpack.c.l.bf16 %v486
      %v519 = vunpack.c.l.bf16 %v487
      %v520 = vunpack.c.l.bf16 %v488
      %v521 = vunpack.c.l.bf16 %v489
      %v522 = vunpack.c.l.bf16 %v490
      %v523 = vunpack.c.l.bf16 %v491
      %v524 = vunpack.c.l.bf16 %v492
      %v525 = vunpack.c.l.bf16 %v493
      %v526 = vunpack.c.l.bf16 %v494
      %v527 = vunpack.c.l.bf16 %v495
      %v528 = vunpack.c.l.bf16 %v496
      %v529 = vunpack.c.l.bf16 %v497
      %v530 = vunpack.c.l.bf16 %v498
      %v531 = vunpack.c.l.bf16 %v499
      %s532 = scalar_lea.vmem [#allocation3], 24
      %533 = vst.msk [vmem:[%s532 + $0x1] sm:$0xff] %vm261, %v500
      %534 = vst.msk [vmem:[%s532 + $0x9] sm:$0xff] %vm261, %v501
      %535 = vst.msk [vmem:[%s532 + $0x19] sm:$0xff] %vm261, %v502
      %536 = vst.msk [vmem:[%s532 + $0x21] sm:$0xff] %vm261, %v503
      %537 = vst.msk [vmem:[%s532 + $0x31] sm:$0xff] %vm261, %v504
      %538 = vst.msk [vmem:[%s532 + $0x39] sm:$0xff] %vm261, %v505
      %539 = vst.msk [vmem:[%s532 + $0x49] sm:$0xff] %vm261, %v506
      %540 = vst.msk [vmem:[%s532 + $0x51] sm:$0xff] %vm261, %v507
      %541 = vst.msk [vmem:[%s532 + $0x61] sm:$0xff] %vm261, %v508
      %542 = vst.msk [vmem:[%s532 + $0x69] sm:$0xff] %vm261, %v509
      %543 = vst.msk [vmem:[%s532 + $0x79] sm:$0xff] %vm261, %v510
      %544 = vst.msk [vmem:[%s532 + $0x81] sm:$0xff] %vm261, %v511
      %545 = vst.msk [vmem:[%s532 + $0x91] sm:$0xff] %vm261, %v512
      %546 = vst.msk [vmem:[%s532 + $0x99] sm:$0xff] %vm261, %v513
      %547 = vst.msk [vmem:[%s532 + $0xa9] sm:$0xff] %vm261, %v514
      %548 = vst.msk [vmem:[%s532 + $0xb1] sm:$0xff] %vm261, %v515
      %549 = vst.msk [vmem:[%s532 + $0xc1] sm:$0xff] %vm261, %v516
      %550 = vst.msk [vmem:[%s532 + $0xc9] sm:$0xff] %vm261, %v517
      %551 = vst.msk [vmem:[%s532 + $0xd9] sm:$0xff] %vm261, %v518
      %552 = vst.msk [vmem:[%s532 + $0xe1] sm:$0xff] %vm261, %v519
      %553 = vst.msk [vmem:[%s532 + $0xf1] sm:$0xff] %vm261, %v520
      %554 = vst.msk [vmem:[%s532 + $0xf9] sm:$0xff] %vm261, %v521
      %555 = vst.msk [vmem:[%s532 + $0x109] sm:$0xff] %vm261, %v522
      %556 = vst.msk [vmem:[%s532 + $0x111] sm:$0xff] %vm261, %v523
      %557 = vst.msk [vmem:[%s532 + $0x121] sm:$0xff] %vm261, %v524
      %558 = vst.msk [vmem:[%s532 + $0x129] sm:$0xff] %vm261, %v525
      %559 = vst.msk [vmem:[%s532 + $0x139] sm:$0xff] %vm261, %v526
      %560 = vst.msk [vmem:[%s532 + $0x141] sm:$0xff] %vm261, %v527
      %561 = vst.msk [vmem:[%s532 + $0x151] sm:$0xff] %vm261, %v528
      %562 = vst.msk [vmem:[%s532 + $0x159] sm:$0xff] %vm261, %v529
      %563 = vst.msk [vmem:[%s532 + $0x169] sm:$0xff] %vm261, %v530
      %564 = vst.msk [vmem:[%s532 + $0x171] sm:$0xff] %vm261, %v531
      %s565 = smul.u32 %s20, 24
      %s566 = scalar_lea.vmem [#allocation2], %s565
      %v567 = vld [vmem:[%s566] sm:$0xff]
      %v568 = vld [vmem:[%s566 + $0x8] sm:$0xff]
      %v569 = vld [vmem:[%s566 + $0x18] sm:$0xff]
      %v570 = vld [vmem:[%s566 + $0x20] sm:$0xff]
      %v571 = vld [vmem:[%s566 + $0x30] sm:$0xff]
      %v572 = vld [vmem:[%s566 + $0x38] sm:$0xff]
      %v573 = vld [vmem:[%s566 + $0x48] sm:$0xff]
      %v574 = vld [vmem:[%s566 + $0x50] sm:$0xff]
      %v575 = vld [vmem:[%s566 + $0x60] sm:$0xff]
      %v576 = vld [vmem:[%s566 + $0x68] sm:$0xff]
      %v577 = vld [vmem:[%s566 + $0x78] sm:$0xff]
      %v578 = vld [vmem:[%s566 + $0x80] sm:$0xff]
      %v579 = vld [vmem:[%s566 + $0x90] sm:$0xff]
      %v580 = vld [vmem:[%s566 + $0x98] sm:$0xff]
      %v581 = vld [vmem:[%s566 + $0xa8] sm:$0xff]
      %v582 = vld [vmem:[%s566 + $0xb0] sm:$0xff]
      %v583 = vld [vmem:[%s566 + $0xc0] sm:$0xff]
      %v584 = vld [vmem:[%s566 + $0xc8] sm:$0xff]
      %v585 = vld [vmem:[%s566 + $0xd8] sm:$0xff]
      %v586 = vld [vmem:[%s566 + $0xe0] sm:$0xff]
      %v587 = vld [vmem:[%s566 + $0xf0] sm:$0xff]
      %v588 = vld [vmem:[%s566 + $0xf8] sm:$0xff]
      %v589 = vld [vmem:[%s566 + $0x108] sm:$0xff]
      %v590 = vld [vmem:[%s566 + $0x110] sm:$0xff]
      %v591 = vld [vmem:[%s566 + $0x120] sm:$0xff]
      %v592 = vld [vmem:[%s566 + $0x128] sm:$0xff]
      %v593 = vld [vmem:[%s566 + $0x138] sm:$0xff]
      %v594 = vld [vmem:[%s566 + $0x140] sm:$0xff]
      %v595 = vld [vmem:[%s566 + $0x150] sm:$0xff]
      %v596 = vld [vmem:[%s566 + $0x158] sm:$0xff]
      %v597 = vld [vmem:[%s566 + $0x168] sm:$0xff]
      %v598 = vld [vmem:[%s566 + $0x170] sm:$0xff]
      %v599 = vld [vmem:[%s566 + $0x1] sm:$0xff]
      %v600 = vld [vmem:[%s566 + $0x9] sm:$0xff]
      %v601 = vld [vmem:[%s566 + $0x19] sm:$0xff]
      %v602 = vld [vmem:[%s566 + $0x21] sm:$0xff]
      %v603 = vld [vmem:[%s566 + $0x31] sm:$0xff]
      %v604 = vld [vmem:[%s566 + $0x39] sm:$0xff]
      %v605 = vld [vmem:[%s566 + $0x49] sm:$0xff]
      %v606 = vld [vmem:[%s566 + $0x51] sm:$0xff]
      %v607 = vld [vmem:[%s566 + $0x61] sm:$0xff]
      %v608 = vld [vmem:[%s566 + $0x69] sm:$0xff]
      %v609 = vld [vmem:[%s566 + $0x79] sm:$0xff]
      %v610 = vld [vmem:[%s566 + $0x81] sm:$0xff]
      %v611 = vld [vmem:[%s566 + $0x91] sm:$0xff]
      %v612 = vld [vmem:[%s566 + $0x99] sm:$0xff]
      %v613 = vld [vmem:[%s566 + $0xa9] sm:$0xff]
      %v614 = vld [vmem:[%s566 + $0xb1] sm:$0xff]
      %v615 = vld [vmem:[%s566 + $0xc1] sm:$0xff]
      %v616 = vld [vmem:[%s566 + $0xc9] sm:$0xff]
      %v617 = vld [vmem:[%s566 + $0xd9] sm:$0xff]
      %v618 = vld [vmem:[%s566 + $0xe1] sm:$0xff]
      %v619 = vld [vmem:[%s566 + $0xf1] sm:$0xff]
      %v620 = vld [vmem:[%s566 + $0xf9] sm:$0xff]
      %v621 = vld [vmem:[%s566 + $0x109] sm:$0xff]
      %v622 = vld [vmem:[%s566 + $0x111] sm:$0xff]
      %v623 = vld [vmem:[%s566 + $0x121] sm:$0xff]
      %v624 = vld [vmem:[%s566 + $0x129] sm:$0xff]
      %v625 = vld [vmem:[%s566 + $0x139] sm:$0xff]
      %v626 = vld [vmem:[%s566 + $0x141] sm:$0xff]
      %v627 = vld [vmem:[%s566 + $0x151] sm:$0xff]
      %v628 = vld [vmem:[%s566 + $0x159] sm:$0xff]
      %v629 = vld [vmem:[%s566 + $0x169] sm:$0xff]
      %v630 = vld [vmem:[%s566 + $0x171] sm:$0xff]
      %s631 = sadd.s32 %s20, 1
      %s632 = smul.u32 %s631, 24
      %s633 = scalar_lea.vmem [#allocation2], %s632
      %v634 = vld [vmem:[%s633] sm:$0xff]
      %v635 = vld [vmem:[%s633 + $0x8] sm:$0xff]
      %v636 = vld [vmem:[%s633 + $0x18] sm:$0xff]
      %v637 = vld [vmem:[%s633 + $0x20] sm:$0xff]
      %v638 = vld [vmem:[%s633 + $0x30] sm:$0xff]
      %v639 = vld [vmem:[%s633 + $0x38] sm:$0xff]
      %v640 = vld [vmem:[%s633 + $0x48] sm:$0xff]
      %v641 = vld [vmem:[%s633 + $0x50] sm:$0xff]
      %v642 = vld [vmem:[%s633 + $0x60] sm:$0xff]
      %v643 = vld [vmem:[%s633 + $0x68] sm:$0xff]
      %v644 = vld [vmem:[%s633 + $0x78] sm:$0xff]
      %v645 = vld [vmem:[%s633 + $0x80] sm:$0xff]
      %v646 = vld [vmem:[%s633 + $0x90] sm:$0xff]
      %v647 = vld [vmem:[%s633 + $0x98] sm:$0xff]
      %v648 = vld [vmem:[%s633 + $0xa8] sm:$0xff]
      %v649 = vld [vmem:[%s633 + $0xb0] sm:$0xff]
      %v650 = vld [vmem:[%s633 + $0xc0] sm:$0xff]
      %v651 = vld [vmem:[%s633 + $0xc8] sm:$0xff]
      %v652 = vld [vmem:[%s633 + $0xd8] sm:$0xff]
      %v653 = vld [vmem:[%s633 + $0xe0] sm:$0xff]
      %v654 = vld [vmem:[%s633 + $0xf0] sm:$0xff]
      %v655 = vld [vmem:[%s633 + $0xf8] sm:$0xff]
      %v656 = vld [vmem:[%s633 + $0x108] sm:$0xff]
      %v657 = vld [vmem:[%s633 + $0x110] sm:$0xff]
      %v658 = vld [vmem:[%s633 + $0x120] sm:$0xff]
      %v659 = vld [vmem:[%s633 + $0x128] sm:$0xff]
      %v660 = vld [vmem:[%s633 + $0x138] sm:$0xff]
      %v661 = vld [vmem:[%s633 + $0x140] sm:$0xff]
      %v662 = vld [vmem:[%s633 + $0x150] sm:$0xff]
      %v663 = vld [vmem:[%s633 + $0x158] sm:$0xff]
      %v664 = vld [vmem:[%s633 + $0x168] sm:$0xff]
      %v665 = vld [vmem:[%s633 + $0x170] sm:$0xff]
      %v666 = vld [vmem:[%s633 + $0x1] sm:$0xff]
      %v667 = vld [vmem:[%s633 + $0x9] sm:$0xff]
      %v668 = vld [vmem:[%s633 + $0x19] sm:$0xff]
      %v669 = vld [vmem:[%s633 + $0x21] sm:$0xff]
      %v670 = vld [vmem:[%s633 + $0x31] sm:$0xff]
      %v671 = vld [vmem:[%s633 + $0x39] sm:$0xff]
      %v672 = vld [vmem:[%s633 + $0x49] sm:$0xff]
      %v673 = vld [vmem:[%s633 + $0x51] sm:$0xff]
      %v674 = vld [vmem:[%s633 + $0x61] sm:$0xff]
      %v675 = vld [vmem:[%s633 + $0x69] sm:$0xff]
      %v676 = vld [vmem:[%s633 + $0x79] sm:$0xff]
      %v677 = vld [vmem:[%s633 + $0x81] sm:$0xff]
      %v678 = vld [vmem:[%s633 + $0x91] sm:$0xff]
      %v679 = vld [vmem:[%s633 + $0x99] sm:$0xff]
      %v680 = vld [vmem:[%s633 + $0xa9] sm:$0xff]
      %v681 = vld [vmem:[%s633 + $0xb1] sm:$0xff]
      %v682 = vld [vmem:[%s633 + $0xc1] sm:$0xff]
      %v683 = vld [vmem:[%s633 + $0xc9] sm:$0xff]
      %v684 = vld [vmem:[%s633 + $0xd9] sm:$0xff]
      %v685 = vld [vmem:[%s633 + $0xe1] sm:$0xff]
      %v686 = vld [vmem:[%s633 + $0xf1] sm:$0xff]
      %v687 = vld [vmem:[%s633 + $0xf9] sm:$0xff]
      %v688 = vld [vmem:[%s633 + $0x109] sm:$0xff]
      %v689 = vld [vmem:[%s633 + $0x111] sm:$0xff]
      %v690 = vld [vmem:[%s633 + $0x121] sm:$0xff]
      %v691 = vld [vmem:[%s633 + $0x129] sm:$0xff]
      %v692 = vld [vmem:[%s633 + $0x139] sm:$0xff]
      %v693 = vld [vmem:[%s633 + $0x141] sm:$0xff]
      %v694 = vld [vmem:[%s633 + $0x151] sm:$0xff]
      %v695 = vld [vmem:[%s633 + $0x159] sm:$0xff]
      %v696 = vld [vmem:[%s633 + $0x169] sm:$0xff]
      %v697 = vld [vmem:[%s633 + $0x171] sm:$0xff]
      %s698 = scalar_lea.vmem [#allocation3], %s565
      %v699 = vld [vmem:[%s698] sm:$0xff]
      %v700 = vld [vmem:[%s698 + $0x8] sm:$0xff]
      %v701 = vld [vmem:[%s698 + $0x18] sm:$0xff]
      %v702 = vld [vmem:[%s698 + $0x20] sm:$0xff]
      %v703 = vld [vmem:[%s698 + $0x30] sm:$0xff]
      %v704 = vld [vmem:[%s698 + $0x38] sm:$0xff]
      %v705 = vld [vmem:[%s698 + $0x48] sm:$0xff]
      %v706 = vld [vmem:[%s698 + $0x50] sm:$0xff]
      %v707 = vld [vmem:[%s698 + $0x60] sm:$0xff]
      %v708 = vld [vmem:[%s698 + $0x68] sm:$0xff]
      %v709 = vld [vmem:[%s698 + $0x78] sm:$0xff]
      %v710 = vld [vmem:[%s698 + $0x80] sm:$0xff]
      %v711 = vld [vmem:[%s698 + $0x90] sm:$0xff]
      %v712 = vld [vmem:[%s698 + $0x98] sm:$0xff]
      %v713 = vld [vmem:[%s698 + $0xa8] sm:$0xff]
      %v714 = vld [vmem:[%s698 + $0xb0] sm:$0xff]
      %v715 = vld [vmem:[%s698 + $0xc0] sm:$0xff]
      %v716 = vld [vmem:[%s698 + $0xc8] sm:$0xff]
      %v717 = vld [vmem:[%s698 + $0xd8] sm:$0xff]
      %v718 = vld [vmem:[%s698 + $0xe0] sm:$0xff]
      %v719 = vld [vmem:[%s698 + $0xf0] sm:$0xff]
      %v720 = vld [vmem:[%s698 + $0xf8] sm:$0xff]
      %v721 = vld [vmem:[%s698 + $0x108] sm:$0xff]
      %v722 = vld [vmem:[%s698 + $0x110] sm:$0xff]
      %v723 = vld [vmem:[%s698 + $0x120] sm:$0xff]
      %v724 = vld [vmem:[%s698 + $0x128] sm:$0xff]
      %v725 = vld [vmem:[%s698 + $0x138] sm:$0xff]
      %v726 = vld [vmem:[%s698 + $0x140] sm:$0xff]
      %v727 = vld [vmem:[%s698 + $0x150] sm:$0xff]
      %v728 = vld [vmem:[%s698 + $0x158] sm:$0xff]
      %v729 = vld [vmem:[%s698 + $0x168] sm:$0xff]
      %v730 = vld [vmem:[%s698 + $0x170] sm:$0xff]
      %v731 = vld [vmem:[%s698 + $0x1] sm:$0xff]
      %v732 = vld [vmem:[%s698 + $0x9] sm:$0xff]
      %v733 = vld [vmem:[%s698 + $0x19] sm:$0xff]
      %v734 = vld [vmem:[%s698 + $0x21] sm:$0xff]
      %v735 = vld [vmem:[%s698 + $0x31] sm:$0xff]
      %v736 = vld [vmem:[%s698 + $0x39] sm:$0xff]
      %v737 = vld [vmem:[%s698 + $0x49] sm:$0xff]
      %v738 = vld [vmem:[%s698 + $0x51] sm:$0xff]
      %v739 = vld [vmem:[%s698 + $0x61] sm:$0xff]
      %v740 = vld [vmem:[%s698 + $0x69] sm:$0xff]
      %v741 = vld [vmem:[%s698 + $0x79] sm:$0xff]
      %v742 = vld [vmem:[%s698 + $0x81] sm:$0xff]
      %v743 = vld [vmem:[%s698 + $0x91] sm:$0xff]
      %v744 = vld [vmem:[%s698 + $0x99] sm:$0xff]
      %v745 = vld [vmem:[%s698 + $0xa9] sm:$0xff]
      %v746 = vld [vmem:[%s698 + $0xb1] sm:$0xff]
      %v747 = vld [vmem:[%s698 + $0xc1] sm:$0xff]
      %v748 = vld [vmem:[%s698 + $0xc9] sm:$0xff]
      %v749 = vld [vmem:[%s698 + $0xd9] sm:$0xff]
      %v750 = vld [vmem:[%s698 + $0xe1] sm:$0xff]
      %v751 = vld [vmem:[%s698 + $0xf1] sm:$0xff]
      %v752 = vld [vmem:[%s698 + $0xf9] sm:$0xff]
      %v753 = vld [vmem:[%s698 + $0x109] sm:$0xff]
      %v754 = vld [vmem:[%s698 + $0x111] sm:$0xff]
      %v755 = vld [vmem:[%s698 + $0x121] sm:$0xff]
      %v756 = vld [vmem:[%s698 + $0x129] sm:$0xff]
      %v757 = vld [vmem:[%s698 + $0x139] sm:$0xff]
      %v758 = vld [vmem:[%s698 + $0x141] sm:$0xff]
      %v759 = vld [vmem:[%s698 + $0x151] sm:$0xff]
      %v760 = vld [vmem:[%s698 + $0x159] sm:$0xff]
      %v761 = vld [vmem:[%s698 + $0x169] sm:$0xff]
      %v762 = vld [vmem:[%s698 + $0x171] sm:$0xff]
      %s763 = scalar_lea.vmem [#allocation3], %s632
      %v764 = vld [vmem:[%s763] sm:$0xff]
      %v765 = vld [vmem:[%s763 + $0x8] sm:$0xff]
      %v766 = vld [vmem:[%s763 + $0x18] sm:$0xff]
      %v767 = vld [vmem:[%s763 + $0x20] sm:$0xff]
      %v768 = vld [vmem:[%s763 + $0x30] sm:$0xff]
      %v769 = vld [vmem:[%s763 + $0x38] sm:$0xff]
      %v770 = vld [vmem:[%s763 + $0x48] sm:$0xff]
      %v771 = vld [vmem:[%s763 + $0x50] sm:$0xff]
      %v772 = vld [vmem:[%s763 + $0x60] sm:$0xff]
      %v773 = vld [vmem:[%s763 + $0x68] sm:$0xff]
      %v774 = vld [vmem:[%s763 + $0x78] sm:$0xff]
      %v775 = vld [vmem:[%s763 + $0x80] sm:$0xff]
      %v776 = vld [vmem:[%s763 + $0x90] sm:$0xff]
      %v777 = vld [vmem:[%s763 + $0x98] sm:$0xff]
      %v778 = vld [vmem:[%s763 + $0xa8] sm:$0xff]
      %v779 = vld [vmem:[%s763 + $0xb0] sm:$0xff]
      %v780 = vld [vmem:[%s763 + $0xc0] sm:$0xff]
      %v781 = vld [vmem:[%s763 + $0xc8] sm:$0xff]
      %v782 = vld [vmem:[%s763 + $0xd8] sm:$0xff]
      %v783 = vld [vmem:[%s763 + $0xe0] sm:$0xff]
      %v784 = vld [vmem:[%s763 + $0xf0] sm:$0xff]
      %v785 = vld [vmem:[%s763 + $0xf8] sm:$0xff]
      %v786 = vld [vmem:[%s763 + $0x108] sm:$0xff]
      %v787 = vld [vmem:[%s763 + $0x110] sm:$0xff]
      %v788 = vld [vmem:[%s763 + $0x120] sm:$0xff]
      %v789 = vld [vmem:[%s763 + $0x128] sm:$0xff]
      %v790 = vld [vmem:[%s763 + $0x138] sm:$0xff]
      %v791 = vld [vmem:[%s763 + $0x140] sm:$0xff]
      %v792 = vld [vmem:[%s763 + $0x150] sm:$0xff]
      %v793 = vld [vmem:[%s763 + $0x158] sm:$0xff]
      %v794 = vld [vmem:[%s763 + $0x168] sm:$0xff]
      %v795 = vld [vmem:[%s763 + $0x170] sm:$0xff]
      %v796 = vld [vmem:[%s763 + $0x1] sm:$0xff]
      %v797 = vld [vmem:[%s763 + $0x9] sm:$0xff]
      %v798 = vld [vmem:[%s763 + $0x19] sm:$0xff]
      %v799 = vld [vmem:[%s763 + $0x21] sm:$0xff]
      %v800 = vld [vmem:[%s763 + $0x31] sm:$0xff]
      %v801 = vld [vmem:[%s763 + $0x39] sm:$0xff]
      %v802 = vld [vmem:[%s763 + $0x49] sm:$0xff]
      %v803 = vld [vmem:[%s763 + $0x51] sm:$0xff]
      %v804 = vld [vmem:[%s763 + $0x61] sm:$0xff]
      %v805 = vld [vmem:[%s763 + $0x69] sm:$0xff]
      %v806 = vld [vmem:[%s763 + $0x79] sm:$0xff]
      %v807 = vld [vmem:[%s763 + $0x81] sm:$0xff]
      %v808 = vld [vmem:[%s763 + $0x91] sm:$0xff]
      %v809 = vld [vmem:[%s763 + $0x99] sm:$0xff]
      %v810 = vld [vmem:[%s763 + $0xa9] sm:$0xff]
      %v811 = vld [vmem:[%s763 + $0xb1] sm:$0xff]
      %v812 = vld [vmem:[%s763 + $0xc1] sm:$0xff]
      %v813 = vld [vmem:[%s763 + $0xc9] sm:$0xff]
      %v814 = vld [vmem:[%s763 + $0xd9] sm:$0xff]
      %v815 = vld [vmem:[%s763 + $0xe1] sm:$0xff]
      %v816 = vld [vmem:[%s763 + $0xf1] sm:$0xff]
      %v817 = vld [vmem:[%s763 + $0xf9] sm:$0xff]
      %v818 = vld [vmem:[%s763 + $0x109] sm:$0xff]
      %v819 = vld [vmem:[%s763 + $0x111] sm:$0xff]
      %v820 = vld [vmem:[%s763 + $0x121] sm:$0xff]
      %v821 = vld [vmem:[%s763 + $0x129] sm:$0xff]
      %v822 = vld [vmem:[%s763 + $0x139] sm:$0xff]
      %v823 = vld [vmem:[%s763 + $0x141] sm:$0xff]
      %v824 = vld [vmem:[%s763 + $0x151] sm:$0xff]
      %v825 = vld [vmem:[%s763 + $0x159] sm:$0xff]
      %v826 = vld [vmem:[%s763 + $0x169] sm:$0xff]
      %v827 = vld [vmem:[%s763 + $0x171] sm:$0xff]
      %860 = vrot.lane.b32.xlu0 %v599, 4
      %v861 = vpop.permute.xlu0 %860
      %862 = vrot.lane.b32.xlu0 %v600, 4
      %v863 = vpop.permute.xlu0 %862
      %864 = vrot.lane.b32.xlu0 %v601, 4
      %v865 = vpop.permute.xlu0 %864
      %866 = vrot.lane.b32.xlu0 %v602, 4
      %v867 = vpop.permute.xlu0 %866
      %868 = vrot.lane.b32.xlu0 %v603, 4
      %v869 = vpop.permute.xlu0 %868
      %870 = vrot.lane.b32.xlu0 %v604, 4
      %v871 = vpop.permute.xlu0 %870
      %872 = vrot.lane.b32.xlu0 %v605, 4
      %v873 = vpop.permute.xlu0 %872
      %874 = vrot.lane.b32.xlu0 %v606, 4
      %v875 = vpop.permute.xlu0 %874
      %876 = vrot.lane.b32.xlu0 %v607, 4
      %v877 = vpop.permute.xlu0 %876
      %878 = vrot.lane.b32.xlu0 %v608, 4
      %v879 = vpop.permute.xlu0 %878
      %880 = vrot.lane.b32.xlu0 %v609, 4
      %v881 = vpop.permute.xlu0 %880
      %882 = vrot.lane.b32.xlu0 %v610, 4
      %v883 = vpop.permute.xlu0 %882
      %884 = vrot.lane.b32.xlu0 %v611, 4
      %v885 = vpop.permute.xlu0 %884
      %886 = vrot.lane.b32.xlu0 %v612, 4
      %v887 = vpop.permute.xlu0 %886
      %888 = vrot.lane.b32.xlu0 %v613, 4
      %v889 = vpop.permute.xlu0 %888
      %890 = vrot.lane.b32.xlu0 %v614, 4
      %v891 = vpop.permute.xlu0 %890
      %892 = vrot.lane.b32.xlu0 %v615, 4
      %v893 = vpop.permute.xlu0 %892
      %894 = vrot.lane.b32.xlu0 %v616, 4
      %v895 = vpop.permute.xlu0 %894
      %896 = vrot.lane.b32.xlu0 %v617, 4
      %v897 = vpop.permute.xlu0 %896
      %898 = vrot.lane.b32.xlu0 %v618, 4
      %v899 = vpop.permute.xlu0 %898
      %900 = vrot.lane.b32.xlu0 %v619, 4
      %v901 = vpop.permute.xlu0 %900
      %902 = vrot.lane.b32.xlu0 %v620, 4
      %v903 = vpop.permute.xlu0 %902
      %904 = vrot.lane.b32.xlu0 %v621, 4
      %v905 = vpop.permute.xlu0 %904
      %906 = vrot.lane.b32.xlu0 %v622, 4
      %v907 = vpop.permute.xlu0 %906
      %908 = vrot.lane.b32.xlu0 %v623, 4
      %v909 = vpop.permute.xlu0 %908
      %910 = vrot.lane.b32.xlu0 %v624, 4
      %v911 = vpop.permute.xlu0 %910
      %912 = vrot.lane.b32.xlu0 %v625, 4
      %v913 = vpop.permute.xlu0 %912
      %914 = vrot.lane.b32.xlu0 %v626, 4
      %v915 = vpop.permute.xlu0 %914
      %916 = vrot.lane.b32.xlu0 %v627, 4
      %v917 = vpop.permute.xlu0 %916
      %918 = vrot.lane.b32.xlu0 %v628, 4
      %v919 = vpop.permute.xlu0 %918
      %920 = vrot.lane.b32.xlu0 %v629, 4
      %v921 = vpop.permute.xlu0 %920
      %922 = vrot.lane.b32.xlu0 %v630, 4
      %v923 = vpop.permute.xlu0 %922
      %988 = vrot.lane.b32.xlu0 %v634, 8
      %v989 = vpop.permute.xlu0 %988
      %990 = vrot.lane.b32.xlu0 %v635, 8
      %v991 = vpop.permute.xlu0 %990
      %992 = vrot.lane.b32.xlu0 %v636, 8
      %v993 = vpop.permute.xlu0 %992
      %994 = vrot.lane.b32.xlu0 %v637, 8
      %v995 = vpop.permute.xlu0 %994
      %996 = vrot.lane.b32.xlu0 %v638, 8
      %v997 = vpop.permute.xlu0 %996
      %998 = vrot.lane.b32.xlu0 %v639, 8
      %v999 = vpop.permute.xlu0 %998
      %1000 = vrot.lane.b32.xlu0 %v640, 8
      %v1001 = vpop.permute.xlu0 %1000
      %1002 = vrot.lane.b32.xlu0 %v641, 8
      %v1003 = vpop.permute.xlu0 %1002
      %1004 = vrot.lane.b32.xlu0 %v642, 8
      %v1005 = vpop.permute.xlu0 %1004
      %1006 = vrot.lane.b32.xlu0 %v643, 8
      %v1007 = vpop.permute.xlu0 %1006
      %1008 = vrot.lane.b32.xlu0 %v644, 8
      %v1009 = vpop.permute.xlu0 %1008
      %1010 = vrot.lane.b32.xlu0 %v645, 8
      %v1011 = vpop.permute.xlu0 %1010
      %1012 = vrot.lane.b32.xlu0 %v646, 8
      %v1013 = vpop.permute.xlu0 %1012
      %1014 = vrot.lane.b32.xlu0 %v647, 8
      %v1015 = vpop.permute.xlu0 %1014
      %1016 = vrot.lane.b32.xlu0 %v648, 8
      %v1017 = vpop.permute.xlu0 %1016
      %1018 = vrot.lane.b32.xlu0 %v649, 8
      %v1019 = vpop.permute.xlu0 %1018
      %1020 = vrot.lane.b32.xlu0 %v650, 8
      %v1021 = vpop.permute.xlu0 %1020
      %1022 = vrot.lane.b32.xlu0 %v651, 8
      %v1023 = vpop.permute.xlu0 %1022
      %1024 = vrot.lane.b32.xlu0 %v652, 8
      %v1025 = vpop.permute.xlu0 %1024
      %1026 = vrot.lane.b32.xlu0 %v653, 8
      %v1027 = vpop.permute.xlu0 %1026
      %1028 = vrot.lane.b32.xlu0 %v654, 8
      %v1029 = vpop.permute.xlu0 %1028
      %1030 = vrot.lane.b32.xlu0 %v655, 8
      %v1031 = vpop.permute.xlu0 %1030
      %1032 = vrot.lane.b32.xlu0 %v656, 8
      %v1033 = vpop.permute.xlu0 %1032
      %1034 = vrot.lane.b32.xlu0 %v657, 8
      %v1035 = vpop.permute.xlu0 %1034
      %1036 = vrot.lane.b32.xlu0 %v658, 8
      %v1037 = vpop.permute.xlu0 %1036
      %1038 = vrot.lane.b32.xlu0 %v659, 8
      %v1039 = vpop.permute.xlu0 %1038
      %1040 = vrot.lane.b32.xlu0 %v660, 8
      %v1041 = vpop.permute.xlu0 %1040
      %1042 = vrot.lane.b32.xlu0 %v661, 8
      %v1043 = vpop.permute.xlu0 %1042
      %1044 = vrot.lane.b32.xlu0 %v662, 8
      %v1045 = vpop.permute.xlu0 %1044
      %1046 = vrot.lane.b32.xlu0 %v663, 8
      %v1047 = vpop.permute.xlu0 %1046
      %1048 = vrot.lane.b32.xlu0 %v664, 8
      %v1049 = vpop.permute.xlu0 %1048
      %1050 = vrot.lane.b32.xlu0 %v665, 8
      %v1051 = vpop.permute.xlu0 %1050
      %1116 = vrot.lane.b32.xlu0 %v666, 12
      %v1117 = vpop.permute.xlu0 %1116
      %1118 = vrot.lane.b32.xlu0 %v667, 12
      %v1119 = vpop.permute.xlu0 %1118
      %1120 = vrot.lane.b32.xlu0 %v668, 12
      %v1121 = vpop.permute.xlu0 %1120
      %1122 = vrot.lane.b32.xlu0 %v669, 12
      %v1123 = vpop.permute.xlu0 %1122
      %1124 = vrot.lane.b32.xlu0 %v670, 12
      %v1125 = vpop.permute.xlu0 %1124
      %1126 = vrot.lane.b32.xlu0 %v671, 12
      %v1127 = vpop.permute.xlu0 %1126
      %1128 = vrot.lane.b32.xlu0 %v672, 12
      %v1129 = vpop.permute.xlu0 %1128
      %1130 = vrot.lane.b32.xlu0 %v673, 12
      %v1131 = vpop.permute.xlu0 %1130
      %1132 = vrot.lane.b32.xlu0 %v674, 12
      %v1133 = vpop.permute.xlu0 %1132
      %1134 = vrot.lane.b32.xlu0 %v675, 12
      %v1135 = vpop.permute.xlu0 %1134
      %1136 = vrot.lane.b32.xlu0 %v676, 12
      %v1137 = vpop.permute.xlu0 %1136
      %1138 = vrot.lane.b32.xlu0 %v677, 12
      %v1139 = vpop.permute.xlu0 %1138
      %1140 = vrot.lane.b32.xlu0 %v678, 12
      %v1141 = vpop.permute.xlu0 %1140
      %1142 = vrot.lane.b32.xlu0 %v679, 12
      %v1143 = vpop.permute.xlu0 %1142
      %1144 = vrot.lane.b32.xlu0 %v680, 12
      %v1145 = vpop.permute.xlu0 %1144
      %1146 = vrot.lane.b32.xlu0 %v681, 12
      %v1147 = vpop.permute.xlu0 %1146
      %1148 = vrot.lane.b32.xlu0 %v682, 12
      %v1149 = vpop.permute.xlu0 %1148
      %1150 = vrot.lane.b32.xlu0 %v683, 12
      %v1151 = vpop.permute.xlu0 %1150
      %1152 = vrot.lane.b32.xlu0 %v684, 12
      %v1153 = vpop.permute.xlu0 %1152
      %1154 = vrot.lane.b32.xlu0 %v685, 12
      %v1155 = vpop.permute.xlu0 %1154
      %1156 = vrot.lane.b32.xlu0 %v686, 12
      %v1157 = vpop.permute.xlu0 %1156
      %1158 = vrot.lane.b32.xlu0 %v687, 12
      %v1159 = vpop.permute.xlu0 %1158
      %1160 = vrot.lane.b32.xlu0 %v688, 12
      %v1161 = vpop.permute.xlu0 %1160
      %1162 = vrot.lane.b32.xlu0 %v689, 12
      %v1163 = vpop.permute.xlu0 %1162
      %1164 = vrot.lane.b32.xlu0 %v690, 12
      %v1165 = vpop.permute.xlu0 %1164
      %1166 = vrot.lane.b32.xlu0 %v691, 12
      %v1167 = vpop.permute.xlu0 %1166
      %1168 = vrot.lane.b32.xlu0 %v692, 12
      %v1169 = vpop.permute.xlu0 %1168
      %1170 = vrot.lane.b32.xlu0 %v693, 12
      %v1171 = vpop.permute.xlu0 %1170
      %1172 = vrot.lane.b32.xlu0 %v694, 12
      %v1173 = vpop.permute.xlu0 %1172
      %1174 = vrot.lane.b32.xlu0 %v695, 12
      %v1175 = vpop.permute.xlu0 %1174
      %1176 = vrot.lane.b32.xlu0 %v696, 12
      %v1177 = vpop.permute.xlu0 %1176
      %1178 = vrot.lane.b32.xlu0 %v697, 12
      %v1179 = vpop.permute.xlu0 %1178
      %1244 = vrot.lane.b32.xlu0 %v699, 16
      %v1245 = vpop.permute.xlu0 %1244
      %1246 = vrot.lane.b32.xlu0 %v700, 16
      %v1247 = vpop.permute.xlu0 %1246
      %1248 = vrot.lane.b32.xlu0 %v701, 16
      %v1249 = vpop.permute.xlu0 %1248
      %1250 = vrot.lane.b32.xlu0 %v702, 16
      %v1251 = vpop.permute.xlu0 %1250
      %1252 = vrot.lane.b32.xlu0 %v703, 16
      %v1253 = vpop.permute.xlu0 %1252
      %1254 = vrot.lane.b32.xlu0 %v704, 16
      %v1255 = vpop.permute.xlu0 %1254
      %1256 = vrot.lane.b32.xlu0 %v705, 16
      %v1257 = vpop.permute.xlu0 %1256
      %1258 = vrot.lane.b32.xlu0 %v706, 16
      %v1259 = vpop.permute.xlu0 %1258
      %1260 = vrot.lane.b32.xlu0 %v707, 16
      %v1261 = vpop.permute.xlu0 %1260
      %1262 = vrot.lane.b32.xlu0 %v708, 16
      %v1263 = vpop.permute.xlu0 %1262
      %1264 = vrot.lane.b32.xlu0 %v709, 16
      %v1265 = vpop.permute.xlu0 %1264
      %1266 = vrot.lane.b32.xlu0 %v710, 16
      %v1267 = vpop.permute.xlu0 %1266
      %1268 = vrot.lane.b32.xlu0 %v711, 16
      %v1269 = vpop.permute.xlu0 %1268
      %1270 = vrot.lane.b32.xlu0 %v712, 16
      %v1271 = vpop.permute.xlu0 %1270
      %1272 = vrot.lane.b32.xlu0 %v713, 16
      %v1273 = vpop.permute.xlu0 %1272
      %1274 = vrot.lane.b32.xlu0 %v714, 16
      %v1275 = vpop.permute.xlu0 %1274
      %1276 = vrot.lane.b32.xlu0 %v715, 16
      %v1277 = vpop.permute.xlu0 %1276
      %1278 = vrot.lane.b32.xlu0 %v716, 16
      %v1279 = vpop.permute.xlu0 %1278
      %1280 = vrot.lane.b32.xlu0 %v717, 16
      %v1281 = vpop.permute.xlu0 %1280
      %1282 = vrot.lane.b32.xlu0 %v718, 16
      %v1283 = vpop.permute.xlu0 %1282
      %1284 = vrot.lane.b32.xlu0 %v719, 16
      %v1285 = vpop.permute.xlu0 %1284
      %1286 = vrot.lane.b32.xlu0 %v720, 16
      %v1287 = vpop.permute.xlu0 %1286
      %1288 = vrot.lane.b32.xlu0 %v721, 16
      %v1289 = vpop.permute.xlu0 %1288
      %1290 = vrot.lane.b32.xlu0 %v722, 16
      %v1291 = vpop.permute.xlu0 %1290
      %1292 = vrot.lane.b32.xlu0 %v723, 16
      %v1293 = vpop.permute.xlu0 %1292
      %1294 = vrot.lane.b32.xlu0 %v724, 16
      %v1295 = vpop.permute.xlu0 %1294
      %1296 = vrot.lane.b32.xlu0 %v725, 16
      %v1297 = vpop.permute.xlu0 %1296
      %1298 = vrot.lane.b32.xlu0 %v726, 16
      %v1299 = vpop.permute.xlu0 %1298
      %1300 = vrot.lane.b32.xlu0 %v727, 16
      %v1301 = vpop.permute.xlu0 %1300
      %1302 = vrot.lane.b32.xlu0 %v728, 16
      %v1303 = vpop.permute.xlu0 %1302
      %1304 = vrot.lane.b32.xlu0 %v729, 16
      %v1305 = vpop.permute.xlu0 %1304
      %1306 = vrot.lane.b32.xlu0 %v730, 16
      %v1307 = vpop.permute.xlu0 %1306
      %1372 = vrot.lane.b32.xlu0 %v731, 20
      %v1373 = vpop.permute.xlu0 %1372
      %1374 = vrot.lane.b32.xlu0 %v732, 20
      %v1375 = vpop.permute.xlu0 %1374
      %1376 = vrot.lane.b32.xlu0 %v733, 20
      %v1377 = vpop.permute.xlu0 %1376
      %1378 = vrot.lane.b32.xlu0 %v734, 20
      %v1379 = vpop.permute.xlu0 %1378
      %1380 = vrot.lane.b32.xlu0 %v735, 20
      %v1381 = vpop.permute.xlu0 %1380
      %1382 = vrot.lane.b32.xlu0 %v736, 20
      %v1383 = vpop.permute.xlu0 %1382
      %1384 = vrot.lane.b32.xlu0 %v737, 20
      %v1385 = vpop.permute.xlu0 %1384
      %1386 = vrot.lane.b32.xlu0 %v738, 20
      %v1387 = vpop.permute.xlu0 %1386
      %1388 = vrot.lane.b32.xlu0 %v739, 20
      %v1389 = vpop.permute.xlu0 %1388
      %1390 = vrot.lane.b32.xlu0 %v740, 20
      %v1391 = vpop.permute.xlu0 %1390
      %1392 = vrot.lane.b32.xlu0 %v741, 20
      %v1393 = vpop.permute.xlu0 %1392
      %1394 = vrot.lane.b32.xlu0 %v742, 20
      %v1395 = vpop.permute.xlu0 %1394
      %1396 = vrot.lane.b32.xlu0 %v743, 20
      %v1397 = vpop.permute.xlu0 %1396
      %1398 = vrot.lane.b32.xlu0 %v744, 20
      %v1399 = vpop.permute.xlu0 %1398
      %1400 = vrot.lane.b32.xlu0 %v745, 20
      %v1401 = vpop.permute.xlu0 %1400
      %1402 = vrot.lane.b32.xlu0 %v746, 20
      %v1403 = vpop.permute.xlu0 %1402
      %1404 = vrot.lane.b32.xlu0 %v747, 20
      %v1405 = vpop.permute.xlu0 %1404
      %1406 = vrot.lane.b32.xlu0 %v748, 20
      %v1407 = vpop.permute.xlu0 %1406
      %1408 = vrot.lane.b32.xlu0 %v749, 20
      %v1409 = vpop.permute.xlu0 %1408
      %1410 = vrot.lane.b32.xlu0 %v750, 20
      %v1411 = vpop.permute.xlu0 %1410
      %1412 = vrot.lane.b32.xlu0 %v751, 20
      %v1413 = vpop.permute.xlu0 %1412
      %1414 = vrot.lane.b32.xlu0 %v752, 20
      %v1415 = vpop.permute.xlu0 %1414
      %1416 = vrot.lane.b32.xlu0 %v753, 20
      %v1417 = vpop.permute.xlu0 %1416
      %1418 = vrot.lane.b32.xlu0 %v754, 20
      %v1419 = vpop.permute.xlu0 %1418
      %1420 = vrot.lane.b32.xlu0 %v755, 20
      %v1421 = vpop.permute.xlu0 %1420
      %1422 = vrot.lane.b32.xlu0 %v756, 20
      %v1423 = vpop.permute.xlu0 %1422
      %1424 = vrot.lane.b32.xlu0 %v757, 20
      %v1425 = vpop.permute.xlu0 %1424
      %1426 = vrot.lane.b32.xlu0 %v758, 20
      %v1427 = vpop.permute.xlu0 %1426
      %1428 = vrot.lane.b32.xlu0 %v759, 20
      %v1429 = vpop.permute.xlu0 %1428
      %1430 = vrot.lane.b32.xlu0 %v760, 20
      %v1431 = vpop.permute.xlu0 %1430
      %1432 = vrot.lane.b32.xlu0 %v761, 20
      %v1433 = vpop.permute.xlu0 %1432
      %1434 = vrot.lane.b32.xlu0 %v762, 20
      %v1435 = vpop.permute.xlu0 %1434
      %1500 = vrot.lane.b32.xlu0 %v764, 24
      %v1501 = vpop.permute.xlu0 %1500
      %1502 = vrot.lane.b32.xlu0 %v765, 24
      %v1503 = vpop.permute.xlu0 %1502
      %1504 = vrot.lane.b32.xlu0 %v766, 24
      %v1505 = vpop.permute.xlu0 %1504
      %1506 = vrot.lane.b32.xlu0 %v767, 24
      %v1507 = vpop.permute.xlu0 %1506
      %1508 = vrot.lane.b32.xlu0 %v768, 24
      %v1509 = vpop.permute.xlu0 %1508
      %1510 = vrot.lane.b32.xlu0 %v769, 24
      %v1511 = vpop.permute.xlu0 %1510
      %1512 = vrot.lane.b32.xlu0 %v770, 24
      %v1513 = vpop.permute.xlu0 %1512
      %1514 = vrot.lane.b32.xlu0 %v771, 24
      %v1515 = vpop.permute.xlu0 %1514
      %1516 = vrot.lane.b32.xlu0 %v772, 24
      %v1517 = vpop.permute.xlu0 %1516
      %1518 = vrot.lane.b32.xlu0 %v773, 24
      %v1519 = vpop.permute.xlu0 %1518
      %1520 = vrot.lane.b32.xlu0 %v774, 24
      %v1521 = vpop.permute.xlu0 %1520
      %1522 = vrot.lane.b32.xlu0 %v775, 24
      %v1523 = vpop.permute.xlu0 %1522
      %1524 = vrot.lane.b32.xlu0 %v776, 24
      %v1525 = vpop.permute.xlu0 %1524
      %1526 = vrot.lane.b32.xlu0 %v777, 24
      %v1527 = vpop.permute.xlu0 %1526
      %1528 = vrot.lane.b32.xlu0 %v778, 24
      %v1529 = vpop.permute.xlu0 %1528
      %1530 = vrot.lane.b32.xlu0 %v779, 24
      %v1531 = vpop.permute.xlu0 %1530
      %1532 = vrot.lane.b32.xlu0 %v780, 24
      %v1533 = vpop.permute.xlu0 %1532
      %1534 = vrot.lane.b32.xlu0 %v781, 24
      %v1535 = vpop.permute.xlu0 %1534
      %1536 = vrot.lane.b32.xlu0 %v782, 24
      %v1537 = vpop.permute.xlu0 %1536
      %1538 = vrot.lane.b32.xlu0 %v783, 24
      %v1539 = vpop.permute.xlu0 %1538
      %1540 = vrot.lane.b32.xlu0 %v784, 24
      %v1541 = vpop.permute.xlu0 %1540
      %1542 = vrot.lane.b32.xlu0 %v785, 24
      %v1543 = vpop.permute.xlu0 %1542
      %1544 = vrot.lane.b32.xlu0 %v786, 24
      %v1545 = vpop.permute.xlu0 %1544
      %1546 = vrot.lane.b32.xlu0 %v787, 24
      %v1547 = vpop.permute.xlu0 %1546
      %1548 = vrot.lane.b32.xlu0 %v788, 24
      %v1549 = vpop.permute.xlu0 %1548
      %1550 = vrot.lane.b32.xlu0 %v789, 24
      %v1551 = vpop.permute.xlu0 %1550
      %1552 = vrot.lane.b32.xlu0 %v790, 24
      %v1553 = vpop.permute.xlu0 %1552
      %1554 = vrot.lane.b32.xlu0 %v791, 24
      %v1555 = vpop.permute.xlu0 %1554
      %1556 = vrot.lane.b32.xlu0 %v792, 24
      %v1557 = vpop.permute.xlu0 %1556
      %1558 = vrot.lane.b32.xlu0 %v793, 24
      %v1559 = vpop.permute.xlu0 %1558
      %1560 = vrot.lane.b32.xlu0 %v794, 24
      %v1561 = vpop.permute.xlu0 %1560
      %1562 = vrot.lane.b32.xlu0 %v795, 24
      %v1563 = vpop.permute.xlu0 %1562
      %1628 = vrot.lane.b32.xlu0 %v796, 28
      %v1629 = vpop.permute.xlu0 %1628
      %1630 = vrot.lane.b32.xlu0 %v797, 28
      %v1631 = vpop.permute.xlu0 %1630
      %1632 = vrot.lane.b32.xlu0 %v798, 28
      %v1633 = vpop.permute.xlu0 %1632
      %1634 = vrot.lane.b32.xlu0 %v799, 28
      %v1635 = vpop.permute.xlu0 %1634
      %1636 = vrot.lane.b32.xlu0 %v800, 28
      %v1637 = vpop.permute.xlu0 %1636
      %1638 = vrot.lane.b32.xlu0 %v801, 28
      %v1639 = vpop.permute.xlu0 %1638
      %1640 = vrot.lane.b32.xlu0 %v802, 28
      %v1641 = vpop.permute.xlu0 %1640
      %1642 = vrot.lane.b32.xlu0 %v803, 28
      %v1643 = vpop.permute.xlu0 %1642
      %1644 = vrot.lane.b32.xlu0 %v804, 28
      %v1645 = vpop.permute.xlu0 %1644
      %1646 = vrot.lane.b32.xlu0 %v805, 28
      %v1647 = vpop.permute.xlu0 %1646
      %1648 = vrot.lane.b32.xlu0 %v806, 28
      %v1649 = vpop.permute.xlu0 %1648
      %1650 = vrot.lane.b32.xlu0 %v807, 28
      %v1651 = vpop.permute.xlu0 %1650
      %1652 = vrot.lane.b32.xlu0 %v808, 28
      %v1653 = vpop.permute.xlu0 %1652
      %1654 = vrot.lane.b32.xlu0 %v809, 28
      %v1655 = vpop.permute.xlu0 %1654
      %1656 = vrot.lane.b32.xlu0 %v810, 28
      %v1657 = vpop.permute.xlu0 %1656
      %1658 = vrot.lane.b32.xlu0 %v811, 28
      %v1659 = vpop.permute.xlu0 %1658
      %1660 = vrot.lane.b32.xlu0 %v812, 28
      %v1661 = vpop.permute.xlu0 %1660
      %1662 = vrot.lane.b32.xlu0 %v813, 28
      %v1663 = vpop.permute.xlu0 %1662
      %1664 = vrot.lane.b32.xlu0 %v814, 28
      %v1665 = vpop.permute.xlu0 %1664
      %1666 = vrot.lane.b32.xlu0 %v815, 28
      %v1667 = vpop.permute.xlu0 %1666
      %1668 = vrot.lane.b32.xlu0 %v816, 28
      %v1669 = vpop.permute.xlu0 %1668
      %1670 = vrot.lane.b32.xlu0 %v817, 28
      %v1671 = vpop.permute.xlu0 %1670
      %1672 = vrot.lane.b32.xlu0 %v818, 28
      %v1673 = vpop.permute.xlu0 %1672
      %1674 = vrot.lane.b32.xlu0 %v819, 28
      %v1675 = vpop.permute.xlu0 %1674
      %1676 = vrot.lane.b32.xlu0 %v820, 28
      %v1677 = vpop.permute.xlu0 %1676
      %1678 = vrot.lane.b32.xlu0 %v821, 28
      %v1679 = vpop.permute.xlu0 %1678
      %1680 = vrot.lane.b32.xlu0 %v822, 28
      %v1681 = vpop.permute.xlu0 %1680
      %1682 = vrot.lane.b32.xlu0 %v823, 28
      %v1683 = vpop.permute.xlu0 %1682
      %1684 = vrot.lane.b32.xlu0 %v824, 28
      %v1685 = vpop.permute.xlu0 %1684
      %1686 = vrot.lane.b32.xlu0 %v825, 28
      %v1687 = vpop.permute.xlu0 %1686
      %1688 = vrot.lane.b32.xlu0 %v826, 28
      %v1689 = vpop.permute.xlu0 %1688
      %1690 = vrot.lane.b32.xlu0 %v827, 28
      %v1691 = vpop.permute.xlu0 %1690
      %v1724 = vsel %vm261, %v567, %v861
      %v1725 = vsel %vm261, %v568, %v863
      %v1726 = vsel %vm261, %v569, %v865
      %v1727 = vsel %vm261, %v570, %v867
      %v1728 = vsel %vm261, %v571, %v869
      %v1729 = vsel %vm261, %v572, %v871
      %v1730 = vsel %vm261, %v573, %v873
      %v1731 = vsel %vm261, %v574, %v875
      %v1732 = vsel %vm261, %v575, %v877
      %v1733 = vsel %vm261, %v576, %v879
      %v1734 = vsel %vm261, %v577, %v881
      %v1735 = vsel %vm261, %v578, %v883
      %v1736 = vsel %vm261, %v579, %v885
      %v1737 = vsel %vm261, %v580, %v887
      %v1738 = vsel %vm261, %v581, %v889
      %v1739 = vsel %vm261, %v582, %v891
      %v1740 = vsel %vm261, %v583, %v893
      %v1741 = vsel %vm261, %v584, %v895
      %v1742 = vsel %vm261, %v585, %v897
      %v1743 = vsel %vm261, %v586, %v899
      %v1744 = vsel %vm261, %v587, %v901
      %v1745 = vsel %vm261, %v588, %v903
      %v1746 = vsel %vm261, %v589, %v905
      %v1747 = vsel %vm261, %v590, %v907
      %v1748 = vsel %vm261, %v591, %v909
      %v1749 = vsel %vm261, %v592, %v911
      %v1750 = vsel %vm261, %v593, %v913
      %v1751 = vsel %vm261, %v594, %v915
      %v1752 = vsel %vm261, %v595, %v917
      %v1753 = vsel %vm261, %v596, %v919
      %v1754 = vsel %vm261, %v597, %v921
      %v1755 = vsel %vm261, %v598, %v923
      %vm1756 = vcmask 64512
      %v1757 = vsel %vm1756, %v1724, %v989
      %v1758 = vsel %vm1756, %v1725, %v991
      %v1759 = vsel %vm1756, %v1726, %v993
      %v1760 = vsel %vm1756, %v1727, %v995
      %v1761 = vsel %vm1756, %v1728, %v997
      %v1762 = vsel %vm1756, %v1729, %v999
      %v1763 = vsel %vm1756, %v1730, %v1001
      %v1764 = vsel %vm1756, %v1731, %v1003
      %v1765 = vsel %vm1756, %v1732, %v1005
      %v1766 = vsel %vm1756, %v1733, %v1007
      %v1767 = vsel %vm1756, %v1734, %v1009
      %v1768 = vsel %vm1756, %v1735, %v1011
      %v1769 = vsel %vm1756, %v1736, %v1013
      %v1770 = vsel %vm1756, %v1737, %v1015
      %v1771 = vsel %vm1756, %v1738, %v1017
      %v1772 = vsel %vm1756, %v1739, %v1019
      %v1773 = vsel %vm1756, %v1740, %v1021
      %v1774 = vsel %vm1756, %v1741, %v1023
      %v1775 = vsel %vm1756, %v1742, %v1025
      %v1776 = vsel %vm1756, %v1743, %v1027
      %v1777 = vsel %vm1756, %v1744, %v1029
      %v1778 = vsel %vm1756, %v1745, %v1031
      %v1779 = vsel %vm1756, %v1746, %v1033
      %v1780 = vsel %vm1756, %v1747, %v1035
      %v1781 = vsel %vm1756, %v1748, %v1037
      %v1782 = vsel %vm1756, %v1749, %v1039
      %v1783 = vsel %vm1756, %v1750, %v1041
      %v1784 = vsel %vm1756, %v1751, %v1043
      %v1785 = vsel %vm1756, %v1752, %v1045
      %v1786 = vsel %vm1756, %v1753, %v1047
      %v1787 = vsel %vm1756, %v1754, %v1049
      %v1788 = vsel %vm1756, %v1755, %v1051
      %vm1789 = vcmask 97280
      %v1790 = vsel %vm1789, %v1757, %v1117
      %v1791 = vsel %vm1789, %v1758, %v1119
      %v1792 = vsel %vm1789, %v1759, %v1121
      %v1793 = vsel %vm1789, %v1760, %v1123
      %v1794 = vsel %vm1789, %v1761, %v1125
      %v1795 = vsel %vm1789, %v1762, %v1127
      %v1796 = vsel %vm1789, %v1763, %v1129
      %v1797 = vsel %vm1789, %v1764, %v1131
      %v1798 = vsel %vm1789, %v1765, %v1133
      %v1799 = vsel %vm1789, %v1766, %v1135
      %v1800 = vsel %vm1789, %v1767, %v1137
      %v1801 = vsel %vm1789, %v1768, %v1139
      %v1802 = vsel %vm1789, %v1769, %v1141
      %v1803 = vsel %vm1789, %v1770, %v1143
      %v1804 = vsel %vm1789, %v1771, %v1145
      %v1805 = vsel %vm1789, %v1772, %v1147
      %v1806 = vsel %vm1789, %v1773, %v1149
      %v1807 = vsel %vm1789, %v1774, %v1151
      %v1808 = vsel %vm1789, %v1775, %v1153
      %v1809 = vsel %vm1789, %v1776, %v1155
      %v1810 = vsel %vm1789, %v1777, %v1157
      %v1811 = vsel %vm1789, %v1778, %v1159
      %v1812 = vsel %vm1789, %v1779, %v1161
      %v1813 = vsel %vm1789, %v1780, %v1163
      %v1814 = vsel %vm1789, %v1781, %v1165
      %v1815 = vsel %vm1789, %v1782, %v1167
      %v1816 = vsel %vm1789, %v1783, %v1169
      %v1817 = vsel %vm1789, %v1784, %v1171
      %v1818 = vsel %vm1789, %v1785, %v1173
      %v1819 = vsel %vm1789, %v1786, %v1175
      %v1820 = vsel %vm1789, %v1787, %v1177
      %v1821 = vsel %vm1789, %v1788, %v1179
      %vm1822 = vcmask 130048
      %v1823 = vsel %vm1822, %v1790, %v1245
      %v1824 = vsel %vm1822, %v1791, %v1247
      %v1825 = vsel %vm1822, %v1792, %v1249
      %v1826 = vsel %vm1822, %v1793, %v1251
      %v1827 = vsel %vm1822, %v1794, %v1253
      %v1828 = vsel %vm1822, %v1795, %v1255
      %v1829 = vsel %vm1822, %v1796, %v1257
      %v1830 = vsel %vm1822, %v1797, %v1259
      %v1831 = vsel %vm1822, %v1798, %v1261
      %v1832 = vsel %vm1822, %v1799, %v1263
      %v1833 = vsel %vm1822, %v1800, %v1265
      %v1834 = vsel %vm1822, %v1801, %v1267
      %v1835 = vsel %vm1822, %v1802, %v1269
      %v1836 = vsel %vm1822, %v1803, %v1271
      %v1837 = vsel %vm1822, %v1804, %v1273
      %v1838 = vsel %vm1822, %v1805, %v1275
      %v1839 = vsel %vm1822, %v1806, %v1277
      %v1840 = vsel %vm1822, %v1807, %v1279
      %v1841 = vsel %vm1822, %v1808, %v1281
      %v1842 = vsel %vm1822, %v1809, %v1283
      %v1843 = vsel %vm1822, %v1810, %v1285
      %v1844 = vsel %vm1822, %v1811, %v1287
      %v1845 = vsel %vm1822, %v1812, %v1289
      %v1846 = vsel %vm1822, %v1813, %v1291
      %v1847 = vsel %vm1822, %v1814, %v1293
      %v1848 = vsel %vm1822, %v1815, %v1295
      %v1849 = vsel %vm1822, %v1816, %v1297
      %v1850 = vsel %vm1822, %v1817, %v1299
      %v1851 = vsel %vm1822, %v1818, %v1301
      %v1852 = vsel %vm1822, %v1819, %v1303
      %v1853 = vsel %vm1822, %v1820, %v1305
      %v1854 = vsel %vm1822, %v1821, %v1307
      %vm1855 = vcmask 162816
      %v1856 = vsel %vm1855, %v1823, %v1373
      %v1857 = vsel %vm1855, %v1824, %v1375
      %v1858 = vsel %vm1855, %v1825, %v1377
      %v1859 = vsel %vm1855, %v1826, %v1379
      %v1860 = vsel %vm1855, %v1827, %v1381
      %v1861 = vsel %vm1855, %v1828, %v1383
      %v1862 = vsel %vm1855, %v1829, %v1385
      %v1863 = vsel %vm1855, %v1830, %v1387
      %v1864 = vsel %vm1855, %v1831, %v1389
      %v1865 = vsel %vm1855, %v1832, %v1391
      %v1866 = vsel %vm1855, %v1833, %v1393
      %v1867 = vsel %vm1855, %v1834, %v1395
      %v1868 = vsel %vm1855, %v1835, %v1397
      %v1869 = vsel %vm1855, %v1836, %v1399
      %v1870 = vsel %vm1855, %v1837, %v1401
      %v1871 = vsel %vm1855, %v1838, %v1403
      %v1872 = vsel %vm1855, %v1839, %v1405
      %v1873 = vsel %vm1855, %v1840, %v1407
      %v1874 = vsel %vm1855, %v1841, %v1409
      %v1875 = vsel %vm1855, %v1842, %v1411
      %v1876 = vsel %vm1855, %v1843, %v1413
      %v1877 = vsel %vm1855, %v1844, %v1415
      %v1878 = vsel %vm1855, %v1845, %v1417
      %v1879 = vsel %vm1855, %v1846, %v1419
      %v1880 = vsel %vm1855, %v1847, %v1421
      %v1881 = vsel %vm1855, %v1848, %v1423
      %v1882 = vsel %vm1855, %v1849, %v1425
      %v1883 = vsel %vm1855, %v1850, %v1427
      %v1884 = vsel %vm1855, %v1851, %v1429
      %v1885 = vsel %vm1855, %v1852, %v1431
      %v1886 = vsel %vm1855, %v1853, %v1433
      %v1887 = vsel %vm1855, %v1854, %v1435
      %vm1888 = vcmask 195584
      %v1889 = vsel %vm1888, %v1856, %v1501
      %v1890 = vsel %vm1888, %v1857, %v1503
      %v1891 = vsel %vm1888, %v1858, %v1505
      %v1892 = vsel %vm1888, %v1859, %v1507
      %v1893 = vsel %vm1888, %v1860, %v1509
      %v1894 = vsel %vm1888, %v1861, %v1511
      %v1895 = vsel %vm1888, %v1862, %v1513
      %v1896 = vsel %vm1888, %v1863, %v1515
      %v1897 = vsel %vm1888, %v1864, %v1517
      %v1898 = vsel %vm1888, %v1865, %v1519
      %v1899 = vsel %vm1888, %v1866, %v1521
      %v1900 = vsel %vm1888, %v1867, %v1523
      %v1901 = vsel %vm1888, %v1868, %v1525
      %v1902 = vsel %vm1888, %v1869, %v1527
      %v1903 = vsel %vm1888, %v1870, %v1529
      %v1904 = vsel %vm1888, %v1871, %v1531
      %v1905 = vsel %vm1888, %v1872, %v1533
      %v1906 = vsel %vm1888, %v1873, %v1535
      %v1907 = vsel %vm1888, %v1874, %v1537
      %v1908 = vsel %vm1888, %v1875, %v1539
      %v1909 = vsel %vm1888, %v1876, %v1541
      %v1910 = vsel %vm1888, %v1877, %v1543
      %v1911 = vsel %vm1888, %v1878, %v1545
      %v1912 = vsel %vm1888, %v1879, %v1547
      %v1913 = vsel %vm1888, %v1880, %v1549
      %v1914 = vsel %vm1888, %v1881, %v1551
      %v1915 = vsel %vm1888, %v1882, %v1553
      %v1916 = vsel %vm1888, %v1883, %v1555
      %v1917 = vsel %vm1888, %v1884, %v1557
      %v1918 = vsel %vm1888, %v1885, %v1559
      %v1919 = vsel %vm1888, %v1886, %v1561
      %v1920 = vsel %vm1888, %v1887, %v1563
      %vm1921 = vcmask 228352
      %v1922 = vsel %vm1921, %v1889, %v1629
      %v1923 = vsel %vm1921, %v1890, %v1631
      %v1924 = vsel %vm1921, %v1891, %v1633
      %v1925 = vsel %vm1921, %v1892, %v1635
      %v1926 = vsel %vm1921, %v1893, %v1637
      %v1927 = vsel %vm1921, %v1894, %v1639
      %v1928 = vsel %vm1921, %v1895, %v1641
      %v1929 = vsel %vm1921, %v1896, %v1643
      %v1930 = vsel %vm1921, %v1897, %v1645
      %v1931 = vsel %vm1921, %v1898, %v1647
      %v1932 = vsel %vm1921, %v1899, %v1649
      %v1933 = vsel %vm1921, %v1900, %v1651
      %v1934 = vsel %vm1921, %v1901, %v1653
      %v1935 = vsel %vm1921, %v1902, %v1655
      %v1936 = vsel %vm1921, %v1903, %v1657
      %v1937 = vsel %vm1921, %v1904, %v1659
      %v1938 = vsel %vm1921, %v1905, %v1661
      %v1939 = vsel %vm1921, %v1906, %v1663
      %v1940 = vsel %vm1921, %v1907, %v1665
      %v1941 = vsel %vm1921, %v1908, %v1667
      %v1942 = vsel %vm1921, %v1909, %v1669
      %v1943 = vsel %vm1921, %v1910, %v1671
      %v1944 = vsel %vm1921, %v1911, %v1673
      %v1945 = vsel %vm1921, %v1912, %v1675
      %v1946 = vsel %vm1921, %v1913, %v1677
      %v1947 = vsel %vm1921, %v1914, %v1679
      %v1948 = vsel %vm1921, %v1915, %v1681
      %v1949 = vsel %vm1921, %v1916, %v1683
      %v1950 = vsel %vm1921, %v1917, %v1685
      %v1951 = vsel %vm1921, %v1918, %v1687
      %v1952 = vsel %vm1921, %v1919, %v1689
      %v1953 = vsel %vm1921, %v1920, %v1691
      %v1954 = vpack.c.bf16 %v1923, %v1922
      %v1955 = vpack.c.bf16 %v1925, %v1924
      %v1956 = vpack.c.bf16 %v1927, %v1926
      %v1957 = vpack.c.bf16 %v1929, %v1928
      %v1958 = vpack.c.bf16 %v1931, %v1930
      %v1959 = vpack.c.bf16 %v1933, %v1932
      %v1960 = vpack.c.bf16 %v1935, %v1934
      %v1961 = vpack.c.bf16 %v1937, %v1936
      %v1962 = vpack.c.bf16 %v1939, %v1938
      %v1963 = vpack.c.bf16 %v1941, %v1940
      %v1964 = vpack.c.bf16 %v1943, %v1942
      %v1965 = vpack.c.bf16 %v1945, %v1944
      %v1966 = vpack.c.bf16 %v1947, %v1946
      %v1967 = vpack.c.bf16 %v1949, %v1948
      %v1968 = vpack.c.bf16 %v1951, %v1950
      %v1969 = vpack.c.bf16 %v1953, %v1952
      %v1970 = vld [vmem:[%s250] sm:$0xf]
      %v1971 = vld [vmem:[%s250 + $0x4] sm:$0xf]
      %v1972 = vld [vmem:[%s250 + $0x8] sm:$0xf]
      %v1973 = vld [vmem:[%s250 + $0xc] sm:$0xf]
      %v1974 = vld [vmem:[%s3] sm:$0x1]
      %v1976 = vlaneseq
      %v1977 = vshrl.u32 %v1976, 7
      %v1978 = vsub.s32 0, %v1977
      %v1979 = vrot.slane %v1974, %v1978
      %v1985 = vunpack.c.l.b16 %v1970
      %v1986 = vunpack.c.l.b16 %v1971
      %v1987 = vunpack.c.l.b16 %v1972
      %v1988 = vunpack.c.l.b16 %v1973
      %v1989 = vpack.c.b16 %v1986, %v1985
      %v1990 = vpack.c.b16 %v1988, %v1987
      %vm1993 = vcmask 261120
      %v1995 = vsel %vm1993, %v1954, 0
      %v1998 = vsel %vm1993, %v1955, 0
      %v2001 = vsel %vm1993, %v1956, 0
      %v2004 = vsel %vm1993, %v1957, 0
      %v2007 = vsel %vm1993, %v1958, 0
      %v2010 = vsel %vm1993, %v1959, 0
      %v2013 = vsel %vm1993, %v1960, 0
      %v2016 = vsel %vm1993, %v1961, 0
      %v2019 = vsel %vm1993, %v1962, 0
      %v2022 = vsel %vm1993, %v1963, 0
      %v2025 = vsel %vm1993, %v1964, 0
      %v2028 = vsel %vm1993, %v1965, 0
      %v2031 = vsel %vm1993, %v1966, 0
      %v2034 = vsel %vm1993, %v1967, 0
      %v2037 = vsel %vm1993, %v1968, 0
      %v2040 = vsel %vm1993, %v1969, 0
      %2042 = vmatprep.subr.bf16.mxu0 0
      %2043 = vmatpush1.bf16.msra.mxu0 %v1989
      %2044 = vmatprep.subr.bf16.mxu0 0
      %2045 = vmatpush1.bf16.msra.mxu0 %v1990
      %2046 = vmatprep.subr.bf16.mxu0 0
      %2047 = vmatpush1.bf16.msra.mxu0 0
      %2048 = vmatprep.subr.bf16.mxu0 0
      %2049 = vmatpush1.bf16.msra.mxu0 0
      %2050 = vmatprep.subr.bf16.mxu0 0
      %2051 = vmatpush1.bf16.msra.mxu0 0
      %2052 = vmatprep.subr.bf16.mxu0 0
      %2053 = vmatpush1.bf16.msra.mxu0 0
      %2054 = vmatprep.subr.bf16.mxu0 0
      %2055 = vmatpush1.bf16.msra.mxu0 0
      %2056 = vmatprep.subr.bf16.mxu0 0
      %2057 = vmatpush1.bf16.msra.mxu0 0
      %2058 = vmatprep.subr.bf16.mxu0 0
      %2059 = vmatpush1.bf16.msra.mxu0 0
      %2060 = vmatprep.subr.bf16.mxu0 0
      %2061 = vmatpush1.bf16.msra.mxu0 0
      %2062 = vmatprep.subr.bf16.mxu0 0
      %2063 = vmatpush1.bf16.msra.mxu0 0
      %2064 = vmatprep.subr.bf16.mxu0 0
      %2065 = vmatpush1.bf16.msra.mxu0 0
      %2066 = vmatprep.subr.bf16.mxu0 0
      %2067 = vmatpush1.bf16.msra.mxu0 0
      %2068 = vmatprep.subr.bf16.mxu0 0
      %2069 = vmatpush1.bf16.msra.mxu0 0
      %2070 = vmatprep.subr.bf16.mxu0 0
      %2071 = vmatpush1.bf16.msra.mxu0 0
      %2072 = vmatprep.subr.bf16.mxu0 0
      %2073 = vmatpush1.bf16.msra.mxu0 0
      %2074 = vmatprep.mubr.bf16.mxu0 0
      %2075 = vmatmul.mubr.bf16.gmra.mrb[0].mxu0 %v1995
      %v2076 = vpop.f32.mrb[0].mxu0
      %v2077 = vadd.f32 %v1979, %v2076
      %v2078 = vpop.f32.mrb[0].mxu0
      %v2079 = vpop.f32.mrb[0].mxu0
      %v2080 = vadd.f32 %v1979, %v2079
      %v2081 = vpop.f32.mrb[0].mxu0
      %2082 = vmatprep.mubr.bf16.mxu0 0
      %2083 = vmatmul.mubr.bf16.gmra.mrb[0].mxu0 %v1998
      %v2084 = vpop.f32.mrb[0].mxu0
      %v2085 = vadd.f32 %v1979, %v2084
      %v2086 = vpop.f32.mrb[0].mxu0
      %v2087 = vpop.f32.mrb[0].mxu0
      %v2088 = vadd.f32 %v1979, %v2087
      %v2089 = vpop.f32.mrb[0].mxu0
      %2090 = vmatprep.mubr.bf16.mxu0 0
      %2091 = vmatmul.mubr.bf16.gmra.mrb[0].mxu0 %v2001
      %v2092 = vpop.f32.mrb[0].mxu0
      %v2093 = vadd.f32 %v1979, %v2092
      %v2094 = vpop.f32.mrb[0].mxu0
      %v2095 = vpop.f32.mrb[0].mxu0
      %v2096 = vadd.f32 %v1979, %v2095
      %v2097 = vpop.f32.mrb[0].mxu0
      %2098 = vmatprep.mubr.bf16.mxu0 0
      %2099 = vmatmul.mubr.bf16.gmra.mrb[0].mxu0 %v2004
      %v2100 = vpop.f32.mrb[0].mxu0
      %v2101 = vadd.f32 %v1979, %v2100
      %v2102 = vpop.f32.mrb[0].mxu0
      %v2103 = vpop.f32.mrb[0].mxu0
      %v2104 = vadd.f32 %v1979, %v2103
      %v2105 = vpop.f32.mrb[0].mxu0
      %2106 = vmatprep.mubr.bf16.mxu0 0
      %2107 = vmatmul.mubr.bf16.gmra.mrb[0].mxu0 %v2007
      %v2108 = vpop.f32.mrb[0].mxu0
      %v2109 = vadd.f32 %v1979, %v2108
      %v2110 = vpop.f32.mrb[0].mxu0
      %v2111 = vpop.f32.mrb[0].mxu0
      %v2112 = vadd.f32 %v1979, %v2111
      %v2113 = vpop.f32.mrb[0].mxu0
      %2114 = vmatprep.mubr.bf16.mxu0 0
      %2115 = vmatmul.mubr.bf16.gmra.mrb[0].mxu0 %v2010
      %v2116 = vpop.f32.mrb[0].mxu0
      %v2117 = vadd.f32 %v1979, %v2116
      %v2118 = vpop.f32.mrb[0].mxu0
      %v2119 = vpop.f32.mrb[0].mxu0
      %v2120 = vadd.f32 %v1979, %v2119
      %v2121 = vpop.f32.mrb[0].mxu0
      %2122 = vmatprep.mubr.bf16.mxu0 0
      %2123 = vmatmul.mubr.bf16.gmra.mrb[0].mxu0 %v2013
      %v2124 = vpop.f32.mrb[0].mxu0
      %v2125 = vadd.f32 %v1979, %v2124
      %v2126 = vpop.f32.mrb[0].mxu0
      %v2127 = vpop.f32.mrb[0].mxu0
      %v2128 = vadd.f32 %v1979, %v2127
      %v2129 = vpop.f32.mrb[0].mxu0
      %2130 = vmatprep.mubr.bf16.mxu0 0
      %2131 = vmatmul.mubr.bf16.gmra.mrb[0].mxu0 %v2016
      %v2132 = vpop.f32.mrb[0].mxu0
      %v2133 = vadd.f32 %v1979, %v2132
      %v2134 = vpop.f32.mrb[0].mxu0
      %v2135 = vpop.f32.mrb[0].mxu0
      %v2136 = vadd.f32 %v1979, %v2135
      %v2137 = vpop.f32.mrb[0].mxu0
      %2138 = vmatprep.mubr.bf16.mxu0 0
      %2139 = vmatmul.mubr.bf16.gmra.mrb[0].mxu0 %v2019
      %v2140 = vpop.f32.mrb[0].mxu0
      %v2141 = vadd.f32 %v1979, %v2140
      %v2142 = vpop.f32.mrb[0].mxu0
      %v2143 = vpop.f32.mrb[0].mxu0
      %v2144 = vadd.f32 %v1979, %v2143
      %v2145 = vpop.f32.mrb[0].mxu0
      %2146 = vmatprep.mubr.bf16.mxu0 0
      %2147 = vmatmul.mubr.bf16.gmra.mrb[0].mxu0 %v2022
      %v2148 = vpop.f32.mrb[0].mxu0
      %v2149 = vadd.f32 %v1979, %v2148
      %v2150 = vpop.f32.mrb[0].mxu0
      %v2151 = vpop.f32.mrb[0].mxu0
      %v2152 = vadd.f32 %v1979, %v2151
      %v2153 = vpop.f32.mrb[0].mxu0
      %2154 = vmatprep.mubr.bf16.mxu0 0
      %2155 = vmatmul.mubr.bf16.gmra.mrb[0].mxu0 %v2025
      %v2156 = vpop.f32.mrb[0].mxu0
      %v2157 = vadd.f32 %v1979, %v2156
      %v2158 = vpop.f32.mrb[0].mxu0
      %v2159 = vpop.f32.mrb[0].mxu0
      %v2160 = vadd.f32 %v1979, %v2159
      %v2161 = vpop.f32.mrb[0].mxu0
      %2162 = vmatprep.mubr.bf16.mxu0 0
      %2163 = vmatmul.mubr.bf16.gmra.mrb[0].mxu0 %v2028
      %v2164 = vpop.f32.mrb[0].mxu0
      %v2165 = vadd.f32 %v1979, %v2164
      %v2166 = vpop.f32.mrb[0].mxu0
      %v2167 = vpop.f32.mrb[0].mxu0
      %v2168 = vadd.f32 %v1979, %v2167
      %v2169 = vpop.f32.mrb[0].mxu0
      %2170 = vmatprep.mubr.bf16.mxu0 0
      %2171 = vmatmul.mubr.bf16.gmra.mrb[0].mxu0 %v2031
      %v2172 = vpop.f32.mrb[0].mxu0
      %v2173 = vadd.f32 %v1979, %v2172
      %v2174 = vpop.f32.mrb[0].mxu0
      %v2175 = vpop.f32.mrb[0].mxu0
      %v2176 = vadd.f32 %v1979, %v2175
      %v2177 = vpop.f32.mrb[0].mxu0
      %2178 = vmatprep.mubr.bf16.mxu0 0
      %2179 = vmatmul.mubr.bf16.gmra.mrb[0].mxu0 %v2034
      %v2180 = vpop.f32.mrb[0].mxu0
      %v2181 = vadd.f32 %v1979, %v2180
      %v2182 = vpop.f32.mrb[0].mxu0
      %v2183 = vpop.f32.mrb[0].mxu0
      %v2184 = vadd.f32 %v1979, %v2183
      %v2185 = vpop.f32.mrb[0].mxu0
      %2186 = vmatprep.mubr.bf16.mxu0 0
      %2187 = vmatmul.mubr.bf16.gmra.mrb[0].mxu0 %v2037
      %v2188 = vpop.f32.mrb[0].mxu0
      %v2189 = vadd.f32 %v1979, %v2188
      %v2190 = vpop.f32.mrb[0].mxu0
      %v2191 = vpop.f32.mrb[0].mxu0
      %v2192 = vadd.f32 %v1979, %v2191
      %v2193 = vpop.f32.mrb[0].mxu0
      %2194 = vmatprep.mubr.bf16.mxu0 0
      %2195 = vmatmul.mubr.bf16.gmra.mrb[0].mxu0 %v2040
      %v2196 = vpop.f32.mrb[0].mxu0
      %v2197 = vadd.f32 %v1979, %v2196
      %v2198 = vpop.f32.mrb[0].mxu0
      %v2199 = vpop.f32.mrb[0].mxu0
      %v2200 = vadd.f32 %v1979, %v2199
      %v2201 = vpop.f32.mrb[0].mxu0
      %2202 = vdwg.mxu0
      %vm2203 = vcmp.ge.f32.partialorder %v2077, 0.0
      %vm2204 = vcmp.ge.f32.partialorder %v2080, 0.0
      %vm2205 = vcmp.ge.f32.partialorder %v2085, 0.0
      %vm2206 = vcmp.ge.f32.partialorder %v2088, 0.0
      %vm2207 = vcmp.ge.f32.partialorder %v2093, 0.0
      %vm2208 = vcmp.ge.f32.partialorder %v2096, 0.0
      %vm2209 = vcmp.ge.f32.partialorder %v2101, 0.0
      %vm2210 = vcmp.ge.f32.partialorder %v2104, 0.0
      %vm2211 = vcmp.ge.f32.partialorder %v2109, 0.0
      %vm2212 = vcmp.ge.f32.partialorder %v2112, 0.0
      %vm2213 = vcmp.ge.f32.partialorder %v2117, 0.0
      %vm2214 = vcmp.ge.f32.partialorder %v2120, 0.0
      %vm2215 = vcmp.ge.f32.partialorder %v2125, 0.0
      %vm2216 = vcmp.ge.f32.partialorder %v2128, 0.0
      %vm2217 = vcmp.ge.f32.partialorder %v2133, 0.0
      %vm2218 = vcmp.ge.f32.partialorder %v2136, 0.0
      %vm2219 = vcmp.ge.f32.partialorder %v2141, 0.0
      %vm2220 = vcmp.ge.f32.partialorder %v2144, 0.0
      %vm2221 = vcmp.ge.f32.partialorder %v2149, 0.0
      %vm2222 = vcmp.ge.f32.partialorder %v2152, 0.0
      %vm2223 = vcmp.ge.f32.partialorder %v2157, 0.0
      %vm2224 = vcmp.ge.f32.partialorder %v2160, 0.0
      %vm2225 = vcmp.ge.f32.partialorder %v2165, 0.0
      %vm2226 = vcmp.ge.f32.partialorder %v2168, 0.0
      %vm2227 = vcmp.ge.f32.partialorder %v2173, 0.0
      %vm2228 = vcmp.ge.f32.partialorder %v2176, 0.0
      %vm2229 = vcmp.ge.f32.partialorder %v2181, 0.0
      %vm2230 = vcmp.ge.f32.partialorder %v2184, 0.0
      %vm2231 = vcmp.ge.f32.partialorder %v2189, 0.0
      %vm2232 = vcmp.ge.f32.partialorder %v2192, 0.0
      %vm2233 = vcmp.ge.f32.partialorder %v2197, 0.0
      %vm2234 = vcmp.ge.f32.partialorder %v2200, 0.0
      %v2235 = vmul.f32 %v2077, 0.22916667
      %v2236 = vmul.f32 %v2080, 0.22916667
      %v2237 = vmul.f32 %v2085, 0.22916667
      %v2238 = vmul.f32 %v2088, 0.22916667
      %v2239 = vmul.f32 %v2093, 0.22916667
      %v2240 = vmul.f32 %v2096, 0.22916667
      %v2241 = vmul.f32 %v2101, 0.22916667
      %v2242 = vmul.f32 %v2104, 0.22916667
      %v2243 = vmul.f32 %v2109, 0.22916667
      %v2244 = vmul.f32 %v2112, 0.22916667
      %v2245 = vmul.f32 %v2117, 0.22916667
      %v2246 = vmul.f32 %v2120, 0.22916667
      %v2247 = vmul.f32 %v2125, 0.22916667
      %v2248 = vmul.f32 %v2128, 0.22916667
      %v2249 = vmul.f32 %v2133, 0.22916667
      %v2250 = vmul.f32 %v2136, 0.22916667
      %v2251 = vmul.f32 %v2141, 0.22916667
      %v2252 = vmul.f32 %v2144, 0.22916667
      %v2253 = vmul.f32 %v2149, 0.22916667
      %v2254 = vmul.f32 %v2152, 0.22916667
      %v2255 = vmul.f32 %v2157, 0.22916667
      %v2256 = vmul.f32 %v2160, 0.22916667
      %v2257 = vmul.f32 %v2165, 0.22916667
      %v2258 = vmul.f32 %v2168, 0.22916667
      %v2259 = vmul.f32 %v2173, 0.22916667
      %v2260 = vmul.f32 %v2176, 0.22916667
      %v2261 = vmul.f32 %v2181, 0.22916667
      %v2262 = vmul.f32 %v2184, 0.22916667
      %v2263 = vmul.f32 %v2189, 0.22916667
      %v2264 = vmul.f32 %v2192, 0.22916667
      %v2265 = vmul.f32 %v2197, 0.22916667
      %v2266 = vmul.f32 %v2200, 0.22916667
      %v2267 = vsel %vm2203, %v2077, %v2235
      %v2268 = vsel %vm2204, %v2080, %v2236
      %v2269 = vsel %vm2205, %v2085, %v2237
      %v2270 = vsel %vm2206, %v2088, %v2238
      %v2271 = vsel %vm2207, %v2093, %v2239
      %v2272 = vsel %vm2208, %v2096, %v2240
      %v2273 = vsel %vm2209, %v2101, %v2241
      %v2274 = vsel %vm2210, %v2104, %v2242
      %v2275 = vsel %vm2211, %v2109, %v2243
      %v2276 = vsel %vm2212, %v2112, %v2244
      %v2277 = vsel %vm2213, %v2117, %v2245
      %v2278 = vsel %vm2214, %v2120, %v2246
      %v2279 = vsel %vm2215, %v2125, %v2247
      %v2280 = vsel %vm2216, %v2128, %v2248
      %v2281 = vsel %vm2217, %v2133, %v2249
      %v2282 = vsel %vm2218, %v2136, %v2250
      %v2283 = vsel %vm2219, %v2141, %v2251
      %v2284 = vsel %vm2220, %v2144, %v2252
      %v2285 = vsel %vm2221, %v2149, %v2253
      %v2286 = vsel %vm2222, %v2152, %v2254
      %v2287 = vsel %vm2223, %v2157, %v2255
      %v2288 = vsel %vm2224, %v2160, %v2256
      %v2289 = vsel %vm2225, %v2165, %v2257
      %v2290 = vsel %vm2226, %v2168, %v2258
      %v2291 = vsel %vm2227, %v2173, %v2259
      %v2292 = vsel %vm2228, %v2176, %v2260
      %v2293 = vsel %vm2229, %v2181, %v2261
      %v2294 = vsel %vm2230, %v2184, %v2262
      %v2295 = vsel %vm2231, %v2189, %v2263
      %v2296 = vsel %vm2232, %v2192, %v2264
      %v2297 = vsel %vm2233, %v2197, %v2265
      %v2298 = vsel %vm2234, %v2200, %v2266
      %2299 = vst.msk [vmem:[%s259] sm:$0xff] %vm1756, %v2267
      %2300 = vst.msk [vmem:[%s259 + $0x8] sm:$0xff] %vm1756, %v2268
      %2301 = vst.msk [vmem:[%s259 + $0x10] sm:$0xff] %vm1756, %v2269
      %2302 = vst.msk [vmem:[%s259 + $0x18] sm:$0xff] %vm1756, %v2270
      %2303 = vst.msk [vmem:[%s259 + $0x20] sm:$0xff] %vm1756, %v2271
      %2304 = vst.msk [vmem:[%s259 + $0x28] sm:$0xff] %vm1756, %v2272
      %2305 = vst.msk [vmem:[%s259 + $0x30] sm:$0xff] %vm1756, %v2273
      %2306 = vst.msk [vmem:[%s259 + $0x38] sm:$0xff] %vm1756, %v2274
      %2307 = vst.msk [vmem:[%s259 + $0x40] sm:$0xff] %vm1756, %v2275
      %2308 = vst.msk [vmem:[%s259 + $0x48] sm:$0xff] %vm1756, %v2276
      %2309 = vst.msk [vmem:[%s259 + $0x50] sm:$0xff] %vm1756, %v2277
      %2310 = vst.msk [vmem:[%s259 + $0x58] sm:$0xff] %vm1756, %v2278
      %2311 = vst.msk [vmem:[%s259 + $0x60] sm:$0xff] %vm1756, %v2279
      %2312 = vst.msk [vmem:[%s259 + $0x68] sm:$0xff] %vm1756, %v2280
      %2313 = vst.msk [vmem:[%s259 + $0x70] sm:$0xff] %vm1756, %v2281
      %2314 = vst.msk [vmem:[%s259 + $0x78] sm:$0xff] %vm1756, %v2282
      %2315 = vst.msk [vmem:[%s259 + $0x80] sm:$0xff] %vm1756, %v2283
      %2316 = vst.msk [vmem:[%s259 + $0x88] sm:$0xff] %vm1756, %v2284
      %2317 = vst.msk [vmem:[%s259 + $0x90] sm:$0xff] %vm1756, %v2285
      %2318 = vst.msk [vmem:[%s259 + $0x98] sm:$0xff] %vm1756, %v2286
      %2319 = vst.msk [vmem:[%s259 + $0xa0] sm:$0xff] %vm1756, %v2287
      %2320 = vst.msk [vmem:[%s259 + $0xa8] sm:$0xff] %vm1756, %v2288
      %2321 = vst.msk [vmem:[%s259 + $0xb0] sm:$0xff] %vm1756, %v2289
      %2322 = vst.msk [vmem:[%s259 + $0xb8] sm:$0xff] %vm1756, %v2290
      %2323 = vst.msk [vmem:[%s259 + $0xc0] sm:$0xff] %vm1756, %v2291
      %2324 = vst.msk [vmem:[%s259 + $0xc8] sm:$0xff] %vm1756, %v2292
      %2325 = vst.msk [vmem:[%s259 + $0xd0] sm:$0xff] %vm1756, %v2293
      %2326 = vst.msk [vmem:[%s259 + $0xd8] sm:$0xff] %vm1756, %v2294
      %2327 = vst.msk [vmem:[%s259 + $0xe0] sm:$0xff] %vm1756, %v2295
      %2328 = vst.msk [vmem:[%s259 + $0xe8] sm:$0xff] %vm1756, %v2296
      %2329 = vst.msk [vmem:[%s259 + $0xf0] sm:$0xff] %vm1756, %v2297
      %2330 = vst.msk [vmem:[%s259 + $0xf8] sm:$0xff] %vm1756, %v2298
      %v2331 = vld [vmem:[%s566 + $0x1] sm:$0xff]
      %v2332 = vld [vmem:[%s566 + $0x9] sm:$0xff]
      %v2333 = vld [vmem:[%s566 + $0x19] sm:$0xff]
      %v2334 = vld [vmem:[%s566 + $0x21] sm:$0xff]
      %v2335 = vld [vmem:[%s566 + $0x31] sm:$0xff]
      %v2336 = vld [vmem:[%s566 + $0x39] sm:$0xff]
      %v2337 = vld [vmem:[%s566 + $0x49] sm:$0xff]
      %v2338 = vld [vmem:[%s566 + $0x51] sm:$0xff]
      %v2339 = vld [vmem:[%s566 + $0x61] sm:$0xff]
      %v2340 = vld [vmem:[%s566 + $0x69] sm:$0xff]
      %v2341 = vld [vmem:[%s566 + $0x79] sm:$0xff]
      %v2342 = vld [vmem:[%s566 + $0x81] sm:$0xff]
      %v2343 = vld [vmem:[%s566 + $0x91] sm:$0xff]
      %v2344 = vld [vmem:[%s566 + $0x99] sm:$0xff]
      %v2345 = vld [vmem:[%s566 + $0xa9] sm:$0xff]
      %v2346 = vld [vmem:[%s566 + $0xb1] sm:$0xff]
      %v2347 = vld [vmem:[%s566 + $0xc1] sm:$0xff]
      %v2348 = vld [vmem:[%s566 + $0xc9] sm:$0xff]
      %v2349 = vld [vmem:[%s566 + $0xd9] sm:$0xff]
      %v2350 = vld [vmem:[%s566 + $0xe1] sm:$0xff]
      %v2351 = vld [vmem:[%s566 + $0xf1] sm:$0xff]
      %v2352 = vld [vmem:[%s566 + $0xf9] sm:$0xff]
      %v2353 = vld [vmem:[%s566 + $0x109] sm:$0xff]
      %v2354 = vld [vmem:[%s566 + $0x111] sm:$0xff]
      %v2355 = vld [vmem:[%s566 + $0x121] sm:$0xff]
      %v2356 = vld [vmem:[%s566 + $0x129] sm:$0xff]
      %v2357 = vld [vmem:[%s566 + $0x139] sm:$0xff]
      %v2358 = vld [vmem:[%s566 + $0x141] sm:$0xff]
      %v2359 = vld [vmem:[%s566 + $0x151] sm:$0xff]
      %v2360 = vld [vmem:[%s566 + $0x159] sm:$0xff]
      %v2361 = vld [vmem:[%s566 + $0x169] sm:$0xff]
      %v2362 = vld [vmem:[%s566 + $0x171] sm:$0xff]
      %v2363 = vld [vmem:[%s566 + $0x2] sm:$0xff]
      %v2364 = vld [vmem:[%s566 + $0xa] sm:$0xff]
      %v2365 = vld [vmem:[%s566 + $0x1a] sm:$0xff]
      %v2366 = vld [vmem:[%s566 + $0x22] sm:$0xff]
      %v2367 = vld [vmem:[%s566 + $0x32] sm:$0xff]
      %v2368 = vld [vmem:[%s566 + $0x3a] sm:$0xff]
      %v2369 = vld [vmem:[%s566 + $0x4a] sm:$0xff]
      %v2370 = vld [vmem:[%s566 + $0x52] sm:$0xff]
      %v2371 = vld [vmem:[%s566 + $0x62] sm:$0xff]
      %v2372 = vld [vmem:[%s566 + $0x6a] sm:$0xff]
      %v2373 = vld [vmem:[%s566 + $0x7a] sm:$0xff]
      %v2374 = vld [vmem:[%s566 + $0x82] sm:$0xff]
      %v2375 = vld [vmem:[%s566 + $0x92] sm:$0xff]
      %v2376 = vld [vmem:[%s566 + $0x9a] sm:$0xff]
      %v2377 = vld [vmem:[%s566 + $0xaa] sm:$0xff]
      %v2378 = vld [vmem:[%s566 + $0xb2] sm:$0xff]
      %v2379 = vld [vmem:[%s566 + $0xc2] sm:$0xff]
      %v2380 = vld [vmem:[%s566 + $0xca] sm:$0xff]
      %v2381 = vld [vmem:[%s566 + $0xda] sm:$0xff]
      %v2382 = vld [vmem:[%s566 + $0xe2] sm:$0xff]
      %v2383 = vld [vmem:[%s566 + $0xf2] sm:$0xff]
      %v2384 = vld [vmem:[%s566 + $0xfa] sm:$0xff]
      %v2385 = vld [vmem:[%s566 + $0x10a] sm:$0xff]
      %v2386 = vld [vmem:[%s566 + $0x112] sm:$0xff]
      %v2387 = vld [vmem:[%s566 + $0x122] sm:$0xff]
      %v2388 = vld [vmem:[%s566 + $0x12a] sm:$0xff]
      %v2389 = vld [vmem:[%s566 + $0x13a] sm:$0xff]
      %v2390 = vld [vmem:[%s566 + $0x142] sm:$0xff]
      %v2391 = vld [vmem:[%s566 + $0x152] sm:$0xff]
      %v2392 = vld [vmem:[%s566 + $0x15a] sm:$0xff]
      %v2393 = vld [vmem:[%s566 + $0x16a] sm:$0xff]
      %v2394 = vld [vmem:[%s566 + $0x172] sm:$0xff]
      %v2395 = vld [vmem:[%s633 + $0x1] sm:$0xff]
      %v2396 = vld [vmem:[%s633 + $0x9] sm:$0xff]
      %v2397 = vld [vmem:[%s633 + $0x19] sm:$0xff]
      %v2398 = vld [vmem:[%s633 + $0x21] sm:$0xff]
      %v2399 = vld [vmem:[%s633 + $0x31] sm:$0xff]
      %v2400 = vld [vmem:[%s633 + $0x39] sm:$0xff]
      %v2401 = vld [vmem:[%s633 + $0x49] sm:$0xff]
      %v2402 = vld [vmem:[%s633 + $0x51] sm:$0xff]
      %v2403 = vld [vmem:[%s633 + $0x61] sm:$0xff]
      %v2404 = vld [vmem:[%s633 + $0x69] sm:$0xff]
      %v2405 = vld [vmem:[%s633 + $0x79] sm:$0xff]
      %v2406 = vld [vmem:[%s633 + $0x81] sm:$0xff]
      %v2407 = vld [vmem:[%s633 + $0x91] sm:$0xff]
      %v2408 = vld [vmem:[%s633 + $0x99] sm:$0xff]
      %v2409 = vld [vmem:[%s633 + $0xa9] sm:$0xff]
      %v2410 = vld [vmem:[%s633 + $0xb1] sm:$0xff]
      %v2411 = vld [vmem:[%s633 + $0xc1] sm:$0xff]
      %v2412 = vld [vmem:[%s633 + $0xc9] sm:$0xff]
      %v2413 = vld [vmem:[%s633 + $0xd9] sm:$0xff]
      %v2414 = vld [vmem:[%s633 + $0xe1] sm:$0xff]
      %v2415 = vld [vmem:[%s633 + $0xf1] sm:$0xff]
      %v2416 = vld [vmem:[%s633 + $0xf9] sm:$0xff]
      %v2417 = vld [vmem:[%s633 + $0x109] sm:$0xff]
      %v2418 = vld [vmem:[%s633 + $0x111] sm:$0xff]
      %v2419 = vld [vmem:[%s633 + $0x121] sm:$0xff]
      %v2420 = vld [vmem:[%s633 + $0x129] sm:$0xff]
      %v2421 = vld [vmem:[%s633 + $0x139] sm:$0xff]
      %v2422 = vld [vmem:[%s633 + $0x141] sm:$0xff]
      %v2423 = vld [vmem:[%s633 + $0x151] sm:$0xff]
      %v2424 = vld [vmem:[%s633 + $0x159] sm:$0xff]
      %v2425 = vld [vmem:[%s633 + $0x169] sm:$0xff]
      %v2426 = vld [vmem:[%s633 + $0x171] sm:$0xff]
      %v2427 = vld [vmem:[%s633 + $0x2] sm:$0xff]
      %v2428 = vld [vmem:[%s633 + $0xa] sm:$0xff]
      %v2429 = vld [vmem:[%s633 + $0x1a] sm:$0xff]
      %v2430 = vld [vmem:[%s633 + $0x22] sm:$0xff]
      %v2431 = vld [vmem:[%s633 + $0x32] sm:$0xff]
      %v2432 = vld [vmem:[%s633 + $0x3a] sm:$0xff]
      %v2433 = vld [vmem:[%s633 + $0x4a] sm:$0xff]
      %v2434 = vld [vmem:[%s633 + $0x52] sm:$0xff]
      %v2435 = vld [vmem:[%s633 + $0x62] sm:$0xff]
      %v2436 = vld [vmem:[%s633 + $0x6a] sm:$0xff]
      %v2437 = vld [vmem:[%s633 + $0x7a] sm:$0xff]
      %v2438 = vld [vmem:[%s633 + $0x82] sm:$0xff]
      %v2439 = vld [vmem:[%s633 + $0x92] sm:$0xff]
      %v2440 = vld [vmem:[%s633 + $0x9a] sm:$0xff]
      %v2441 = vld [vmem:[%s633 + $0xaa] sm:$0xff]
      %v2442 = vld [vmem:[%s633 + $0xb2] sm:$0xff]
      %v2443 = vld [vmem:[%s633 + $0xc2] sm:$0xff]
      %v2444 = vld [vmem:[%s633 + $0xca] sm:$0xff]
      %v2445 = vld [vmem:[%s633 + $0xda] sm:$0xff]
      %v2446 = vld [vmem:[%s633 + $0xe2] sm:$0xff]
      %v2447 = vld [vmem:[%s633 + $0xf2] sm:$0xff]
      %v2448 = vld [vmem:[%s633 + $0xfa] sm:$0xff]
      %v2449 = vld [vmem:[%s633 + $0x10a] sm:$0xff]
      %v2450 = vld [vmem:[%s633 + $0x112] sm:$0xff]
      %v2451 = vld [vmem:[%s633 + $0x122] sm:$0xff]
      %v2452 = vld [vmem:[%s633 + $0x12a] sm:$0xff]
      %v2453 = vld [vmem:[%s633 + $0x13a] sm:$0xff]
      %v2454 = vld [vmem:[%s633 + $0x142] sm:$0xff]
      %v2455 = vld [vmem:[%s633 + $0x152] sm:$0xff]
      %v2456 = vld [vmem:[%s633 + $0x15a] sm:$0xff]
      %v2457 = vld [vmem:[%s633 + $0x16a] sm:$0xff]
      %v2458 = vld [vmem:[%s633 + $0x172] sm:$0xff]
      %v2459 = vld [vmem:[%s698 + $0x1] sm:$0xff]
      %v2460 = vld [vmem:[%s698 + $0x9] sm:$0xff]
      %v2461 = vld [vmem:[%s698 + $0x19] sm:$0xff]
      %v2462 = vld [vmem:[%s698 + $0x21] sm:$0xff]
      %v2463 = vld [vmem:[%s698 + $0x31] sm:$0xff]
      %v2464 = vld [vmem:[%s698 + $0x39] sm:$0xff]
      %v2465 = vld [vmem:[%s698 + $0x49] sm:$0xff]
      %v2466 = vld [vmem:[%s698 + $0x51] sm:$0xff]
      %v2467 = vld [vmem:[%s698 + $0x61] sm:$0xff]
      %v2468 = vld [vmem:[%s698 + $0x69] sm:$0xff]
      %v2469 = vld [vmem:[%s698 + $0x79] sm:$0xff]
      %v2470 = vld [vmem:[%s698 + $0x81] sm:$0xff]
      %v2471 = vld [vmem:[%s698 + $0x91] sm:$0xff]
      %v2472 = vld [vmem:[%s698 + $0x99] sm:$0xff]
      %v2473 = vld [vmem:[%s698 + $0xa9] sm:$0xff]
      %v2474 = vld [vmem:[%s698 + $0xb1] sm:$0xff]
      %v2475 = vld [vmem:[%s698 + $0xc1] sm:$0xff]
      %v2476 = vld [vmem:[%s698 + $0xc9] sm:$0xff]
      %v2477 = vld [vmem:[%s698 + $0xd9] sm:$0xff]
      %v2478 = vld [vmem:[%s698 + $0xe1] sm:$0xff]
      %v2479 = vld [vmem:[%s698 + $0xf1] sm:$0xff]
      %v2480 = vld [vmem:[%s698 + $0xf9] sm:$0xff]
      %v2481 = vld [vmem:[%s698 + $0x109] sm:$0xff]
      %v2482 = vld [vmem:[%s698 + $0x111] sm:$0xff]
      %v2483 = vld [vmem:[%s698 + $0x121] sm:$0xff]
      %v2484 = vld [vmem:[%s698 + $0x129] sm:$0xff]
      %v2485 = vld [vmem:[%s698 + $0x139] sm:$0xff]
      %v2486 = vld [vmem:[%s698 + $0x141] sm:$0xff]
      %v2487 = vld [vmem:[%s698 + $0x151] sm:$0xff]
      %v2488 = vld [vmem:[%s698 + $0x159] sm:$0xff]
      %v2489 = vld [vmem:[%s698 + $0x169] sm:$0xff]
      %v2490 = vld [vmem:[%s698 + $0x171] sm:$0xff]
      %v2491 = vld [vmem:[%s698 + $0x2] sm:$0xff]
      %v2492 = vld [vmem:[%s698 + $0xa] sm:$0xff]
      %v2493 = vld [vmem:[%s698 + $0x1a] sm:$0xff]
      %v2494 = vld [vmem:[%s698 + $0x22] sm:$0xff]
      %v2495 = vld [vmem:[%s698 + $0x32] sm:$0xff]
      %v2496 = vld [vmem:[%s698 + $0x3a] sm:$0xff]
      %v2497 = vld [vmem:[%s698 + $0x4a] sm:$0xff]
      %v2498 = vld [vmem:[%s698 + $0x52] sm:$0xff]
      %v2499 = vld [vmem:[%s698 + $0x62] sm:$0xff]
      %v2500 = vld [vmem:[%s698 + $0x6a] sm:$0xff]
      %v2501 = vld [vmem:[%s698 + $0x7a] sm:$0xff]
      %v2502 = vld [vmem:[%s698 + $0x82] sm:$0xff]
      %v2503 = vld [vmem:[%s698 + $0x92] sm:$0xff]
      %v2504 = vld [vmem:[%s698 + $0x9a] sm:$0xff]
      %v2505 = vld [vmem:[%s698 + $0xaa] sm:$0xff]
      %v2506 = vld [vmem:[%s698 + $0xb2] sm:$0xff]
      %v2507 = vld [vmem:[%s698 + $0xc2] sm:$0xff]
      %v2508 = vld [vmem:[%s698 + $0xca] sm:$0xff]
      %v2509 = vld [vmem:[%s698 + $0xda] sm:$0xff]
      %v2510 = vld [vmem:[%s698 + $0xe2] sm:$0xff]
      %v2511 = vld [vmem:[%s698 + $0xf2] sm:$0xff]
      %v2512 = vld [vmem:[%s698 + $0xfa] sm:$0xff]
      %v2513 = vld [vmem:[%s698 + $0x10a] sm:$0xff]
      %v2514 = vld [vmem:[%s698 + $0x112] sm:$0xff]
      %v2515 = vld [vmem:[%s698 + $0x122] sm:$0xff]
      %v2516 = vld [vmem:[%s698 + $0x12a] sm:$0xff]
      %v2517 = vld [vmem:[%s698 + $0x13a] sm:$0xff]
      %v2518 = vld [vmem:[%s698 + $0x142] sm:$0xff]
      %v2519 = vld [vmem:[%s698 + $0x152] sm:$0xff]
      %v2520 = vld [vmem:[%s698 + $0x15a] sm:$0xff]
      %v2521 = vld [vmem:[%s698 + $0x16a] sm:$0xff]
      %v2522 = vld [vmem:[%s698 + $0x172] sm:$0xff]
      %v2523 = vld [vmem:[%s763 + $0x1] sm:$0xff]
      %v2524 = vld [vmem:[%s763 + $0x9] sm:$0xff]
      %v2525 = vld [vmem:[%s763 + $0x19] sm:$0xff]
      %v2526 = vld [vmem:[%s763 + $0x21] sm:$0xff]
      %v2527 = vld [vmem:[%s763 + $0x31] sm:$0xff]
      %v2528 = vld [vmem:[%s763 + $0x39] sm:$0xff]
      %v2529 = vld [vmem:[%s763 + $0x49] sm:$0xff]
      %v2530 = vld [vmem:[%s763 + $0x51] sm:$0xff]
      %v2531 = vld [vmem:[%s763 + $0x61] sm:$0xff]
      %v2532 = vld [vmem:[%s763 + $0x69] sm:$0xff]
      %v2533 = vld [vmem:[%s763 + $0x79] sm:$0xff]
      %v2534 = vld [vmem:[%s763 + $0x81] sm:$0xff]
      %v2535 = vld [vmem:[%s763 + $0x91] sm:$0xff]
      %v2536 = vld [vmem:[%s763 + $0x99] sm:$0xff]
      %v2537 = vld [vmem:[%s763 + $0xa9] sm:$0xff]
      %v2538 = vld [vmem:[%s763 + $0xb1] sm:$0xff]
      %v2539 = vld [vmem:[%s763 + $0xc1] sm:$0xff]
      %v2540 = vld [vmem:[%s763 + $0xc9] sm:$0xff]
      %v2541 = vld [vmem:[%s763 + $0xd9] sm:$0xff]
      %v2542 = vld [vmem:[%s763 + $0xe1] sm:$0xff]
      %v2543 = vld [vmem:[%s763 + $0xf1] sm:$0xff]
      %v2544 = vld [vmem:[%s763 + $0xf9] sm:$0xff]
      %v2545 = vld [vmem:[%s763 + $0x109] sm:$0xff]
      %v2546 = vld [vmem:[%s763 + $0x111] sm:$0xff]
      %v2547 = vld [vmem:[%s763 + $0x121] sm:$0xff]
      %v2548 = vld [vmem:[%s763 + $0x129] sm:$0xff]
      %v2549 = vld [vmem:[%s763 + $0x139] sm:$0xff]
      %v2550 = vld [vmem:[%s763 + $0x141] sm:$0xff]
      %v2551 = vld [vmem:[%s763 + $0x151] sm:$0xff]
      %v2552 = vld [vmem:[%s763 + $0x159] sm:$0xff]
      %v2553 = vld [vmem:[%s763 + $0x169] sm:$0xff]
      %v2554 = vld [vmem:[%s763 + $0x171] sm:$0xff]
      %v2555 = vld [vmem:[%s763 + $0x2] sm:$0xff]
      %v2556 = vld [vmem:[%s763 + $0xa] sm:$0xff]
      %v2557 = vld [vmem:[%s763 + $0x1a] sm:$0xff]
      %v2558 = vld [vmem:[%s763 + $0x22] sm:$0xff]
      %v2559 = vld [vmem:[%s763 + $0x32] sm:$0xff]
      %v2560 = vld [vmem:[%s763 + $0x3a] sm:$0xff]
      %v2561 = vld [vmem:[%s763 + $0x4a] sm:$0xff]
      %v2562 = vld [vmem:[%s763 + $0x52] sm:$0xff]
      %v2563 = vld [vmem:[%s763 + $0x62] sm:$0xff]
      %v2564 = vld [vmem:[%s763 + $0x6a] sm:$0xff]
      %v2565 = vld [vmem:[%s763 + $0x7a] sm:$0xff]
      %v2566 = vld [vmem:[%s763 + $0x82] sm:$0xff]
      %v2567 = vld [vmem:[%s763 + $0x92] sm:$0xff]
      %v2568 = vld [vmem:[%s763 + $0x9a] sm:$0xff]
      %v2569 = vld [vmem:[%s763 + $0xaa] sm:$0xff]
      %v2570 = vld [vmem:[%s763 + $0xb2] sm:$0xff]
      %v2571 = vld [vmem:[%s763 + $0xc2] sm:$0xff]
      %v2572 = vld [vmem:[%s763 + $0xca] sm:$0xff]
      %v2573 = vld [vmem:[%s763 + $0xda] sm:$0xff]
      %v2574 = vld [vmem:[%s763 + $0xe2] sm:$0xff]
      %v2575 = vld [vmem:[%s763 + $0xf2] sm:$0xff]
      %v2576 = vld [vmem:[%s763 + $0xfa] sm:$0xff]
      %v2577 = vld [vmem:[%s763 + $0x10a] sm:$0xff]
      %v2578 = vld [vmem:[%s763 + $0x112] sm:$0xff]
      %v2579 = vld [vmem:[%s763 + $0x122] sm:$0xff]
      %v2580 = vld [vmem:[%s763 + $0x12a] sm:$0xff]
      %v2581 = vld [vmem:[%s763 + $0x13a] sm:$0xff]
      %v2582 = vld [vmem:[%s763 + $0x142] sm:$0xff]
      %v2583 = vld [vmem:[%s763 + $0x152] sm:$0xff]
      %v2584 = vld [vmem:[%s763 + $0x15a] sm:$0xff]
      %v2585 = vld [vmem:[%s763 + $0x16a] sm:$0xff]
      %v2586 = vld [vmem:[%s763 + $0x172] sm:$0xff]
      %2619 = vrot.lane.b32.xlu0 %v2363, 4
      %v2620 = vpop.permute.xlu0 %2619
      %2621 = vrot.lane.b32.xlu0 %v2364, 4
      %v2622 = vpop.permute.xlu0 %2621
      %2623 = vrot.lane.b32.xlu0 %v2365, 4
      %v2624 = vpop.permute.xlu0 %2623
      %2625 = vrot.lane.b32.xlu0 %v2366, 4
      %v2626 = vpop.permute.xlu0 %2625
      %2627 = vrot.lane.b32.xlu0 %v2367, 4
      %v2628 = vpop.permute.xlu0 %2627
      %2629 = vrot.lane.b32.xlu0 %v2368, 4
      %v2630 = vpop.permute.xlu0 %2629
      %2631 = vrot.lane.b32.xlu0 %v2369, 4
      %v2632 = vpop.permute.xlu0 %2631
      %2633 = vrot.lane.b32.xlu0 %v2370, 4
      %v2634 = vpop.permute.xlu0 %2633
      %2635 = vrot.lane.b32.xlu0 %v2371, 4
      %v2636 = vpop.permute.xlu0 %2635
      %2637 = vrot.lane.b32.xlu0 %v2372, 4
      %v2638 = vpop.permute.xlu0 %2637
      %2639 = vrot.lane.b32.xlu0 %v2373, 4
      %v2640 = vpop.permute.xlu0 %2639
      %2641 = vrot.lane.b32.xlu0 %v2374, 4
      %v2642 = vpop.permute.xlu0 %2641
      %2643 = vrot.lane.b32.xlu0 %v2375, 4
      %v2644 = vpop.permute.xlu0 %2643
      %2645 = vrot.lane.b32.xlu0 %v2376, 4
      %v2646 = vpop.permute.xlu0 %2645
      %2647 = vrot.lane.b32.xlu0 %v2377, 4
      %v2648 = vpop.permute.xlu0 %2647
      %2649 = vrot.lane.b32.xlu0 %v2378, 4
      %v2650 = vpop.permute.xlu0 %2649
      %2651 = vrot.lane.b32.xlu0 %v2379, 4
      %v2652 = vpop.permute.xlu0 %2651
      %2653 = vrot.lane.b32.xlu0 %v2380, 4
      %v2654 = vpop.permute.xlu0 %2653
      %2655 = vrot.lane.b32.xlu0 %v2381, 4
      %v2656 = vpop.permute.xlu0 %2655
      %2657 = vrot.lane.b32.xlu0 %v2382, 4
      %v2658 = vpop.permute.xlu0 %2657
      %2659 = vrot.lane.b32.xlu0 %v2383, 4
      %v2660 = vpop.permute.xlu0 %2659
      %2661 = vrot.lane.b32.xlu0 %v2384, 4
      %v2662 = vpop.permute.xlu0 %2661
      %2663 = vrot.lane.b32.xlu0 %v2385, 4
      %v2664 = vpop.permute.xlu0 %2663
      %2665 = vrot.lane.b32.xlu0 %v2386, 4
      %v2666 = vpop.permute.xlu0 %2665
      %2667 = vrot.lane.b32.xlu0 %v2387, 4
      %v2668 = vpop.permute.xlu0 %2667
      %2669 = vrot.lane.b32.xlu0 %v2388, 4
      %v2670 = vpop.permute.xlu0 %2669
      %2671 = vrot.lane.b32.xlu0 %v2389, 4
      %v2672 = vpop.permute.xlu0 %2671
      %2673 = vrot.lane.b32.xlu0 %v2390, 4
      %v2674 = vpop.permute.xlu0 %2673
      %2675 = vrot.lane.b32.xlu0 %v2391, 4
      %v2676 = vpop.permute.xlu0 %2675
      %2677 = vrot.lane.b32.xlu0 %v2392, 4
      %v2678 = vpop.permute.xlu0 %2677
      %2679 = vrot.lane.b32.xlu0 %v2393, 4
      %v2680 = vpop.permute.xlu0 %2679
      %2681 = vrot.lane.b32.xlu0 %v2394, 4
      %v2682 = vpop.permute.xlu0 %2681
      %2747 = vrot.lane.b32.xlu0 %v2395, 8
      %v2748 = vpop.permute.xlu0 %2747
      %2749 = vrot.lane.b32.xlu0 %v2396, 8
      %v2750 = vpop.permute.xlu0 %2749
      %2751 = vrot.lane.b32.xlu0 %v2397, 8
      %v2752 = vpop.permute.xlu0 %2751
      %2753 = vrot.lane.b32.xlu0 %v2398, 8
      %v2754 = vpop.permute.xlu0 %2753
      %2755 = vrot.lane.b32.xlu0 %v2399, 8
      %v2756 = vpop.permute.xlu0 %2755
      %2757 = vrot.lane.b32.xlu0 %v2400, 8
      %v2758 = vpop.permute.xlu0 %2757
      %2759 = vrot.lane.b32.xlu0 %v2401, 8
      %v2760 = vpop.permute.xlu0 %2759
      %2761 = vrot.lane.b32.xlu0 %v2402, 8
      %v2762 = vpop.permute.xlu0 %2761
      %2763 = vrot.lane.b32.xlu0 %v2403, 8
      %v2764 = vpop.permute.xlu0 %2763
      %2765 = vrot.lane.b32.xlu0 %v2404, 8
      %v2766 = vpop.permute.xlu0 %2765
      %2767 = vrot.lane.b32.xlu0 %v2405, 8
      %v2768 = vpop.permute.xlu0 %2767
      %2769 = vrot.lane.b32.xlu0 %v2406, 8
      %v2770 = vpop.permute.xlu0 %2769
      %2771 = vrot.lane.b32.xlu0 %v2407, 8
      %v2772 = vpop.permute.xlu0 %2771
      %2773 = vrot.lane.b32.xlu0 %v2408, 8
      %v2774 = vpop.permute.xlu0 %2773
      %2775 = vrot.lane.b32.xlu0 %v2409, 8
      %v2776 = vpop.permute.xlu0 %2775
      %2777 = vrot.lane.b32.xlu0 %v2410, 8
      %v2778 = vpop.permute.xlu0 %2777
      %2779 = vrot.lane.b32.xlu0 %v2411, 8
      %v2780 = vpop.permute.xlu0 %2779
      %2781 = vrot.lane.b32.xlu0 %v2412, 8
      %v2782 = vpop.permute.xlu0 %2781
      %2783 = vrot.lane.b32.xlu0 %v2413, 8
      %v2784 = vpop.permute.xlu0 %2783
      %2785 = vrot.lane.b32.xlu0 %v2414, 8
      %v2786 = vpop.permute.xlu0 %2785
      %2787 = vrot.lane.b32.xlu0 %v2415, 8
      %v2788 = vpop.permute.xlu0 %2787
      %2789 = vrot.lane.b32.xlu0 %v2416, 8
      %v2790 = vpop.permute.xlu0 %2789
      %2791 = vrot.lane.b32.xlu0 %v2417, 8
      %v2792 = vpop.permute.xlu0 %2791
      %2793 = vrot.lane.b32.xlu0 %v2418, 8
      %v2794 = vpop.permute.xlu0 %2793
      %2795 = vrot.lane.b32.xlu0 %v2419, 8
      %v2796 = vpop.permute.xlu0 %2795
      %2797 = vrot.lane.b32.xlu0 %v2420, 8
      %v2798 = vpop.permute.xlu0 %2797
      %2799 = vrot.lane.b32.xlu0 %v2421, 8
      %v2800 = vpop.permute.xlu0 %2799
      %2801 = vrot.lane.b32.xlu0 %v2422, 8
      %v2802 = vpop.permute.xlu0 %2801
      %2803 = vrot.lane.b32.xlu0 %v2423, 8
      %v2804 = vpop.permute.xlu0 %2803
      %2805 = vrot.lane.b32.xlu0 %v2424, 8
      %v2806 = vpop.permute.xlu0 %2805
      %2807 = vrot.lane.b32.xlu0 %v2425, 8
      %v2808 = vpop.permute.xlu0 %2807
      %2809 = vrot.lane.b32.xlu0 %v2426, 8
      %v2810 = vpop.permute.xlu0 %2809
      %2875 = vrot.lane.b32.xlu0 %v2427, 12
      %v2876 = vpop.permute.xlu0 %2875
      %2877 = vrot.lane.b32.xlu0 %v2428, 12
      %v2878 = vpop.permute.xlu0 %2877
      %2879 = vrot.lane.b32.xlu0 %v2429, 12
      %v2880 = vpop.permute.xlu0 %2879
      %2881 = vrot.lane.b32.xlu0 %v2430, 12
      %v2882 = vpop.permute.xlu0 %2881
      %2883 = vrot.lane.b32.xlu0 %v2431, 12
      %v2884 = vpop.permute.xlu0 %2883
      %2885 = vrot.lane.b32.xlu0 %v2432, 12
      %v2886 = vpop.permute.xlu0 %2885
      %2887 = vrot.lane.b32.xlu0 %v2433, 12
      %v2888 = vpop.permute.xlu0 %2887
      %2889 = vrot.lane.b32.xlu0 %v2434, 12
      %v2890 = vpop.permute.xlu0 %2889
      %2891 = vrot.lane.b32.xlu0 %v2435, 12
      %v2892 = vpop.permute.xlu0 %2891
      %2893 = vrot.lane.b32.xlu0 %v2436, 12
      %v2894 = vpop.permute.xlu0 %2893
      %2895 = vrot.lane.b32.xlu0 %v2437, 12
      %v2896 = vpop.permute.xlu0 %2895
      %2897 = vrot.lane.b32.xlu0 %v2438, 12
      %v2898 = vpop.permute.xlu0 %2897
      %2899 = vrot.lane.b32.xlu0 %v2439, 12
      %v2900 = vpop.permute.xlu0 %2899
      %2901 = vrot.lane.b32.xlu0 %v2440, 12
      %v2902 = vpop.permute.xlu0 %2901
      %2903 = vrot.lane.b32.xlu0 %v2441, 12
      %v2904 = vpop.permute.xlu0 %2903
      %2905 = vrot.lane.b32.xlu0 %v2442, 12
      %v2906 = vpop.permute.xlu0 %2905
      %2907 = vrot.lane.b32.xlu0 %v2443, 12
      %v2908 = vpop.permute.xlu0 %2907
      %2909 = vrot.lane.b32.xlu0 %v2444, 12
      %v2910 = vpop.permute.xlu0 %2909
      %2911 = vrot.lane.b32.xlu0 %v2445, 12
      %v2912 = vpop.permute.xlu0 %2911
      %2913 = vrot.lane.b32.xlu0 %v2446, 12
      %v2914 = vpop.permute.xlu0 %2913
      %2915 = vrot.lane.b32.xlu0 %v2447, 12
      %v2916 = vpop.permute.xlu0 %2915
      %2917 = vrot.lane.b32.xlu0 %v2448, 12
      %v2918 = vpop.permute.xlu0 %2917
      %2919 = vrot.lane.b32.xlu0 %v2449, 12
      %v2920 = vpop.permute.xlu0 %2919
      %2921 = vrot.lane.b32.xlu0 %v2450, 12
      %v2922 = vpop.permute.xlu0 %2921
      %2923 = vrot.lane.b32.xlu0 %v2451, 12
      %v2924 = vpop.permute.xlu0 %2923
      %2925 = vrot.lane.b32.xlu0 %v2452, 12
      %v2926 = vpop.permute.xlu0 %2925
      %2927 = vrot.lane.b32.xlu0 %v2453, 12
      %v2928 = vpop.permute.xlu0 %2927
      %2929 = vrot.lane.b32.xlu0 %v2454, 12
      %v2930 = vpop.permute.xlu0 %2929
      %2931 = vrot.lane.b32.xlu0 %v2455, 12
      %v2932 = vpop.permute.xlu0 %2931
      %2933 = vrot.lane.b32.xlu0 %v2456, 12
      %v2934 = vpop.permute.xlu0 %2933
      %2935 = vrot.lane.b32.xlu0 %v2457, 12
      %v2936 = vpop.permute.xlu0 %2935
      %2937 = vrot.lane.b32.xlu0 %v2458, 12
      %v2938 = vpop.permute.xlu0 %2937
      %3003 = vrot.lane.b32.xlu0 %v2459, 16
      %v3004 = vpop.permute.xlu0 %3003
      %3005 = vrot.lane.b32.xlu0 %v2460, 16
      %v3006 = vpop.permute.xlu0 %3005
      %3007 = vrot.lane.b32.xlu0 %v2461, 16
      %v3008 = vpop.permute.xlu0 %3007
      %3009 = vrot.lane.b32.xlu0 %v2462, 16
      %v3010 = vpop.permute.xlu0 %3009
      %3011 = vrot.lane.b32.xlu0 %v2463, 16
      %v3012 = vpop.permute.xlu0 %3011
      %3013 = vrot.lane.b32.xlu0 %v2464, 16
      %v3014 = vpop.permute.xlu0 %3013
      %3015 = vrot.lane.b32.xlu0 %v2465, 16
      %v3016 = vpop.permute.xlu0 %3015
      %3017 = vrot.lane.b32.xlu0 %v2466, 16
      %v3018 = vpop.permute.xlu0 %3017
      %3019 = vrot.lane.b32.xlu0 %v2467, 16
      %v3020 = vpop.permute.xlu0 %3019
      %3021 = vrot.lane.b32.xlu0 %v2468, 16
      %v3022 = vpop.permute.xlu0 %3021
      %3023 = vrot.lane.b32.xlu0 %v2469, 16
      %v3024 = vpop.permute.xlu0 %3023
      %3025 = vrot.lane.b32.xlu0 %v2470, 16
      %v3026 = vpop.permute.xlu0 %3025
      %3027 = vrot.lane.b32.xlu0 %v2471, 16
      %v3028 = vpop.permute.xlu0 %3027
      %3029 = vrot.lane.b32.xlu0 %v2472, 16
      %v3030 = vpop.permute.xlu0 %3029
      %3031 = vrot.lane.b32.xlu0 %v2473, 16
      %v3032 = vpop.permute.xlu0 %3031
      %3033 = vrot.lane.b32.xlu0 %v2474, 16
      %v3034 = vpop.permute.xlu0 %3033
      %3035 = vrot.lane.b32.xlu0 %v2475, 16
      %v3036 = vpop.permute.xlu0 %3035
      %3037 = vrot.lane.b32.xlu0 %v2476, 16
      %v3038 = vpop.permute.xlu0 %3037
      %3039 = vrot.lane.b32.xlu0 %v2477, 16
      %v3040 = vpop.permute.xlu0 %3039
      %3041 = vrot.lane.b32.xlu0 %v2478, 16
      %v3042 = vpop.permute.xlu0 %3041
      %3043 = vrot.lane.b32.xlu0 %v2479, 16
      %v3044 = vpop.permute.xlu0 %3043
      %3045 = vrot.lane.b32.xlu0 %v2480, 16
      %v3046 = vpop.permute.xlu0 %3045
      %3047 = vrot.lane.b32.xlu0 %v2481, 16
      %v3048 = vpop.permute.xlu0 %3047
      %3049 = vrot.lane.b32.xlu0 %v2482, 16
      %v3050 = vpop.permute.xlu0 %3049
      %3051 = vrot.lane.b32.xlu0 %v2483, 16
      %v3052 = vpop.permute.xlu0 %3051
      %3053 = vrot.lane.b32.xlu0 %v2484, 16
      %v3054 = vpop.permute.xlu0 %3053
      %3055 = vrot.lane.b32.xlu0 %v2485, 16
      %v3056 = vpop.permute.xlu0 %3055
      %3057 = vrot.lane.b32.xlu0 %v2486, 16
      %v3058 = vpop.permute.xlu0 %3057
      %3059 = vrot.lane.b32.xlu0 %v2487, 16
      %v3060 = vpop.permute.xlu0 %3059
      %3061 = vrot.lane.b32.xlu0 %v2488, 16
      %v3062 = vpop.permute.xlu0 %3061
      %3063 = vrot.lane.b32.xlu0 %v2489, 16
      %v3064 = vpop.permute.xlu0 %3063
      %3065 = vrot.lane.b32.xlu0 %v2490, 16
      %v3066 = vpop.permute.xlu0 %3065
      %3131 = vrot.lane.b32.xlu0 %v2491, 20
      %v3132 = vpop.permute.xlu0 %3131
      %3133 = vrot.lane.b32.xlu0 %v2492, 20
      %v3134 = vpop.permute.xlu0 %3133
      %3135 = vrot.lane.b32.xlu0 %v2493, 20
      %v3136 = vpop.permute.xlu0 %3135
      %3137 = vrot.lane.b32.xlu0 %v2494, 20
      %v3138 = vpop.permute.xlu0 %3137
      %3139 = vrot.lane.b32.xlu0 %v2495, 20
      %v3140 = vpop.permute.xlu0 %3139
      %3141 = vrot.lane.b32.xlu0 %v2496, 20
      %v3142 = vpop.permute.xlu0 %3141
      %3143 = vrot.lane.b32.xlu0 %v2497, 20
      %v3144 = vpop.permute.xlu0 %3143
      %3145 = vrot.lane.b32.xlu0 %v2498, 20
      %v3146 = vpop.permute.xlu0 %3145
      %3147 = vrot.lane.b32.xlu0 %v2499, 20
      %v3148 = vpop.permute.xlu0 %3147
      %3149 = vrot.lane.b32.xlu0 %v2500, 20
      %v3150 = vpop.permute.xlu0 %3149
      %3151 = vrot.lane.b32.xlu0 %v2501, 20
      %v3152 = vpop.permute.xlu0 %3151
      %3153 = vrot.lane.b32.xlu0 %v2502, 20
      %v3154 = vpop.permute.xlu0 %3153
      %3155 = vrot.lane.b32.xlu0 %v2503, 20
      %v3156 = vpop.permute.xlu0 %3155
      %3157 = vrot.lane.b32.xlu0 %v2504, 20
      %v3158 = vpop.permute.xlu0 %3157
      %3159 = vrot.lane.b32.xlu0 %v2505, 20
      %v3160 = vpop.permute.xlu0 %3159
      %3161 = vrot.lane.b32.xlu0 %v2506, 20
      %v3162 = vpop.permute.xlu0 %3161
      %3163 = vrot.lane.b32.xlu0 %v2507, 20
      %v3164 = vpop.permute.xlu0 %3163
      %3165 = vrot.lane.b32.xlu0 %v2508, 20
      %v3166 = vpop.permute.xlu0 %3165
      %3167 = vrot.lane.b32.xlu0 %v2509, 20
      %v3168 = vpop.permute.xlu0 %3167
      %3169 = vrot.lane.b32.xlu0 %v2510, 20
      %v3170 = vpop.permute.xlu0 %3169
      %3171 = vrot.lane.b32.xlu0 %v2511, 20
      %v3172 = vpop.permute.xlu0 %3171
      %3173 = vrot.lane.b32.xlu0 %v2512, 20
      %v3174 = vpop.permute.xlu0 %3173
      %3175 = vrot.lane.b32.xlu0 %v2513, 20
      %v3176 = vpop.permute.xlu0 %3175
      %3177 = vrot.lane.b32.xlu0 %v2514, 20
      %v3178 = vpop.permute.xlu0 %3177
      %3179 = vrot.lane.b32.xlu0 %v2515, 20
      %v3180 = vpop.permute.xlu0 %3179
      %3181 = vrot.lane.b32.xlu0 %v2516, 20
      %v3182 = vpop.permute.xlu0 %3181
      %3183 = vrot.lane.b32.xlu0 %v2517, 20
      %v3184 = vpop.permute.xlu0 %3183
      %3185 = vrot.lane.b32.xlu0 %v2518, 20
      %v3186 = vpop.permute.xlu0 %3185
      %3187 = vrot.lane.b32.xlu0 %v2519, 20
      %v3188 = vpop.permute.xlu0 %3187
      %3189 = vrot.lane.b32.xlu0 %v2520, 20
      %v3190 = vpop.permute.xlu0 %3189
      %3191 = vrot.lane.b32.xlu0 %v2521, 20
      %v3192 = vpop.permute.xlu0 %3191
      %3193 = vrot.lane.b32.xlu0 %v2522, 20
      %v3194 = vpop.permute.xlu0 %3193
      %3259 = vrot.lane.b32.xlu0 %v2523, 24
      %v3260 = vpop.permute.xlu0 %3259
      %3261 = vrot.lane.b32.xlu0 %v2524, 24
      %v3262 = vpop.permute.xlu0 %3261
      %3263 = vrot.lane.b32.xlu0 %v2525, 24
      %v3264 = vpop.permute.xlu0 %3263
      %3265 = vrot.lane.b32.xlu0 %v2526, 24
      %v3266 = vpop.permute.xlu0 %3265
      %3267 = vrot.lane.b32.xlu0 %v2527, 24
      %v3268 = vpop.permute.xlu0 %3267
      %3269 = vrot.lane.b32.xlu0 %v2528, 24
      %v3270 = vpop.permute.xlu0 %3269
      %3271 = vrot.lane.b32.xlu0 %v2529, 24
      %v3272 = vpop.permute.xlu0 %3271
      %3273 = vrot.lane.b32.xlu0 %v2530, 24
      %v3274 = vpop.permute.xlu0 %3273
      %3275 = vrot.lane.b32.xlu0 %v2531, 24
      %v3276 = vpop.permute.xlu0 %3275
      %3277 = vrot.lane.b32.xlu0 %v2532, 24
      %v3278 = vpop.permute.xlu0 %3277
      %3279 = vrot.lane.b32.xlu0 %v2533, 24
      %v3280 = vpop.permute.xlu0 %3279
      %3281 = vrot.lane.b32.xlu0 %v2534, 24
      %v3282 = vpop.permute.xlu0 %3281
      %3283 = vrot.lane.b32.xlu0 %v2535, 24
      %v3284 = vpop.permute.xlu0 %3283
      %3285 = vrot.lane.b32.xlu0 %v2536, 24
      %v3286 = vpop.permute.xlu0 %3285
      %3287 = vrot.lane.b32.xlu0 %v2537, 24
      %v3288 = vpop.permute.xlu0 %3287
      %3289 = vrot.lane.b32.xlu0 %v2538, 24
      %v3290 = vpop.permute.xlu0 %3289
      %3291 = vrot.lane.b32.xlu0 %v2539, 24
      %v3292 = vpop.permute.xlu0 %3291
      %3293 = vrot.lane.b32.xlu0 %v2540, 24
      %v3294 = vpop.permute.xlu0 %3293
      %3295 = vrot.lane.b32.xlu0 %v2541, 24
      %v3296 = vpop.permute.xlu0 %3295
      %3297 = vrot.lane.b32.xlu0 %v2542, 24
      %v3298 = vpop.permute.xlu0 %3297
      %3299 = vrot.lane.b32.xlu0 %v2543, 24
      %v3300 = vpop.permute.xlu0 %3299
      %3301 = vrot.lane.b32.xlu0 %v2544, 24
      %v3302 = vpop.permute.xlu0 %3301
      %3303 = vrot.lane.b32.xlu0 %v2545, 24
      %v3304 = vpop.permute.xlu0 %3303
      %3305 = vrot.lane.b32.xlu0 %v2546, 24
      %v3306 = vpop.permute.xlu0 %3305
      %3307 = vrot.lane.b32.xlu0 %v2547, 24
      %v3308 = vpop.permute.xlu0 %3307
      %3309 = vrot.lane.b32.xlu0 %v2548, 24
      %v3310 = vpop.permute.xlu0 %3309
      %3311 = vrot.lane.b32.xlu0 %v2549, 24
      %v3312 = vpop.permute.xlu0 %3311
      %3313 = vrot.lane.b32.xlu0 %v2550, 24
      %v3314 = vpop.permute.xlu0 %3313
      %3315 = vrot.lane.b32.xlu0 %v2551, 24
      %v3316 = vpop.permute.xlu0 %3315
      %3317 = vrot.lane.b32.xlu0 %v2552, 24
      %v3318 = vpop.permute.xlu0 %3317
      %3319 = vrot.lane.b32.xlu0 %v2553, 24
      %v3320 = vpop.permute.xlu0 %3319
      %3321 = vrot.lane.b32.xlu0 %v2554, 24
      %v3322 = vpop.permute.xlu0 %3321
      %3387 = vrot.lane.b32.xlu0 %v2555, 28
      %v3388 = vpop.permute.xlu0 %3387
      %3389 = vrot.lane.b32.xlu0 %v2556, 28
      %v3390 = vpop.permute.xlu0 %3389
      %3391 = vrot.lane.b32.xlu0 %v2557, 28
      %v3392 = vpop.permute.xlu0 %3391
      %3393 = vrot.lane.b32.xlu0 %v2558, 28
      %v3394 = vpop.permute.xlu0 %3393
      %3395 = vrot.lane.b32.xlu0 %v2559, 28
      %v3396 = vpop.permute.xlu0 %3395
      %3397 = vrot.lane.b32.xlu0 %v2560, 28
      %v3398 = vpop.permute.xlu0 %3397
      %3399 = vrot.lane.b32.xlu0 %v2561, 28
      %v3400 = vpop.permute.xlu0 %3399
      %3401 = vrot.lane.b32.xlu0 %v2562, 28
      %v3402 = vpop.permute.xlu0 %3401
      %3403 = vrot.lane.b32.xlu0 %v2563, 28
      %v3404 = vpop.permute.xlu0 %3403
      %3405 = vrot.lane.b32.xlu0 %v2564, 28
      %v3406 = vpop.permute.xlu0 %3405
      %3407 = vrot.lane.b32.xlu0 %v2565, 28
      %v3408 = vpop.permute.xlu0 %3407
      %3409 = vrot.lane.b32.xlu0 %v2566, 28
      %v3410 = vpop.permute.xlu0 %3409
      %3411 = vrot.lane.b32.xlu0 %v2567, 28
      %v3412 = vpop.permute.xlu0 %3411
      %3413 = vrot.lane.b32.xlu0 %v2568, 28
      %v3414 = vpop.permute.xlu0 %3413
      %3415 = vrot.lane.b32.xlu0 %v2569, 28
      %v3416 = vpop.permute.xlu0 %3415
      %3417 = vrot.lane.b32.xlu0 %v2570, 28
      %v3418 = vpop.permute.xlu0 %3417
      %3419 = vrot.lane.b32.xlu0 %v2571, 28
      %v3420 = vpop.permute.xlu0 %3419
      %3421 = vrot.lane.b32.xlu0 %v2572, 28
      %v3422 = vpop.permute.xlu0 %3421
      %3423 = vrot.lane.b32.xlu0 %v2573, 28
      %v3424 = vpop.permute.xlu0 %3423
      %3425 = vrot.lane.b32.xlu0 %v2574, 28
      %v3426 = vpop.permute.xlu0 %3425
      %3427 = vrot.lane.b32.xlu0 %v2575, 28
      %v3428 = vpop.permute.xlu0 %3427
      %3429 = vrot.lane.b32.xlu0 %v2576, 28
      %v3430 = vpop.permute.xlu0 %3429
      %3431 = vrot.lane.b32.xlu0 %v2577, 28
      %v3432 = vpop.permute.xlu0 %3431
      %3433 = vrot.lane.b32.xlu0 %v2578, 28
      %v3434 = vpop.permute.xlu0 %3433
      %3435 = vrot.lane.b32.xlu0 %v2579, 28
      %v3436 = vpop.permute.xlu0 %3435
      %3437 = vrot.lane.b32.xlu0 %v2580, 28
      %v3438 = vpop.permute.xlu0 %3437
      %3439 = vrot.lane.b32.xlu0 %v2581, 28
      %v3440 = vpop.permute.xlu0 %3439
      %3441 = vrot.lane.b32.xlu0 %v2582, 28
      %v3442 = vpop.permute.xlu0 %3441
      %3443 = vrot.lane.b32.xlu0 %v2583, 28
      %v3444 = vpop.permute.xlu0 %3443
      %3445 = vrot.lane.b32.xlu0 %v2584, 28
      %v3446 = vpop.permute.xlu0 %3445
      %3447 = vrot.lane.b32.xlu0 %v2585, 28
      %v3448 = vpop.permute.xlu0 %3447
      %3449 = vrot.lane.b32.xlu0 %v2586, 28
      %v3450 = vpop.permute.xlu0 %3449
      %v3483 = vsel %vm261, %v2331, %v2620
      %v3484 = vsel %vm261, %v2332, %v2622
      %v3485 = vsel %vm261, %v2333, %v2624
      %v3486 = vsel %vm261, %v2334, %v2626
      %v3487 = vsel %vm261, %v2335, %v2628
      %v3488 = vsel %vm261, %v2336, %v2630
      %v3489 = vsel %vm261, %v2337, %v2632
      %v3490 = vsel %vm261, %v2338, %v2634
      %v3491 = vsel %vm261, %v2339, %v2636
      %v3492 = vsel %vm261, %v2340, %v2638
      %v3493 = vsel %vm261, %v2341, %v2640
      %v3494 = vsel %vm261, %v2342, %v2642
      %v3495 = vsel %vm261, %v2343, %v2644
      %v3496 = vsel %vm261, %v2344, %v2646
      %v3497 = vsel %vm261, %v2345, %v2648
      %v3498 = vsel %vm261, %v2346, %v2650
      %v3499 = vsel %vm261, %v2347, %v2652
      %v3500 = vsel %vm261, %v2348, %v2654
      %v3501 = vsel %vm261, %v2349, %v2656
      %v3502 = vsel %vm261, %v2350, %v2658
      %v3503 = vsel %vm261, %v2351, %v2660
      %v3504 = vsel %vm261, %v2352, %v2662
      %v3505 = vsel %vm261, %v2353, %v2664
      %v3506 = vsel %vm261, %v2354, %v2666
      %v3507 = vsel %vm261, %v2355, %v2668
      %v3508 = vsel %vm261, %v2356, %v2670
      %v3509 = vsel %vm261, %v2357, %v2672
      %v3510 = vsel %vm261, %v2358, %v2674
      %v3511 = vsel %vm261, %v2359, %v2676
      %v3512 = vsel %vm261, %v2360, %v2678
      %v3513 = vsel %vm261, %v2361, %v2680
      %v3514 = vsel %vm261, %v2362, %v2682
      %v3515 = vsel %vm1756, %v3483, %v2748
      %v3516 = vsel %vm1756, %v3484, %v2750
      %v3517 = vsel %vm1756, %v3485, %v2752
      %v3518 = vsel %vm1756, %v3486, %v2754
      %v3519 = vsel %vm1756, %v3487, %v2756
      %v3520 = vsel %vm1756, %v3488, %v2758
      %v3521 = vsel %vm1756, %v3489, %v2760
      %v3522 = vsel %vm1756, %v3490, %v2762
      %v3523 = vsel %vm1756, %v3491, %v2764
      %v3524 = vsel %vm1756, %v3492, %v2766
      %v3525 = vsel %vm1756, %v3493, %v2768
      %v3526 = vsel %vm1756, %v3494, %v2770
      %v3527 = vsel %vm1756, %v3495, %v2772
      %v3528 = vsel %vm1756, %v3496, %v2774
      %v3529 = vsel %vm1756, %v3497, %v2776
      %v3530 = vsel %vm1756, %v3498, %v2778
      %v3531 = vsel %vm1756, %v3499, %v2780
      %v3532 = vsel %vm1756, %v3500, %v2782
      %v3533 = vsel %vm1756, %v3501, %v2784
      %v3534 = vsel %vm1756, %v3502, %v2786
      %v3535 = vsel %vm1756, %v3503, %v2788
      %v3536 = vsel %vm1756, %v3504, %v2790
      %v3537 = vsel %vm1756, %v3505, %v2792
      %v3538 = vsel %vm1756, %v3506, %v2794
      %v3539 = vsel %vm1756, %v3507, %v2796
      %v3540 = vsel %vm1756, %v3508, %v2798
      %v3541 = vsel %vm1756, %v3509, %v2800
      %v3542 = vsel %vm1756, %v3510, %v2802
      %v3543 = vsel %vm1756, %v3511, %v2804
      %v3544 = vsel %vm1756, %v3512, %v2806
      %v3545 = vsel %vm1756, %v3513, %v2808
      %v3546 = vsel %vm1756, %v3514, %v2810
      %v3547 = vsel %vm1789, %v3515, %v2876
      %v3548 = vsel %vm1789, %v3516, %v2878
      %v3549 = vsel %vm1789, %v3517, %v2880
      %v3550 = vsel %vm1789, %v3518, %v2882
      %v3551 = vsel %vm1789, %v3519, %v2884
      %v3552 = vsel %vm1789, %v3520, %v2886
      %v3553 = vsel %vm1789, %v3521, %v2888
      %v3554 = vsel %vm1789, %v3522, %v2890
      %v3555 = vsel %vm1789, %v3523, %v2892
      %v3556 = vsel %vm1789, %v3524, %v2894
      %v3557 = vsel %vm1789, %v3525, %v2896
      %v3558 = vsel %vm1789, %v3526, %v2898
      %v3559 = vsel %vm1789, %v3527, %v2900
      %v3560 = vsel %vm1789, %v3528, %v2902
      %v3561 = vsel %vm1789, %v3529, %v2904
      %v3562 = vsel %vm1789, %v3530, %v2906
      %v3563 = vsel %vm1789, %v3531, %v2908
      %v3564 = vsel %vm1789, %v3532, %v2910
      %v3565 = vsel %vm1789, %v3533, %v2912
      %v3566 = vsel %vm1789, %v3534, %v2914
      %v3567 = vsel %vm1789, %v3535, %v2916
      %v3568 = vsel %vm1789, %v3536, %v2918
      %v3569 = vsel %vm1789, %v3537, %v2920
      %v3570 = vsel %vm1789, %v3538, %v2922
      %v3571 = vsel %vm1789, %v3539, %v2924
      %v3572 = vsel %vm1789, %v3540, %v2926
      %v3573 = vsel %vm1789, %v3541, %v2928
      %v3574 = vsel %vm1789, %v3542, %v2930
      %v3575 = vsel %vm1789, %v3543, %v2932
      %v3576 = vsel %vm1789, %v3544, %v2934
      %v3577 = vsel %vm1789, %v3545, %v2936
      %v3578 = vsel %vm1789, %v3546, %v2938
      %v3579 = vsel %vm1822, %v3547, %v3004
      %v3580 = vsel %vm1822, %v3548, %v3006
      %v3581 = vsel %vm1822, %v3549, %v3008
      %v3582 = vsel %vm1822, %v3550, %v3010
      %v3583 = vsel %vm1822, %v3551, %v3012
      %v3584 = vsel %vm1822, %v3552, %v3014
      %v3585 = vsel %vm1822, %v3553, %v3016
      %v3586 = vsel %vm1822, %v3554, %v3018
      %v3587 = vsel %vm1822, %v3555, %v3020
      %v3588 = vsel %vm1822, %v3556, %v3022
      %v3589 = vsel %vm1822, %v3557, %v3024
      %v3590 = vsel %vm1822, %v3558, %v3026
      %v3591 = vsel %vm1822, %v3559, %v3028
      %v3592 = vsel %vm1822, %v3560, %v3030
      %v3593 = vsel %vm1822, %v3561, %v3032
      %v3594 = vsel %vm1822, %v3562, %v3034
      %v3595 = vsel %vm1822, %v3563, %v3036
      %v3596 = vsel %vm1822, %v3564, %v3038
      %v3597 = vsel %vm1822, %v3565, %v3040
      %v3598 = vsel %vm1822, %v3566, %v3042
      %v3599 = vsel %vm1822, %v3567, %v3044
      %v3600 = vsel %vm1822, %v3568, %v3046
      %v3601 = vsel %vm1822, %v3569, %v3048
      %v3602 = vsel %vm1822, %v3570, %v3050
      %v3603 = vsel %vm1822, %v3571, %v3052
      %v3604 = vsel %vm1822, %v3572, %v3054
      %v3605 = vsel %vm1822, %v3573, %v3056
      %v3606 = vsel %vm1822, %v3574, %v3058
      %v3607 = vsel %vm1822, %v3575, %v3060
      %v3608 = vsel %vm1822, %v3576, %v3062
      %v3609 = vsel %vm1822, %v3577, %v3064
      %v3610 = vsel %vm1822, %v3578, %v3066
      %v3611 = vsel %vm1855, %v3579, %v3132
      %v3612 = vsel %vm1855, %v3580, %v3134
      %v3613 = vsel %vm1855, %v3581, %v3136
      %v3614 = vsel %vm1855, %v3582, %v3138
      %v3615 = vsel %vm1855, %v3583, %v3140
      %v3616 = vsel %vm1855, %v3584, %v3142
      %v3617 = vsel %vm1855, %v3585, %v3144
      %v3618 = vsel %vm1855, %v3586, %v3146
      %v3619 = vsel %vm1855, %v3587, %v3148
      %v3620 = vsel %vm1855, %v3588, %v3150
      %v3621 = vsel %vm1855, %v3589, %v3152
      %v3622 = vsel %vm1855, %v3590, %v3154
      %v3623 = vsel %vm1855, %v3591, %v3156
      %v3624 = vsel %vm1855, %v3592, %v3158
      %v3625 = vsel %vm1855, %v3593, %v3160
      %v3626 = vsel %vm1855, %v3594, %v3162
      %v3627 = vsel %vm1855, %v3595, %v3164
      %v3628 = vsel %vm1855, %v3596, %v3166
      %v3629 = vsel %vm1855, %v3597, %v3168
      %v3630 = vsel %vm1855, %v3598, %v3170
      %v3631 = vsel %vm1855, %v3599, %v3172
      %v3632 = vsel %vm1855, %v3600, %v3174
      %v3633 = vsel %vm1855, %v3601, %v3176
      %v3634 = vsel %vm1855, %v3602, %v3178
      %v3635 = vsel %vm1855, %v3603, %v3180
      %v3636 = vsel %vm1855, %v3604, %v3182
      %v3637 = vsel %vm1855, %v3605, %v3184
      %v3638 = vsel %vm1855, %v3606, %v3186
      %v3639 = vsel %vm1855, %v3607, %v3188
      %v3640 = vsel %vm1855, %v3608, %v3190
      %v3641 = vsel %vm1855, %v3609, %v3192
      %v3642 = vsel %vm1855, %v3610, %v3194
      %v3643 = vsel %vm1888, %v3611, %v3260
      %v3644 = vsel %vm1888, %v3612, %v3262
      %v3645 = vsel %vm1888, %v3613, %v3264
      %v3646 = vsel %vm1888, %v3614, %v3266
      %v3647 = vsel %vm1888, %v3615, %v3268
      %v3648 = vsel %vm1888, %v3616, %v3270
      %v3649 = vsel %vm1888, %v3617, %v3272
      %v3650 = vsel %vm1888, %v3618, %v3274
      %v3651 = vsel %vm1888, %v3619, %v3276
      %v3652 = vsel %vm1888, %v3620, %v3278
      %v3653 = vsel %vm1888, %v3621, %v3280
      %v3654 = vsel %vm1888, %v3622, %v3282
      %v3655 = vsel %vm1888, %v3623, %v3284
      %v3656 = vsel %vm1888, %v3624, %v3286
      %v3657 = vsel %vm1888, %v3625, %v3288
      %v3658 = vsel %vm1888, %v3626, %v3290
      %v3659 = vsel %vm1888, %v3627, %v3292
      %v3660 = vsel %vm1888, %v3628, %v3294
      %v3661 = vsel %vm1888, %v3629, %v3296
      %v3662 = vsel %vm1888, %v3630, %v3298
      %v3663 = vsel %vm1888, %v3631, %v3300
      %v3664 = vsel %vm1888, %v3632, %v3302
      %v3665 = vsel %vm1888, %v3633, %v3304
      %v3666 = vsel %vm1888, %v3634, %v3306
      %v3667 = vsel %vm1888, %v3635, %v3308
      %v3668 = vsel %vm1888, %v3636, %v3310
      %v3669 = vsel %vm1888, %v3637, %v3312
      %v3670 = vsel %vm1888, %v3638, %v3314
      %v3671 = vsel %vm1888, %v3639, %v3316
      %v3672 = vsel %vm1888, %v3640, %v3318
      %v3673 = vsel %vm1888, %v3641, %v3320
      %v3674 = vsel %vm1888, %v3642, %v3322
      %v3675 = vsel %vm1921, %v3643, %v3388
      %v3676 = vsel %vm1921, %v3644, %v3390
      %v3677 = vsel %vm1921, %v3645, %v3392
      %v3678 = vsel %vm1921, %v3646, %v3394
      %v3679 = vsel %vm1921, %v3647, %v3396
      %v3680 = vsel %vm1921, %v3648, %v3398
      %v3681 = vsel %vm1921, %v3649, %v3400
      %v3682 = vsel %vm1921, %v3650, %v3402
      %v3683 = vsel %vm1921, %v3651, %v3404
      %v3684 = vsel %vm1921, %v3652, %v3406
      %v3685 = vsel %vm1921, %v3653, %v3408
      %v3686 = vsel %vm1921, %v3654, %v3410
      %v3687 = vsel %vm1921, %v3655, %v3412
      %v3688 = vsel %vm1921, %v3656, %v3414
      %v3689 = vsel %vm1921, %v3657, %v3416
      %v3690 = vsel %vm1921, %v3658, %v3418
      %v3691 = vsel %vm1921, %v3659, %v3420
      %v3692 = vsel %vm1921, %v3660, %v3422
      %v3693 = vsel %vm1921, %v3661, %v3424
      %v3694 = vsel %vm1921, %v3662, %v3426
      %v3695 = vsel %vm1921, %v3663, %v3428
      %v3696 = vsel %vm1921, %v3664, %v3430
      %v3697 = vsel %vm1921, %v3665, %v3432
      %v3698 = vsel %vm1921, %v3666, %v3434
      %v3699 = vsel %vm1921, %v3667, %v3436
      %v3700 = vsel %vm1921, %v3668, %v3438
      %v3701 = vsel %vm1921, %v3669, %v3440
      %v3702 = vsel %vm1921, %v3670, %v3442
      %v3703 = vsel %vm1921, %v3671, %v3444
      %v3704 = vsel %vm1921, %v3672, %v3446
      %v3705 = vsel %vm1921, %v3673, %v3448
      %v3706 = vsel %vm1921, %v3674, %v3450
      %v3707 = vpack.c.bf16 %v3676, %v3675
      %v3708 = vpack.c.bf16 %v3678, %v3677
      %v3709 = vpack.c.bf16 %v3680, %v3679
      %v3710 = vpack.c.bf16 %v3682, %v3681
      %v3711 = vpack.c.bf16 %v3684, %v3683
      %v3712 = vpack.c.bf16 %v3686, %v3685
      %v3713 = vpack.c.bf16 %v3688, %v3687
      %v3714 = vpack.c.bf16 %v3690, %v3689
      %v3715 = vpack.c.bf16 %v3692, %v3691
      %v3716 = vpack.c.bf16 %v3694, %v3693
      %v3717 = vpack.c.bf16 %v3696, %v3695
      %v3718 = vpack.c.bf16 %v3698, %v3697
      %v3719 = vpack.c.bf16 %v3700, %v3699
      %v3720 = vpack.c.bf16 %v3702, %v3701
      %v3721 = vpack.c.bf16 %v3704, %v3703
      %v3722 = vpack.c.bf16 %v3706, %v3705
      %s3723 = scalar_lea.vmem %s250, 16
      %v3724 = vld [vmem:[%s3723] sm:$0xf]
      %v3725 = vld [vmem:[%s3723 + $0x4] sm:$0xf]
      %v3726 = vld [vmem:[%s3723 + $0x8] sm:$0xf]
      %v3727 = vld [vmem:[%s3723 + $0xc] sm:$0xf]
      %v3728 = vld [vmem:[%s3] sm:$0x1]
      %v3730 = vlaneseq
      %v3731 = vshrl.u32 %v3730, 7
      %v3732 = vsub.s32 0, %v3731
      %v3733 = vrot.slane %v3728, %v3732
      %v3739 = vunpack.c.l.b16 %v3724
      %v3740 = vunpack.c.l.b16 %v3725
      %v3741 = vunpack.c.l.b16 %v3726
      %v3742 = vunpack.c.l.b16 %v3727
      %v3743 = vpack.c.b16 %v3740, %v3739
      %v3744 = vpack.c.b16 %v3742, %v3741
      %v3748 = vsel %vm1993, %v3707, 0
      %v3751 = vsel %vm1993, %v3708, 0
      %v3754 = vsel %vm1993, %v3709, 0
      %v3757 = vsel %vm1993, %v3710, 0
      %v3760 = vsel %vm1993, %v3711, 0
      %v3763 = vsel %vm1993, %v3712, 0
      %v3766 = vsel %vm1993, %v3713, 0
      %v3769 = vsel %vm1993, %v3714, 0
      %v3772 = vsel %vm1993, %v3715, 0
      %v3775 = vsel %vm1993, %v3716, 0
      %v3778 = vsel %vm1993, %v3717, 0
      %v3781 = vsel %vm1993, %v3718, 0
      %v3784 = vsel %vm1993, %v3719, 0
      %v3787 = vsel %vm1993, %v3720, 0
      %v3790 = vsel %vm1993, %v3721, 0
      %v3793 = vsel %vm1993, %v3722, 0
      %3795 = vmatprep.subr.bf16.mxu0 0
      %3796 = vmatpush1.bf16.msra.mxu0 %v3743
      %3797 = vmatprep.subr.bf16.mxu0 0
      %3798 = vmatpush1.bf16.msra.mxu0 %v3744
      %3799 = vmatprep.subr.bf16.mxu0 0
      %3800 = vmatpush1.bf16.msra.mxu0 0
      %3801 = vmatprep.subr.bf16.mxu0 0
      %3802 = vmatpush1.bf16.msra.mxu0 0
      %3803 = vmatprep.subr.bf16.mxu0 0
      %3804 = vmatpush1.bf16.msra.mxu0 0
      %3805 = vmatprep.subr.bf16.mxu0 0
      %3806 = vmatpush1.bf16.msra.mxu0 0
      %3807 = vmatprep.subr.bf16.mxu0 0
      %3808 = vmatpush1.bf16.msra.mxu0 0
      %3809 = vmatprep.subr.bf16.mxu0 0
      %3810 = vmatpush1.bf16.msra.mxu0 0
      %3811 = vmatprep.subr.bf16.mxu0 0
      %3812 = vmatpush1.bf16.msra.mxu0 0
      %3813 = vmatprep.subr.bf16.mxu0 0
      %3814 = vmatpush1.bf16.msra.mxu0 0
      %3815 = vmatprep.subr.bf16.mxu0 0
      %3816 = vmatpush1.bf16.msra.mxu0 0
      %3817 = vmatprep.subr.bf16.mxu0 0
      %3818 = vmatpush1.bf16.msra.mxu0 0
      %3819 = vmatprep.subr.bf16.mxu0 0
      %3820 = vmatpush1.bf16.msra.mxu0 0
      %3821 = vmatprep.subr.bf16.mxu0 0
      %3822 = vmatpush1.bf16.msra.mxu0 0
      %3823 = vmatprep.subr.bf16.mxu0 0
      %3824 = vmatpush1.bf16.msra.mxu0 0
      %3825 = vmatprep.subr.bf16.mxu0 0
      %3826 = vmatpush1.bf16.msra.mxu0 0
      %3827 = vmatprep.mubr.bf16.mxu0 0
      %3828 = vmatmul.mubr.bf16.gmra.mrb[0].mxu0 %v3748
      %v3829 = vpop.f32.mrb[0].mxu0
      %v3830 = vadd.f32 %v3733, %v3829
      %v3831 = vpop.f32.mrb[0].mxu0
      %v3832 = vpop.f32.mrb[0].mxu0
      %v3833 = vadd.f32 %v3733, %v3832
      %v3834 = vpop.f32.mrb[0].mxu0
      %3835 = vmatprep.mubr.bf16.mxu0 0
      %3836 = vmatmul.mubr.bf16.gmra.mrb[0].mxu0 %v3751
      %v3837 = vpop.f32.mrb[0].mxu0
      %v3838 = vadd.f32 %v3733, %v3837
      %v3839 = vpop.f32.mrb[0].mxu0
      %v3840 = vpop.f32.mrb[0].mxu0
      %v3841 = vadd.f32 %v3733, %v3840
      %v3842 = vpop.f32.mrb[0].mxu0
      %3843 = vmatprep.mubr.bf16.mxu0 0
      %3844 = vmatmul.mubr.bf16.gmra.mrb[0].mxu0 %v3754
      %v3845 = vpop.f32.mrb[0].mxu0
      %v3846 = vadd.f32 %v3733, %v3845
      %v3847 = vpop.f32.mrb[0].mxu0
      %v3848 = vpop.f32.mrb[0].mxu0
      %v3849 = vadd.f32 %v3733, %v3848
      %v3850 = vpop.f32.mrb[0].mxu0
      %3851 = vmatprep.mubr.bf16.mxu0 0
      %3852 = vmatmul.mubr.bf16.gmra.mrb[0].mxu0 %v3757
      %v3853 = vpop.f32.mrb[0].mxu0
      %v3854 = vadd.f32 %v3733, %v3853
      %v3855 = vpop.f32.mrb[0].mxu0
      %v3856 = vpop.f32.mrb[0].mxu0
      %v3857 = vadd.f32 %v3733, %v3856
      %v3858 = vpop.f32.mrb[0].mxu0
      %3859 = vmatprep.mubr.bf16.mxu0 0
      %3860 = vmatmul.mubr.bf16.gmra.mrb[0].mxu0 %v3760
      %v3861 = vpop.f32.mrb[0].mxu0
      %v3862 = vadd.f32 %v3733, %v3861
      %v3863 = vpop.f32.mrb[0].mxu0
      %v3864 = vpop.f32.mrb[0].mxu0
      %v3865 = vadd.f32 %v3733, %v3864
      %v3866 = vpop.f32.mrb[0].mxu0
      %3867 = vmatprep.mubr.bf16.mxu0 0
      %3868 = vmatmul.mubr.bf16.gmra.mrb[0].mxu0 %v3763
      %v3869 = vpop.f32.mrb[0].mxu0
      %v3870 = vadd.f32 %v3733, %v3869
      %v3871 = vpop.f32.mrb[0].mxu0
      %v3872 = vpop.f32.mrb[0].mxu0
      %v3873 = vadd.f32 %v3733, %v3872
      %v3874 = vpop.f32.mrb[0].mxu0
      %3875 = vmatprep.mubr.bf16.mxu0 0
      %3876 = vmatmul.mubr.bf16.gmra.mrb[0].mxu0 %v3766
      %v3877 = vpop.f32.mrb[0].mxu0
      %v3878 = vadd.f32 %v3733, %v3877
      %v3879 = vpop.f32.mrb[0].mxu0
      %v3880 = vpop.f32.mrb[0].mxu0
      %v3881 = vadd.f32 %v3733, %v3880
      %v3882 = vpop.f32.mrb[0].mxu0
      %3883 = vmatprep.mubr.bf16.mxu0 0
      %3884 = vmatmul.mubr.bf16.gmra.mrb[0].mxu0 %v3769
      %v3885 = vpop.f32.mrb[0].mxu0
      %v3886 = vadd.f32 %v3733, %v3885
      %v3887 = vpop.f32.mrb[0].mxu0
      %v3888 = vpop.f32.mrb[0].mxu0
      %v3889 = vadd.f32 %v3733, %v3888
      %v3890 = vpop.f32.mrb[0].mxu0
      %3891 = vmatprep.mubr.bf16.mxu0 0
      %3892 = vmatmul.mubr.bf16.gmra.mrb[0].mxu0 %v3772
      %v3893 = vpop.f32.mrb[0].mxu0
      %v3894 = vadd.f32 %v3733, %v3893
      %v3895 = vpop.f32.mrb[0].mxu0
      %v3896 = vpop.f32.mrb[0].mxu0
      %v3897 = vadd.f32 %v3733, %v3896
      %v3898 = vpop.f32.mrb[0].mxu0
      %3899 = vmatprep.mubr.bf16.mxu0 0
      %3900 = vmatmul.mubr.bf16.gmra.mrb[0].mxu0 %v3775
      %v3901 = vpop.f32.mrb[0].mxu0
      %v3902 = vadd.f32 %v3733, %v3901
      %v3903 = vpop.f32.mrb[0].mxu0
      %v3904 = vpop.f32.mrb[0].mxu0
      %v3905 = vadd.f32 %v3733, %v3904
      %v3906 = vpop.f32.mrb[0].mxu0
      %3907 = vmatprep.mubr.bf16.mxu0 0
      %3908 = vmatmul.mubr.bf16.gmra.mrb[0].mxu0 %v3778
      %v3909 = vpop.f32.mrb[0].mxu0
      %v3910 = vadd.f32 %v3733, %v3909
      %v3911 = vpop.f32.mrb[0].mxu0
      %v3912 = vpop.f32.mrb[0].mxu0
      %v3913 = vadd.f32 %v3733, %v3912
      %v3914 = vpop.f32.mrb[0].mxu0
      %3915 = vmatprep.mubr.bf16.mxu0 0
      %3916 = vmatmul.mubr.bf16.gmra.mrb[0].mxu0 %v3781
      %v3917 = vpop.f32.mrb[0].mxu0
      %v3918 = vadd.f32 %v3733, %v3917
      %v3919 = vpop.f32.mrb[0].mxu0
      %v3920 = vpop.f32.mrb[0].mxu0
      %v3921 = vadd.f32 %v3733, %v3920
      %v3922 = vpop.f32.mrb[0].mxu0
      %3923 = vmatprep.mubr.bf16.mxu0 0
      %3924 = vmatmul.mubr.bf16.gmra.mrb[0].mxu0 %v3784
      %v3925 = vpop.f32.mrb[0].mxu0
      %v3926 = vadd.f32 %v3733, %v3925
      %v3927 = vpop.f32.mrb[0].mxu0
      %v3928 = vpop.f32.mrb[0].mxu0
      %v3929 = vadd.f32 %v3733, %v3928
      %v3930 = vpop.f32.mrb[0].mxu0
      %3931 = vmatprep.mubr.bf16.mxu0 0
      %3932 = vmatmul.mubr.bf16.gmra.mrb[0].mxu0 %v3787
      %v3933 = vpop.f32.mrb[0].mxu0
      %v3934 = vadd.f32 %v3733, %v3933
      %v3935 = vpop.f32.mrb[0].mxu0
      %v3936 = vpop.f32.mrb[0].mxu0
      %v3937 = vadd.f32 %v3733, %v3936
      %v3938 = vpop.f32.mrb[0].mxu0
      %3939 = vmatprep.mubr.bf16.mxu0 0
      %3940 = vmatmul.mubr.bf16.gmra.mrb[0].mxu0 %v3790
      %v3941 = vpop.f32.mrb[0].mxu0
      %v3942 = vadd.f32 %v3733, %v3941
      %v3943 = vpop.f32.mrb[0].mxu0
      %v3944 = vpop.f32.mrb[0].mxu0
      %v3945 = vadd.f32 %v3733, %v3944
      %v3946 = vpop.f32.mrb[0].mxu0
      %3947 = vmatprep.mubr.bf16.mxu0 0
      %3948 = vmatmul.mubr.bf16.gmra.mrb[0].mxu0 %v3793
      %v3949 = vpop.f32.mrb[0].mxu0
      %v3950 = vadd.f32 %v3733, %v3949
      %v3951 = vpop.f32.mrb[0].mxu0
      %v3952 = vpop.f32.mrb[0].mxu0
      %v3953 = vadd.f32 %v3733, %v3952
      %v3954 = vpop.f32.mrb[0].mxu0
      %3955 = vdwg.mxu0
      %vm3956 = vcmp.ge.f32.partialorder %v3830, 0.0
      %vm3957 = vcmp.ge.f32.partialorder %v3833, 0.0
      %vm3958 = vcmp.ge.f32.partialorder %v3838, 0.0
      %vm3959 = vcmp.ge.f32.partialorder %v3841, 0.0
      %vm3960 = vcmp.ge.f32.partialorder %v3846, 0.0
      %vm3961 = vcmp.ge.f32.partialorder %v3849, 0.0
      %vm3962 = vcmp.ge.f32.partialorder %v3854, 0.0
      %vm3963 = vcmp.ge.f32.partialorder %v3857, 0.0
      %vm3964 = vcmp.ge.f32.partialorder %v3862, 0.0
      %vm3965 = vcmp.ge.f32.partialorder %v3865, 0.0
      %vm3966 = vcmp.ge.f32.partialorder %v3870, 0.0
      %vm3967 = vcmp.ge.f32.partialorder %v3873, 0.0
      %vm3968 = vcmp.ge.f32.partialorder %v3878, 0.0
      %vm3969 = vcmp.ge.f32.partialorder %v3881, 0.0
      %vm3970 = vcmp.ge.f32.partialorder %v3886, 0.0
      %vm3971 = vcmp.ge.f32.partialorder %v3889, 0.0
      %vm3972 = vcmp.ge.f32.partialorder %v3894, 0.0
      %vm3973 = vcmp.ge.f32.partialorder %v3897, 0.0
      %vm3974 = vcmp.ge.f32.partialorder %v3902, 0.0
      %vm3975 = vcmp.ge.f32.partialorder %v3905, 0.0
      %vm3976 = vcmp.ge.f32.partialorder %v3910, 0.0
      %vm3977 = vcmp.ge.f32.partialorder %v3913, 0.0
      %vm3978 = vcmp.ge.f32.partialorder %v3918, 0.0
      %vm3979 = vcmp.ge.f32.partialorder %v3921, 0.0
      %vm3980 = vcmp.ge.f32.partialorder %v3926, 0.0
      %vm3981 = vcmp.ge.f32.partialorder %v3929, 0.0
      %vm3982 = vcmp.ge.f32.partialorder %v3934, 0.0
      %vm3983 = vcmp.ge.f32.partialorder %v3937, 0.0
      %vm3984 = vcmp.ge.f32.partialorder %v3942, 0.0
      %vm3985 = vcmp.ge.f32.partialorder %v3945, 0.0
      %vm3986 = vcmp.ge.f32.partialorder %v3950, 0.0
      %vm3987 = vcmp.ge.f32.partialorder %v3953, 0.0
      %v3988 = vmul.f32 %v3830, 0.22916667
      %v3989 = vmul.f32 %v3833, 0.22916667
      %v3990 = vmul.f32 %v3838, 0.22916667
      %v3991 = vmul.f32 %v3841, 0.22916667
      %v3992 = vmul.f32 %v3846, 0.22916667
      %v3993 = vmul.f32 %v3849, 0.22916667
      %v3994 = vmul.f32 %v3854, 0.22916667
      %v3995 = vmul.f32 %v3857, 0.22916667
      %v3996 = vmul.f32 %v3862, 0.22916667
      %v3997 = vmul.f32 %v3865, 0.22916667
      %v3998 = vmul.f32 %v3870, 0.22916667
      %v3999 = vmul.f32 %v3873, 0.22916667
      %v4000 = vmul.f32 %v3878, 0.22916667
      %v4001 = vmul.f32 %v3881, 0.22916667
      %v4002 = vmul.f32 %v3886, 0.22916667
      %v4003 = vmul.f32 %v3889, 0.22916667
      %v4004 = vmul.f32 %v3894, 0.22916667
      %v4005 = vmul.f32 %v3897, 0.22916667
      %v4006 = vmul.f32 %v3902, 0.22916667
      %v4007 = vmul.f32 %v3905, 0.22916667
      %v4008 = vmul.f32 %v3910, 0.22916667
      %v4009 = vmul.f32 %v3913, 0.22916667
      %v4010 = vmul.f32 %v3918, 0.22916667
      %v4011 = vmul.f32 %v3921, 0.22916667
      %v4012 = vmul.f32 %v3926, 0.22916667
      %v4013 = vmul.f32 %v3929, 0.22916667
      %v4014 = vmul.f32 %v3934, 0.22916667
      %v4015 = vmul.f32 %v3937, 0.22916667
      %v4016 = vmul.f32 %v3942, 0.22916667
      %v4017 = vmul.f32 %v3945, 0.22916667
      %v4018 = vmul.f32 %v3950, 0.22916667
      %v4019 = vmul.f32 %v3953, 0.22916667
      %v4020 = vsel %vm3956, %v3830, %v3988
      %v4021 = vsel %vm3957, %v3833, %v3989
      %v4022 = vsel %vm3958, %v3838, %v3990
      %v4023 = vsel %vm3959, %v3841, %v3991
      %v4024 = vsel %vm3960, %v3846, %v3992
      %v4025 = vsel %vm3961, %v3849, %v3993
      %v4026 = vsel %vm3962, %v3854, %v3994
      %v4027 = vsel %vm3963, %v3857, %v3995
      %v4028 = vsel %vm3964, %v3862, %v3996
      %v4029 = vsel %vm3965, %v3865, %v3997
      %v4030 = vsel %vm3966, %v3870, %v3998
      %v4031 = vsel %vm3967, %v3873, %v3999
      %v4032 = vsel %vm3968, %v3878, %v4000
      %v4033 = vsel %vm3969, %v3881, %v4001
      %v4034 = vsel %vm3970, %v3886, %v4002
      %v4035 = vsel %vm3971, %v3889, %v4003
      %v4036 = vsel %vm3972, %v3894, %v4004
      %v4037 = vsel %vm3973, %v3897, %v4005
      %v4038 = vsel %vm3974, %v3902, %v4006
      %v4039 = vsel %vm3975, %v3905, %v4007
      %v4040 = vsel %vm3976, %v3910, %v4008
      %v4041 = vsel %vm3977, %v3913, %v4009
      %v4042 = vsel %vm3978, %v3918, %v4010
      %v4043 = vsel %vm3979, %v3921, %v4011
      %v4044 = vsel %vm3980, %v3926, %v4012
      %v4045 = vsel %vm3981, %v3929, %v4013
      %v4046 = vsel %vm3982, %v3934, %v4014
      %v4047 = vsel %vm3983, %v3937, %v4015
      %v4048 = vsel %vm3984, %v3942, %v4016
      %v4049 = vsel %vm3985, %v3945, %v4017
      %v4050 = vsel %vm3986, %v3950, %v4018
      %v4051 = vsel %vm3987, %v3953, %v4019
      %s4052 = scalar_lea.vmem %s259, 256
      %4053 = vst.msk [vmem:[%s4052] sm:$0xff] %vm1756, %v4020
      %4054 = vst.msk [vmem:[%s4052 + $0x8] sm:$0xff] %vm1756, %v4021
      %4055 = vst.msk [vmem:[%s4052 + $0x10] sm:$0xff] %vm1756, %v4022
      %4056 = vst.msk [vmem:[%s4052 + $0x18] sm:$0xff] %vm1756, %v4023
      %4057 = vst.msk [vmem:[%s4052 + $0x20] sm:$0xff] %vm1756, %v4024
      %4058 = vst.msk [vmem:[%s4052 + $0x28] sm:$0xff] %vm1756, %v4025
      %4059 = vst.msk [vmem:[%s4052 + $0x30] sm:$0xff] %vm1756, %v4026
      %4060 = vst.msk [vmem:[%s4052 + $0x38] sm:$0xff] %vm1756, %v4027
      %4061 = vst.msk [vmem:[%s4052 + $0x40] sm:$0xff] %vm1756, %v4028
      %4062 = vst.msk [vmem:[%s4052 + $0x48] sm:$0xff] %vm1756, %v4029
      %4063 = vst.msk [vmem:[%s4052 + $0x50] sm:$0xff] %vm1756, %v4030
      %4064 = vst.msk [vmem:[%s4052 + $0x58] sm:$0xff] %vm1756, %v4031
      %4065 = vst.msk [vmem:[%s4052 + $0x60] sm:$0xff] %vm1756, %v4032
      %4066 = vst.msk [vmem:[%s4052 + $0x68] sm:$0xff] %vm1756, %v4033
      %4067 = vst.msk [vmem:[%s4052 + $0x70] sm:$0xff] %vm1756, %v4034
      %4068 = vst.msk [vmem:[%s4052 + $0x78] sm:$0xff] %vm1756, %v4035
      %4069 = vst.msk [vmem:[%s4052 + $0x80] sm:$0xff] %vm1756, %v4036
      %4070 = vst.msk [vmem:[%s4052 + $0x88] sm:$0xff] %vm1756, %v4037
      %4071 = vst.msk [vmem:[%s4052 + $0x90] sm:$0xff] %vm1756, %v4038
      %4072 = vst.msk [vmem:[%s4052 + $0x98] sm:$0xff] %vm1756, %v4039
      %4073 = vst.msk [vmem:[%s4052 + $0xa0] sm:$0xff] %vm1756, %v4040
      %4074 = vst.msk [vmem:[%s4052 + $0xa8] sm:$0xff] %vm1756, %v4041
      %4075 = vst.msk [vmem:[%s4052 + $0xb0] sm:$0xff] %vm1756, %v4042
      %4076 = vst.msk [vmem:[%s4052 + $0xb8] sm:$0xff] %vm1756, %v4043
      %4077 = vst.msk [vmem:[%s4052 + $0xc0] sm:$0xff] %vm1756, %v4044
      %4078 = vst.msk [vmem:[%s4052 + $0xc8] sm:$0xff] %vm1756, %v4045
      %4079 = vst.msk [vmem:[%s4052 + $0xd0] sm:$0xff] %vm1756, %v4046
      %4080 = vst.msk [vmem:[%s4052 + $0xd8] sm:$0xff] %vm1756, %v4047
      %4081 = vst.msk [vmem:[%s4052 + $0xe0] sm:$0xff] %vm1756, %v4048
      %4082 = vst.msk [vmem:[%s4052 + $0xe8] sm:$0xff] %vm1756, %v4049
      %4083 = vst.msk [vmem:[%s4052 + $0xf0] sm:$0xff] %vm1756, %v4050
      %4084 = vst.msk [vmem:[%s4052 + $0xf8] sm:$0xff] %vm1756, %v4051
      %p4085 = scmp.lt.s32.totalorder %s19, 1
      %s4086 = scalar_select %p4085, %s19, 1
      %p4087 = scmp.lt.s32.totalorder %s20, 1
      %s4088 = scalar_select %p4087, %s20, 1
      %s4089 = smul.addr %s4088, 64
      %s4090 = smul.addr %s4086, 128
      %s4091 = sadd.s32 %s4089, %s4090
      %s4092 = smul.addr %s4091, 8
      %s4093 = scalar_lea.vmem %s4, %s4092
      // Predicated region
      $region37: #{res_up_forward.3} parent=35 // pred_check
        %p4094 = pneg %p146
      $region38: #{res_up_forward.3} parent=35 // pred_check_branch
        %4096 = sbr.rel (%p4094) target = $region40
      $region39: #{res_up_forward.3} parent=35 // pred_region
        _
      $region40: #{res_up_forward.3} parent=35 // pred_fallthru
        _
    $region36: #{res_up_forward.3} parent=5 // pred_fallthru
      _
    %p4097 = scmp.le.s32.totalorder 2, %s10
    // Predicated region
    $region41: #{res_up_forward.3} parent=5 // pred_check
      %p4098 = pneg %p4097
    $region42: #{res_up_forward.3} parent=5 // pred_check_branch
      %4100 = sbr.rel (%p4098) target = $region44
    $region43: #{res_up_forward.3} parent=5 // pred_region
      %s4101 = ssub.s32 %s10, 2
      // Predicated region
      $region45: #{res_up_forward.3} parent=43 // pred_check
        %p4102 = pneg %p152
      $region46: #{res_up_forward.3} parent=43 // pred_check_branch
        %4104 = sbr.rel (%p4102) target = $region48
      $region47: #{res_up_forward.3} parent=43 // pred_region
        %p4105 = scmp.lt.s32.totalorder %s21, 1
        %s4106 = scalar_select %p4105, %s21, 1
        %p4107 = scmp.lt.s32.totalorder %s22, 1
        %s4108 = scalar_select %p4107, %s22, 1
        %s4109 = smul.addr %s4108, 64
        %s4110 = smul.addr %s4106, 128
        %s4111 = sadd.s32 %s4109, %s4110
        %s4112 = smul.addr %s4111, 8
        %s4113 = scalar_lea.vmem %s4, %s4112
      $region48: #{res_up_forward.3} parent=43 // pred_fallthru
        _
    $region44: #{res_up_forward.3} parent=5 // pred_fallthru
      _
  $region6: #{res_up_forward.3} parent=0 // loop_footer
    %s14 = sadd.s32 1, %s10
  $region7: #{res_up_forward.3} parent=0 // loop_footer_branch
    %9 = sbr.rel target = $region3
  $region8: #{res_up_forward.3} parent=0 // loop_exit
    _

</llo_original>
